<compile_context>
chip_gen: v7x
topology: tpu7x:2x2x1
jax: 0.10.0
libtpu: 0.0.40
codegen_flags: <defaults>
</compile_context>

<pallas_src>
import functools
import math

import jax
import jax.numpy as jnp
from jax.experimental import pallas as pl
from jax.experimental.pallas import tpu as pltpu


def _round_up(x, m):
    return (x + m - 1) // m * m


# ---------------------------------------------------------------------------
# Tile-size selection
# ---------------------------------------------------------------------------
def _choose_tm(m):
    """M tile (and padded M). Prefer 256-512 rows; tile must be a multiple of
    8 rows or cover the whole (small) array."""
    if m <= 512:
        return m, m                          # single full-M block
    for tm in (512, 256, 128, 64, 32, 16, 8):
        if m % tm == 0:
            return tm, m
    # rare: m > 512 and not a multiple of 8 -> pad a handful of rows
    return 256, _round_up(m, 256)


def _choose_tk(k):
    """K (contraction) tile: keep resident weight blocks modest so the
    double-buffered footprint fits v5e/v7x scoped VMEM."""
    if k <= 1024:
        return k
    for tk in (1024, 512, 256, 128):
        if k % tk == 0:
            return tk
    return k


def _choose_tn(cout):
    """Cout tile: full width up to 256, otherwise split (gives the v7x
    megacore a second parallel axis on the wide ndf*8 layers)."""
    if cout <= 256:
        return cout
    for tn in (256, 128):
        if cout % tn == 0:
            return tn
    return cout


_VMEM_LIMIT = 48 * 1024 * 1024   # above the 16/32 MiB scoped defaults, below v7x physical


# ---------------------------------------------------------------------------
# Pallas kernels
# ---------------------------------------------------------------------------
def _matmul_kernel(x_ref, w_ref, b_ref, o_ref, acc_ref, *, apply_lrelu, neg_slope):
    """bf16 patches @ bf16 weights with f32 accumulation over the K grid axis,
    fused bias add [+ LeakyReLU] and store on the final K step."""
    k = pl.program_id(2)

    @pl.when(k == 0)
    def _():
        acc_ref[...] = jnp.zeros_like(acc_ref)

    acc_ref[...] += jnp.dot(x_ref[...], w_ref[...],
                            preferred_element_type=jnp.float32)

    @pl.when(k == pl.num_programs(2) - 1)
    def _():
        r = acc_ref[...] + b_ref[...]
        if apply_lrelu:
            r = jnp.where(r > 0, r, neg_slope * r)
        o_ref[...] = r.astype(o_ref.dtype)


def _vpu_dot_kernel(x_ref, w_ref, b_ref, o_ref, acc_ref, *, apply_lrelu, neg_slope):
    """Cout == 1 classifier: broadcast multiply + lane reduction on the VPU/XLU
    (no 1-column MXU matmul, no 128-lane output padding)."""
    k = pl.program_id(1)

    @pl.when(k == 0)
    def _():
        acc_ref[...] = jnp.zeros_like(acc_ref)

    prod = x_ref[...].astype(jnp.float32) * w_ref[...].astype(jnp.float32)
    acc_ref[...] += jnp.sum(prod, axis=-1, keepdims=True)

    @pl.when(k == pl.num_programs(1) - 1)
    def _():
        r = acc_ref[...] + b_ref[...]
        if apply_lrelu:
            r = jnp.where(r > 0, r, neg_slope * r)
        o_ref[...] = r.astype(o_ref.dtype)


# ---------------------------------------------------------------------------
# Fused (patches @ W) + bias [+ LeakyReLU]
# ---------------------------------------------------------------------------
def fused_conv_matmul(patches, w_mat, bias, apply_lrelu, out_dtype,
                      neg_slope=0.2):
    """patches: (M, K) bf16, w_mat: (K, Cout) bf16, bias: (Cout,) f32."""
    M, K = patches.shape
    Kw, Cout = w_mat.shape
    assert K == Kw

    TM, Mp = _choose_tm(M)
    if Mp != M:                               # rare fallback
        patches = jnp.pad(patches, ((0, Mp - M), (0, 0)))
    TK = _choose_tk(K)

    bias2d = bias.reshape(1, Cout).astype(jnp.float32)

    if Cout == 1:
        kernel = functools.partial(_vpu_dot_kernel, apply_lrelu=apply_lrelu,
                                   neg_slope=neg_slope)
        out = pl.pallas_call(
            kernel,
            out_shape=jax.ShapeDtypeStruct((Mp, 1), out_dtype),
            grid_spec=pltpu.PrefetchScalarGridSpec(
                num_scalar_prefetch=0,
                grid=(Mp // TM, K // TK),
                in_specs=[
                    pl.BlockSpec((TM, TK), lambda i, k: (i, k)),   # patches
                    pl.BlockSpec((1, TK), lambda i, k: (0, k)),    # weight row
                    pl.BlockSpec((1, 1), lambda i, k: (0, 0)),     # bias
                ],
                out_specs=pl.BlockSpec((TM, 1), lambda i, k: (i, 0)),
                scratch_shapes=[pltpu.VMEM((TM, 1), jnp.float32)],
            ),
            compiler_params=pltpu.CompilerParams(
                dimension_semantics=("parallel", "arbitrary"),
                vmem_limit_bytes=_VMEM_LIMIT),
        )(patches, w_mat.reshape(1, K), bias2d)
    else:
        TN = _choose_tn(Cout)
        kernel = functools.partial(_matmul_kernel, apply_lrelu=apply_lrelu,
                                   neg_slope=neg_slope)
        out = pl.pallas_call(
            kernel,
            out_shape=jax.ShapeDtypeStruct((Mp, Cout), out_dtype),
            grid_spec=pltpu.PrefetchScalarGridSpec(
                num_scalar_prefetch=0,
                grid=(Mp // TM, Cout // TN, K // TK),
                in_specs=[
                    pl.BlockSpec((TM, TK), lambda i, j, k: (i, k)),  # patches
                    pl.BlockSpec((TK, TN), lambda i, j, k: (k, j)),  # weights
                    pl.BlockSpec((1, TN), lambda i, j, k: (0, j)),   # bias
                ],
                out_specs=pl.BlockSpec((TM, TN), lambda i, j, k: (i, j)),
                scratch_shapes=[pltpu.VMEM((TM, TN), jnp.float32)],
            ),
            compiler_params=pltpu.CompilerParams(
                dimension_semantics=("parallel", "parallel", "arbitrary"),
                vmem_limit_bytes=_VMEM_LIMIT),
        )(patches, w_mat, bias2d)

    if Mp != M:
        out = out[:M]
    return out


# ---------------------------------------------------------------------------
# conv(k=4, s=2, p=1) [+ LeakyReLU] via bf16 im2col + fused Pallas matmul
# ---------------------------------------------------------------------------
def conv2d_s2k4p1(x_nhwc, w_oihw, bias, apply_lrelu, out_dtype):
    N, H, W, Cin = x_nhwc.shape
    Cout = w_oihw.shape[0]
    ks, stride, pad = 4, 2, 1

    # Pad channels to a multiple of 8 (zeros) so K = 16*Cin is 128-aligned;
    # padded channels / weight rows contribute exactly zero.
    cin_p = _round_up(Cin, 8)
    if cin_p != Cin:
        x_nhwc = jnp.pad(x_nhwc, ((0, 0), (0, 0), (0, 0), (0, cin_p - Cin)))
        w_oihw = jnp.pad(w_oihw, ((0, 0), (0, cin_p - Cin), (0, 0), (0, 0)))

    x_bf = x_nhwc.astype(jnp.bfloat16)
    xp = jnp.pad(x_bf, ((0, 0), (pad, pad), (pad, pad), (0, 0)))
    Ho = (H + 2 * pad - ks) // stride + 1
    Wo = (W + 2 * pad - ks) // stride + 1

    # im2col: single bf16 materialization, patch element ordering (kh, kw, cin)
    cols = [xp[:, kh:kh + stride * Ho:stride, kw:kw + stride * Wo:stride, :]
            for kh in range(ks) for kw in range(ks)]
    patches = jnp.concatenate(cols, axis=-1).reshape(N * Ho * Wo, ks * ks * cin_p)

    # OIHW -> (kh, kw, Cin, Cout) -> (kh*kw*Cin, Cout), matching the patch order
    w_mat = jnp.transpose(w_oihw, (2, 3, 1, 0)).reshape(
        ks * ks * cin_p, Cout).astype(jnp.bfloat16)

    out = fused_conv_matmul(patches, w_mat, bias, apply_lrelu, out_dtype)
    return out.reshape(N, Ho, Wo, Cout)


# ---------------------------------------------------------------------------
# Parameter init (deterministic, PyTorch-default-style uniform(-1/sqrt(fan_in)))
# ---------------------------------------------------------------------------
def init_conv_params(key, cin, cout, ks=4):
    fan_in = cin * ks * ks
    bound = 1.0 / math.sqrt(fan_in)
    k1, k2 = jax.random.split(key)
    w = jax.random.uniform(k1, (cout, cin, ks, ks), jnp.float32, -bound, bound)
    b = jax.random.uniform(k2, (cout,), jnp.float32, -bound, bound)
    return w, b


def make_params(key, num_classes, ndf):
    chans = [num_classes, ndf, ndf * 2, ndf * 4, ndf * 8, 1]
    keys = jax.random.split(key, len(chans) - 1)
    return [init_conv_params(k, ci, co)
            for k, ci, co in zip(keys, chans[:-1], chans[1:])]


# ---------------------------------------------------------------------------
# Forward pass (matches OutspaceDiscriminator.forward)
# ---------------------------------------------------------------------------
def outspace_discriminator(x_nchw, params):
    x = jnp.transpose(x_nchw, (0, 2, 3, 1))              # NCHW -> NHWC
    n_layers = len(params)
    for i, (w, b) in enumerate(params):
        last = i == n_layers - 1
        x = conv2d_s2k4p1(x, w, b,
                          apply_lrelu=not last,          # classifier: no act
                          out_dtype=jnp.float32 if last else jnp.bfloat16)
    return jnp.transpose(x, (0, 3, 1, 2))                # NHWC -> NCHW


# Pure-JAX f32 reference (lax conv) for the correctness check.
def reference_forward(x_nchw, params):
    x = x_nchw
    n_layers = len(params)
    for i, (w, b) in enumerate(params):
        x = jax.lax.conv_general_dilated(
            x, w, window_strides=(2, 2), padding=((1, 1), (1, 1)),
            dimension_numbers=("NCHW", "OIHW", "NCHW"))
        x = x + b[None, :, None, None]
        if i < n_layers - 1:
            x = jnp.where(x > 0, x, 0.2 * x)
    return x


if __name__ == "__main__":
    num_classes = 4
    ndf = 8                     # small for the demo (module default is 64)
    batch, spatial = 2, 32      # 32 -> 16 -> 8 -> 4 -> 2 -> 1

    key = jax.random.PRNGKey(0)
    k_x, k_p = jax.random.split(key)
    x = jax.random.normal(k_x, (batch, num_classes, spatial, spatial), jnp.float32)
    params = make_params(k_p, num_classes, ndf)

    out = jax.jit(outspace_discriminator)(x, params)
    out = jax.block_until_ready(out)

    ref = jax.block_until_ready(reference_forward(x, params))
    assert out.shape == (batch, 1, 1, 1), out.shape
    # bf16 matmul operands / bf16 hidden activations (f32 accumulation) vs the
    # pure-f32 reference -> relaxed tolerance.
    assert jnp.allclose(out, ref, rtol=5e-2, atol=2e-2), (out, ref)

    print("KERNEL_OK")
</pallas_src>

<mosaic_0001>
module attributes {stable_mosaic.version = 11 : i64} {
  func.func @_matmul_kernel(%arg0: i32, %arg1: i32, %arg2: i32, %arg3: memref<512x128xbf16, #tpu.memory_space<vmem>>, %arg4: memref<128x8xbf16, #tpu.memory_space<vmem>>, %arg5: memref<1x8xf32, #tpu.memory_space<vmem>>, %arg6: memref<512x8xbf16, #tpu.memory_space<vmem>>, %arg7: memref<512x8xf32, #tpu.memory_space<vmem>>) attributes {dimension_semantics = [#tpu.dimension_semantics<parallel>, #tpu.dimension_semantics<parallel>, #tpu.dimension_semantics<arbitrary>], iteration_bounds = array<i64: 1, 1, 1>, scalar_prefetch = 0 : i64, scratch_operands = 1 : i64, tpu.core_type = #tpu.core_type<tc>, window_params = [{transform_indices = @transform_0, window_bounds = array<i64: 512, 128>}, {transform_indices = @transform_1, window_bounds = array<i64: 128, 8>}, {transform_indices = @transform_2, window_bounds = array<i64: 1, 8>}, {transform_indices = @transform_3, window_bounds = array<i64: 512, 8>}]} {
    %c0_i32 = arith.constant 0 : i32
    %0 = arith.cmpi eq, %arg2, %c0_i32 : i32
    %1 = arith.extui %0 : i1 to i32
    %c0_i32_0 = arith.constant 0 : i32
    %2 = arith.cmpi ne, %1, %c0_i32_0 : i32
    scf.if %2 {
      %cst_10 = arith.constant 0.000000e+00 : f32
      %12 = vector.broadcast %cst_10 : f32 to vector<512x8xf32>
      %c0_11 = arith.constant 0 : index
      %c0_12 = arith.constant 0 : index
      %13 = vector.load %arg7[%c0_11, %c0_12] : memref<512x8xf32, #tpu.memory_space<vmem>>, vector<512x8xf32>
      tpu.vector_store %arg7[%c0_11, %c0_12], %12 {strides = array<i32>} : memref<512x8xf32, #tpu.memory_space<vmem>>, vector<512x8xf32>,
    } else {
    }
    %c0 = arith.constant 0 : index
    %c0_1 = arith.constant 0 : index
    %3 = vector.load %arg7[%c0, %c0_1] : memref<512x8xf32, #tpu.memory_space<vmem>>, vector<512x8xf32>
    %c0_2 = arith.constant 0 : index
    %c0_3 = arith.constant 0 : index
    %4 = vector.load %arg3[%c0_2, %c0_3] : memref<512x128xbf16, #tpu.memory_space<vmem>>, vector<512x128xbf16>
    %c0_4 = arith.constant 0 : index
    %c0_5 = arith.constant 0 : index
    %5 = vector.load %arg4[%c0_4, %c0_5] : memref<128x8xbf16, #tpu.memory_space<vmem>>, vector<128x8xbf16>
    %cst = arith.constant dense<0.000000e+00> : vector<512x8xf32>
    %6 = tpu.matmul %4, %5, %cst {dimension_numbers = #tpu.dot_dimension_numbers<[1], [0], [0], [1], [0, 0, 1, 1], [], []>} : vector<512x128xbf16>, vector<128x8xbf16>, vector<512x8xf32> -> vector<512x8xf32>
    %7 = arith.addf %3, %6 : vector<512x8xf32>
    %c0_6 = arith.constant 0 : index
    %c0_7 = arith.constant 0 : index
    %8 = vector.load %arg7[%c0_6, %c0_7] : memref<512x8xf32, #tpu.memory_space<vmem>>, vector<512x8xf32>
    tpu.vector_store %arg7[%c0_6, %c0_7], %7 {strides = array<i32>} : memref<512x8xf32, #tpu.memory_space<vmem>>, vector<512x8xf32>,
    %c0_i32_8 = arith.constant 0 : i32
    %9 = arith.cmpi eq, %arg2, %c0_i32_8 : i32
    %10 = arith.extui %9 : i1 to i32
    %c0_i32_9 = arith.constant 0 : i32
    %11 = arith.cmpi ne, %10, %c0_i32_9 : i32
    scf.if %11 {
      %c0_10 = arith.constant 0 : index
      %c0_11 = arith.constant 0 : index
      %12 = vector.load %arg7[%c0_10, %c0_11] : memref<512x8xf32, #tpu.memory_space<vmem>>, vector<512x8xf32>
      %c0_12 = arith.constant 0 : index
      %c0_13 = arith.constant 0 : index
      %13 = vector.load %arg5[%c0_12, %c0_13] : memref<1x8xf32, #tpu.memory_space<vmem>>, vector<1x8xf32>
      %14 = vector.broadcast %13 : vector<1x8xf32> to vector<512x8xf32>
      %15 = arith.addf %12, %14 : vector<512x8xf32>
      %cst_14 = arith.constant 0.000000e+00 : f32
      %16 = vector.broadcast %cst_14 : f32 to vector<512x8xf32>
      %17 = arith.cmpf ogt, %15, %16 : vector<512x8xf32>
      %cst_15 = arith.constant 2.000000e-01 : f32
      %18 = vector.broadcast %cst_15 : f32 to vector<512x8xf32>
      %19 = arith.mulf %18, %15 : vector<512x8xf32>
      %20 = arith.select %17, %15, %19 : vector<512x8xi1>, vector<512x8xf32>
      %21 = arith.truncf %20 : vector<512x8xf32> to vector<512x8xbf16>
      %c0_16 = arith.constant 0 : index
      %c0_17 = arith.constant 0 : index
      %22 = vector.load %arg6[%c0_16, %c0_17] : memref<512x8xbf16, #tpu.memory_space<vmem>>, vector<512x8xbf16>
      tpu.vector_store %arg6[%c0_16, %c0_17], %21 {strides = array<i32>} : memref<512x8xbf16, #tpu.memory_space<vmem>>, vector<512x8xbf16>,
    } else {
    }
    return
  }
  func.func @transform_0(%arg0: i32, %arg1: i32, %arg2: i32) -> (i32, i32) {
    %c0_i32 = arith.constant 0 : i32
    return %arg0, %arg2 : i32, i32
  }
  func.func @transform_1(%arg0: i32, %arg1: i32, %arg2: i32) -> (i32, i32) {
    %c0_i32 = arith.constant 0 : i32
    return %arg2, %arg1 : i32, i32
  }
  func.func @transform_2(%arg0: i32, %arg1: i32, %arg2: i32) -> (i32, i32) {
    %c0_i32 = arith.constant 0 : i32
    %c0_i32_0 = arith.constant 0 : i32
    return %c0_i32, %arg1 : i32, i32
  }
  func.func @transform_3(%arg0: i32, %arg1: i32, %arg2: i32) -> (i32, i32) {
    %c0_i32 = arith.constant 0 : i32
    return %arg0, %arg1 : i32, i32
  }
}

module attributes {stable_mosaic.version = 11 : i64} {
  func.func @_matmul_kernel(%arg0: i32, %arg1: i32, %arg2: i32, %arg3: memref<128x128xbf16, #tpu.memory_space<vmem>>, %arg4: memref<128x16xbf16, #tpu.memory_space<vmem>>, %arg5: memref<1x16xf32, #tpu.memory_space<vmem>>, %arg6: memref<128x16xbf16, #tpu.memory_space<vmem>>, %arg7: memref<128x16xf32, #tpu.memory_space<vmem>>) attributes {dimension_semantics = [#tpu.dimension_semantics<parallel>, #tpu.dimension_semantics<parallel>, #tpu.dimension_semantics<arbitrary>], iteration_bounds = array<i64: 1, 1, 1>, scalar_prefetch = 0 : i64, scratch_operands = 1 : i64, tpu.core_type = #tpu.core_type<tc>, window_params = [{transform_indices = @transform_0, window_bounds = array<i64: 128, 128>}, {transform_indices = @transform_1, window_bounds = array<i64: 128, 16>}, {transform_indices = @transform_2, window_bounds = array<i64: 1, 16>}, {transform_indices = @transform_3, window_bounds = array<i64: 128, 16>}]} {
    %c0_i32 = arith.constant 0 : i32
    %0 = arith.cmpi eq, %arg2, %c0_i32 : i32
    %1 = arith.extui %0 : i1 to i32
    %c0_i32_0 = arith.constant 0 : i32
    %2 = arith.cmpi ne, %1, %c0_i32_0 : i32
    scf.if %2 {
      %cst_10 = arith.constant 0.000000e+00 : f32
      %12 = vector.broadcast %cst_10 : f32 to vector<128x16xf32>
      %c0_11 = arith.constant 0 : index
      %c0_12 = arith.constant 0 : index
      %13 = vector.load %arg7[%c0_11, %c0_12] : memref<128x16xf32, #tpu.memory_space<vmem>>, vector<128x16xf32>
      tpu.vector_store %arg7[%c0_11, %c0_12], %12 {strides = array<i32>} : memref<128x16xf32, #tpu.memory_space<vmem>>, vector<128x16xf32>,
    } else {
    }
    %c0 = arith.constant 0 : index
    %c0_1 = arith.constant 0 : index
    %3 = vector.load %arg7[%c0, %c0_1] : memref<128x16xf32, #tpu.memory_space<vmem>>, vector<128x16xf32>
    %c0_2 = arith.constant 0 : index
    %c0_3 = arith.constant 0 : index
    %4 = vector.load %arg3[%c0_2, %c0_3] : memref<128x128xbf16, #tpu.memory_space<vmem>>, vector<128x128xbf16>
    %c0_4 = arith.constant 0 : index
    %c0_5 = arith.constant 0 : index
    %5 = vector.load %arg4[%c0_4, %c0_5] : memref<128x16xbf16, #tpu.memory_space<vmem>>, vector<128x16xbf16>
    %cst = arith.constant dense<0.000000e+00> : vector<128x16xf32>
    %6 = tpu.matmul %4, %5, %cst {dimension_numbers = #tpu.dot_dimension_numbers<[1], [0], [0], [1], [0, 0, 1, 1], [], []>} : vector<128x128xbf16>, vector<128x16xbf16>, vector<128x16xf32> -> vector<128x16xf32>
    %7 = arith.addf %3, %6 : vector<128x16xf32>
    %c0_6 = arith.constant 0 : index
    %c0_7 = arith.constant 0 : index
    %8 = vector.load %arg7[%c0_6, %c0_7] : memref<128x16xf32, #tpu.memory_space<vmem>>, vector<128x16xf32>
    tpu.vector_store %arg7[%c0_6, %c0_7], %7 {strides = array<i32>} : memref<128x16xf32, #tpu.memory_space<vmem>>, vector<128x16xf32>,
    %c0_i32_8 = arith.constant 0 : i32
    %9 = arith.cmpi eq, %arg2, %c0_i32_8 : i32
    %10 = arith.extui %9 : i1 to i32
    %c0_i32_9 = arith.constant 0 : i32
    %11 = arith.cmpi ne, %10, %c0_i32_9 : i32
    scf.if %11 {
      %c0_10 = arith.constant 0 : index
      %c0_11 = arith.constant 0 : index
      %12 = vector.load %arg7[%c0_10, %c0_11] : memref<128x16xf32, #tpu.memory_space<vmem>>, vector<128x16xf32>
      %c0_12 = arith.constant 0 : index
      %c0_13 = arith.constant 0 : index
      %13 = vector.load %arg5[%c0_12, %c0_13] : memref<1x16xf32, #tpu.memory_space<vmem>>, vector<1x16xf32>
      %14 = vector.broadcast %13 : vector<1x16xf32> to vector<128x16xf32>
      %15 = arith.addf %12, %14 : vector<128x16xf32>
      %cst_14 = arith.constant 0.000000e+00 : f32
      %16 = vector.broadcast %cst_14 : f32 to vector<128x16xf32>
      %17 = arith.cmpf ogt, %15, %16 : vector<128x16xf32>
      %cst_15 = arith.constant 2.000000e-01 : f32
      %18 = vector.broadcast %cst_15 : f32 to vector<128x16xf32>
      %19 = arith.mulf %18, %15 : vector<128x16xf32>
      %20 = arith.select %17, %15, %19 : vector<128x16xi1>, vector<128x16xf32>
      %21 = arith.truncf %20 : vector<128x16xf32> to vector<128x16xbf16>
      %c0_16 = arith.constant 0 : index
      %c0_17 = arith.constant 0 : index
      %22 = vector.load %arg6[%c0_16, %c0_17] : memref<128x16xbf16, #tpu.memory_space<vmem>>, vector<128x16xbf16>
      tpu.vector_store %arg6[%c0_16, %c0_17], %21 {strides = array<i32>} : memref<128x16xbf16, #tpu.memory_space<vmem>>, vector<128x16xbf16>,
    } else {
    }
    return
  }
  func.func @transform_0(%arg0: i32, %arg1: i32, %arg2: i32) -> (i32, i32) {
    %c0_i32 = arith.constant 0 : i32
    return %arg0, %arg2 : i32, i32
  }
  func.func @transform_1(%arg0: i32, %arg1: i32, %arg2: i32) -> (i32, i32) {
    %c0_i32 = arith.constant 0 : i32
    return %arg2, %arg1 : i32, i32
  }
  func.func @transform_2(%arg0: i32, %arg1: i32, %arg2: i32) -> (i32, i32) {
    %c0_i32 = arith.constant 0 : i32
    %c0_i32_0 = arith.constant 0 : i32
    return %c0_i32, %arg1 : i32, i32
  }
  func.func @transform_3(%arg0: i32, %arg1: i32, %arg2: i32) -> (i32, i32) {
    %c0_i32 = arith.constant 0 : i32
    return %arg0, %arg1 : i32, i32
  }
}

module attributes {stable_mosaic.version = 11 : i64} {
  func.func @_matmul_kernel(%arg0: i32, %arg1: i32, %arg2: i32, %arg3: memref<32x256xbf16, #tpu.memory_space<vmem>>, %arg4: memref<256x32xbf16, #tpu.memory_space<vmem>>, %arg5: memref<1x32xf32, #tpu.memory_space<vmem>>, %arg6: memref<32x32xbf16, #tpu.memory_space<vmem>>, %arg7: memref<32x32xf32, #tpu.memory_space<vmem>>) attributes {dimension_semantics = [#tpu.dimension_semantics<parallel>, #tpu.dimension_semantics<parallel>, #tpu.dimension_semantics<arbitrary>], iteration_bounds = array<i64: 1, 1, 1>, scalar_prefetch = 0 : i64, scratch_operands = 1 : i64, tpu.core_type = #tpu.core_type<tc>, window_params = [{transform_indices = @transform_0, window_bounds = array<i64: 32, 256>}, {transform_indices = @transform_1, window_bounds = array<i64: 256, 32>}, {transform_indices = @transform_2, window_bounds = array<i64: 1, 32>}, {transform_indices = @transform_3, window_bounds = array<i64: 32, 32>}]} {
    %c0_i32 = arith.constant 0 : i32
    %0 = arith.cmpi eq, %arg2, %c0_i32 : i32
    %1 = arith.extui %0 : i1 to i32
    %c0_i32_0 = arith.constant 0 : i32
    %2 = arith.cmpi ne, %1, %c0_i32_0 : i32
    scf.if %2 {
      %cst_10 = arith.constant 0.000000e+00 : f32
      %12 = vector.broadcast %cst_10 : f32 to vector<32x32xf32>
      %c0_11 = arith.constant 0 : index
      %c0_12 = arith.constant 0 : index
      %13 = vector.load %arg7[%c0_11, %c0_12] : memref<32x32xf32, #tpu.memory_space<vmem>>, vector<32x32xf32>
      tpu.vector_store %arg7[%c0_11, %c0_12], %12 {strides = array<i32>} : memref<32x32xf32, #tpu.memory_space<vmem>>, vector<32x32xf32>,
    } else {
    }
    %c0 = arith.constant 0 : index
    %c0_1 = arith.constant 0 : index
    %3 = vector.load %arg7[%c0, %c0_1] : memref<32x32xf32, #tpu.memory_space<vmem>>, vector<32x32xf32>
    %c0_2 = arith.constant 0 : index
    %c0_3 = arith.constant 0 : index
    %4 = vector.load %arg3[%c0_2, %c0_3] : memref<32x256xbf16, #tpu.memory_space<vmem>>, vector<32x256xbf16>
    %c0_4 = arith.constant 0 : index
    %c0_5 = arith.constant 0 : index
    %5 = vector.load %arg4[%c0_4, %c0_5] : memref<256x32xbf16, #tpu.memory_space<vmem>>, vector<256x32xbf16>
    %cst = arith.constant dense<0.000000e+00> : vector<32x32xf32>
    %6 = tpu.matmul %4, %5, %cst {dimension_numbers = #tpu.dot_dimension_numbers<[1], [0], [0], [1], [0, 0, 1, 1], [], []>} : vector<32x256xbf16>, vector<256x32xbf16>, vector<32x32xf32> -> vector<32x32xf32>
    %7 = arith.addf %3, %6 : vector<32x32xf32>
    %c0_6 = arith.constant 0 : index
    %c0_7 = arith.constant 0 : index
    %8 = vector.load %arg7[%c0_6, %c0_7] : memref<32x32xf32, #tpu.memory_space<vmem>>, vector<32x32xf32>
    tpu.vector_store %arg7[%c0_6, %c0_7], %7 {strides = array<i32>} : memref<32x32xf32, #tpu.memory_space<vmem>>, vector<32x32xf32>,
    %c0_i32_8 = arith.constant 0 : i32
    %9 = arith.cmpi eq, %arg2, %c0_i32_8 : i32
    %10 = arith.extui %9 : i1 to i32
    %c0_i32_9 = arith.constant 0 : i32
    %11 = arith.cmpi ne, %10, %c0_i32_9 : i32
    scf.if %11 {
      %c0_10 = arith.constant 0 : index
      %c0_11 = arith.constant 0 : index
      %12 = vector.load %arg7[%c0_10, %c0_11] : memref<32x32xf32, #tpu.memory_space<vmem>>, vector<32x32xf32>
      %c0_12 = arith.constant 0 : index
      %c0_13 = arith.constant 0 : index
      %13 = vector.load %arg5[%c0_12, %c0_13] : memref<1x32xf32, #tpu.memory_space<vmem>>, vector<1x32xf32>
      %14 = vector.broadcast %13 : vector<1x32xf32> to vector<32x32xf32>
      %15 = arith.addf %12, %14 : vector<32x32xf32>
      %cst_14 = arith.constant 0.000000e+00 : f32
      %16 = vector.broadcast %cst_14 : f32 to vector<32x32xf32>
      %17 = arith.cmpf ogt, %15, %16 : vector<32x32xf32>
      %cst_15 = arith.constant 2.000000e-01 : f32
      %18 = vector.broadcast %cst_15 : f32 to vector<32x32xf32>
      %19 = arith.mulf %18, %15 : vector<32x32xf32>
      %20 = arith.select %17, %15, %19 : vector<32x32xi1>, vector<32x32xf32>
      %21 = arith.truncf %20 : vector<32x32xf32> to vector<32x32xbf16>
      %c0_16 = arith.constant 0 : index
      %c0_17 = arith.constant 0 : index
      %22 = vector.load %arg6[%c0_16, %c0_17] : memref<32x32xbf16, #tpu.memory_space<vmem>>, vector<32x32xbf16>
      tpu.vector_store %arg6[%c0_16, %c0_17], %21 {strides = array<i32>} : memref<32x32xbf16, #tpu.memory_space<vmem>>, vector<32x32xbf16>,
    } else {
    }
    return
  }
  func.func @transform_0(%arg0: i32, %arg1: i32, %arg2: i32) -> (i32, i32) {
    %c0_i32 = arith.constant 0 : i32
    return %arg0, %arg2 : i32, i32
  }
  func.func @transform_1(%arg0: i32, %arg1: i32, %arg2: i32) -> (i32, i32) {
    %c0_i32 = arith.constant 0 : i32
    return %arg2, %arg1 : i32, i32
  }
  func.func @transform_2(%arg0: i32, %arg1: i32, %arg2: i32) -> (i32, i32) {
    %c0_i32 = arith.constant 0 : i32
    %c0_i32_0 = arith.constant 0 : i32
    return %c0_i32, %arg1 : i32, i32
  }
  func.func @transform_3(%arg0: i32, %arg1: i32, %arg2: i32) -> (i32, i32) {
    %c0_i32 = arith.constant 0 : i32
    return %arg0, %arg1 : i32, i32
  }
}

module attributes {stable_mosaic.version = 11 : i64} {
  func.func @_matmul_kernel(%arg0: i32, %arg1: i32, %arg2: i32, %arg3: memref<8x512xbf16, #tpu.memory_space<vmem>>, %arg4: memref<512x64xbf16, #tpu.memory_space<vmem>>, %arg5: memref<1x64xf32, #tpu.memory_space<vmem>>, %arg6: memref<8x64xbf16, #tpu.memory_space<vmem>>, %arg7: memref<8x64xf32, #tpu.memory_space<vmem>>) attributes {dimension_semantics = [#tpu.dimension_semantics<parallel>, #tpu.dimension_semantics<parallel>, #tpu.dimension_semantics<arbitrary>], iteration_bounds = array<i64: 1, 1, 1>, scalar_prefetch = 0 : i64, scratch_operands = 1 : i64, tpu.core_type = #tpu.core_type<tc>, window_params = [{transform_indices = @transform_0, window_bounds = array<i64: 8, 512>}, {transform_indices = @transform_1, window_bounds = array<i64: 512, 64>}, {transform_indices = @transform_2, window_bounds = array<i64: 1, 64>}, {transform_indices = @transform_3, window_bounds = array<i64: 8, 64>}]} {
    %c0_i32 = arith.constant 0 : i32
    %0 = arith.cmpi eq, %arg2, %c0_i32 : i32
    %1 = arith.extui %0 : i1 to i32
    %c0_i32_0 = arith.constant 0 : i32
    %2 = arith.cmpi ne, %1, %c0_i32_0 : i32
    scf.if %2 {
      %cst_10 = arith.constant 0.000000e+00 : f32
      %12 = vector.broadcast %cst_10 : f32 to vector<8x64xf32>
      %c0_11 = arith.constant 0 : index
      %c0_12 = arith.constant 0 : index
      %13 = vector.load %arg7[%c0_11, %c0_12] : memref<8x64xf32, #tpu.memory_space<vmem>>, vector<8x64xf32>
      tpu.vector_store %arg7[%c0_11, %c0_12], %12 {strides = array<i32>} : memref<8x64xf32, #tpu.memory_space<vmem>>, vector<8x64xf32>,
    } else {
    }
    %c0 = arith.constant 0 : index
    %c0_1 = arith.constant 0 : index
    %3 = vector.load %arg7[%c0, %c0_1] : memref<8x64xf32, #tpu.memory_space<vmem>>, vector<8x64xf32>
    %c0_2 = arith.constant 0 : index
    %c0_3 = arith.constant 0 : index
    %4 = vector.load %arg3[%c0_2, %c0_3] : memref<8x512xbf16, #tpu.memory_space<vmem>>, vector<8x512xbf16>
    %c0_4 = arith.constant 0 : index
    %c0_5 = arith.constant 0 : index
    %5 = vector.load %arg4[%c0_4, %c0_5] : memref<512x64xbf16, #tpu.memory_space<vmem>>, vector<512x64xbf16>
    %cst = arith.constant dense<0.000000e+00> : vector<8x64xf32>
    %6 = tpu.matmul %4, %5, %cst {dimension_numbers = #tpu.dot_dimension_numbers<[1], [0], [0], [1], [0, 0, 1, 1], [], []>} : vector<8x512xbf16>, vector<512x64xbf16>, vector<8x64xf32> -> vector<8x64xf32>
    %7 = arith.addf %3, %6 : vector<8x64xf32>
    %c0_6 = arith.constant 0 : index
    %c0_7 = arith.constant 0 : index
    %8 = vector.load %arg7[%c0_6, %c0_7] : memref<8x64xf32, #tpu.memory_space<vmem>>, vector<8x64xf32>
    tpu.vector_store %arg7[%c0_6, %c0_7], %7 {strides = array<i32>} : memref<8x64xf32, #tpu.memory_space<vmem>>, vector<8x64xf32>,
    %c0_i32_8 = arith.constant 0 : i32
    %9 = arith.cmpi eq, %arg2, %c0_i32_8 : i32
    %10 = arith.extui %9 : i1 to i32
    %c0_i32_9 = arith.constant 0 : i32
    %11 = arith.cmpi ne, %10, %c0_i32_9 : i32
    scf.if %11 {
      %c0_10 = arith.constant 0 : index
      %c0_11 = arith.constant 0 : index
      %12 = vector.load %arg7[%c0_10, %c0_11] : memref<8x64xf32, #tpu.memory_space<vmem>>, vector<8x64xf32>
      %c0_12 = arith.constant 0 : index
      %c0_13 = arith.constant 0 : index
      %13 = vector.load %arg5[%c0_12, %c0_13] : memref<1x64xf32, #tpu.memory_space<vmem>>, vector<1x64xf32>
      %14 = vector.broadcast %13 : vector<1x64xf32> to vector<8x64xf32>
      %15 = arith.addf %12, %14 : vector<8x64xf32>
      %cst_14 = arith.constant 0.000000e+00 : f32
      %16 = vector.broadcast %cst_14 : f32 to vector<8x64xf32>
      %17 = arith.cmpf ogt, %15, %16 : vector<8x64xf32>
      %cst_15 = arith.constant 2.000000e-01 : f32
      %18 = vector.broadcast %cst_15 : f32 to vector<8x64xf32>
      %19 = arith.mulf %18, %15 : vector<8x64xf32>
      %20 = arith.select %17, %15, %19 : vector<8x64xi1>, vector<8x64xf32>
      %21 = arith.truncf %20 : vector<8x64xf32> to vector<8x64xbf16>
      %c0_16 = arith.constant 0 : index
      %c0_17 = arith.constant 0 : index
      %22 = vector.load %arg6[%c0_16, %c0_17] : memref<8x64xbf16, #tpu.memory_space<vmem>>, vector<8x64xbf16>
      tpu.vector_store %arg6[%c0_16, %c0_17], %21 {strides = array<i32>} : memref<8x64xbf16, #tpu.memory_space<vmem>>, vector<8x64xbf16>,
    } else {
    }
    return
  }
  func.func @transform_0(%arg0: i32, %arg1: i32, %arg2: i32) -> (i32, i32) {
    %c0_i32 = arith.constant 0 : i32
    return %arg0, %arg2 : i32, i32
  }
  func.func @transform_1(%arg0: i32, %arg1: i32, %arg2: i32) -> (i32, i32) {
    %c0_i32 = arith.constant 0 : i32
    return %arg2, %arg1 : i32, i32
  }
  func.func @transform_2(%arg0: i32, %arg1: i32, %arg2: i32) -> (i32, i32) {
    %c0_i32 = arith.constant 0 : i32
    %c0_i32_0 = arith.constant 0 : i32
    return %c0_i32, %arg1 : i32, i32
  }
  func.func @transform_3(%arg0: i32, %arg1: i32, %arg2: i32) -> (i32, i32) {
    %c0_i32 = arith.constant 0 : i32
    return %arg0, %arg1 : i32, i32
  }
}

module attributes {stable_mosaic.version = 11 : i64} {
  func.func @_vpu_dot_kernel(%arg0: i32, %arg1: i32, %arg2: memref<2x1024xbf16, #tpu.memory_space<vmem>>, %arg3: memref<1x1024xbf16, #tpu.memory_space<vmem>>, %arg4: memref<1x1xf32, #tpu.memory_space<vmem>>, %arg5: memref<2x1xf32, #tpu.memory_space<vmem>>, %arg6: memref<2x1xf32, #tpu.memory_space<vmem>>) attributes {dimension_semantics = [#tpu.dimension_semantics<parallel>, #tpu.dimension_semantics<arbitrary>], iteration_bounds = array<i64: 1, 1>, scalar_prefetch = 0 : i64, scratch_operands = 1 : i64, tpu.core_type = #tpu.core_type<tc>, window_params = [{transform_indices = @transform_0, window_bounds = array<i64: 2, 1024>}, {transform_indices = @transform_1, window_bounds = array<i64: 1, 1024>}, {pipeline_mode = #tpu.pipeline_mode<synchronous>, transform_indices = @transform_2, window_bounds = array<i64: 1, 1>}, {transform_indices = @transform_3, window_bounds = array<i64: 2, 1>}]} {
    %c0_i32 = arith.constant 0 : i32
    %0 = arith.cmpi eq, %arg1, %c0_i32 : i32
    %1 = arith.extui %0 : i1 to i32
    %c0_i32_0 = arith.constant 0 : i32
    %2 = arith.cmpi ne, %1, %c0_i32_0 : i32
    scf.if %2 {
      %cst_10 = arith.constant 0.000000e+00 : f32
      %17 = vector.broadcast %cst_10 : f32 to vector<2x1xf32>
      %c0_11 = arith.constant 0 : index
      %c0_12 = arith.constant 0 : index
      %18 = vector.load %arg6[%c0_11, %c0_12] : memref<2x1xf32, #tpu.memory_space<vmem>>, vector<2x1xf32>
      tpu.vector_store %arg6[%c0_11, %c0_12], %17 {strides = array<i32>} : memref<2x1xf32, #tpu.memory_space<vmem>>, vector<2x1xf32>,
    } else {
    }
    %c0 = arith.constant 0 : index
    %c0_1 = arith.constant 0 : index
    %3 = vector.load %arg2[%c0, %c0_1] : memref<2x1024xbf16, #tpu.memory_space<vmem>>, vector<2x1024xbf16>
    %4 = arith.extf %3 : vector<2x1024xbf16> to vector<2x1024xf32>
    %c0_2 = arith.constant 0 : index
    %c0_3 = arith.constant 0 : index
    %5 = vector.load %arg3[%c0_2, %c0_3] : memref<1x1024xbf16, #tpu.memory_space<vmem>>, vector<1x1024xbf16>
    %6 = arith.extf %5 : vector<1x1024xbf16> to vector<1x1024xf32>
    %7 = vector.broadcast %6 : vector<1x1024xf32> to vector<2x1024xf32>
    %8 = arith.mulf %4, %7 : vector<2x1024xf32>
    %c0_4 = arith.constant 0 : index
    %c0_5 = arith.constant 0 : index
    %9 = vector.load %arg6[%c0_4, %c0_5] : memref<2x1xf32, #tpu.memory_space<vmem>>, vector<2x1xf32>
    %cst = arith.constant dense<0.000000e+00> : vector<2xf32>
    %10 = vector.multi_reduction <add>, %8, %cst [1] : vector<2x1024xf32> to vector<2xf32>
    %11 = vector.shape_cast %10 : vector<2xf32> to vector<2x1xf32>
    %12 = arith.addf %9, %11 : vector<2x1xf32>
    %c0_6 = arith.constant 0 : index
    %c0_7 = arith.constant 0 : index
    %13 = vector.load %arg6[%c0_6, %c0_7] : memref<2x1xf32, #tpu.memory_space<vmem>>, vector<2x1xf32>
    tpu.vector_store %arg6[%c0_6, %c0_7], %12 {strides = array<i32>} : memref<2x1xf32, #tpu.memory_space<vmem>>, vector<2x1xf32>,
    %c0_i32_8 = arith.constant 0 : i32
    %14 = arith.cmpi eq, %arg1, %c0_i32_8 : i32
    %15 = arith.extui %14 : i1 to i32
    %c0_i32_9 = arith.constant 0 : i32
    %16 = arith.cmpi ne, %15, %c0_i32_9 : i32
    scf.if %16 {
      %c0_10 = arith.constant 0 : index
      %c0_11 = arith.constant 0 : index
      %17 = vector.load %arg6[%c0_10, %c0_11] : memref<2x1xf32, #tpu.memory_space<vmem>>, vector<2x1xf32>
      %c0_12 = arith.constant 0 : index
      %c0_13 = arith.constant 0 : index
      %18 = vector.load %arg4[%c0_12, %c0_13] : memref<1x1xf32, #tpu.memory_space<vmem>>, vector<1x1xf32>
      %19 = vector.broadcast %18 : vector<1x1xf32> to vector<2x1xf32>
      %20 = arith.addf %17, %19 : vector<2x1xf32>
      %c0_14 = arith.constant 0 : index
      %c0_15 = arith.constant 0 : index
      %21 = vector.load %arg5[%c0_14, %c0_15] : memref<2x1xf32, #tpu.memory_space<vmem>>, vector<2x1xf32>
      tpu.vector_store %arg5[%c0_14, %c0_15], %20 {strides = array<i32>} : memref<2x1xf32, #tpu.memory_space<vmem>>, vector<2x1xf32>,
    } else {
    }
    return
  }
  func.func @transform_0(%arg0: i32, %arg1: i32) -> (i32, i32) {
    %c0_i32 = arith.constant 0 : i32
    return %arg0, %arg1 : i32, i32
  }
  func.func @transform_1(%arg0: i32, %arg1: i32) -> (i32, i32) {
    %c0_i32 = arith.constant 0 : i32
    %c0_i32_0 = arith.constant 0 : i32
    return %c0_i32, %arg1 : i32, i32
  }
  func.func @transform_2(%arg0: i32, %arg1: i32) -> (i32, i32) {
    %c0_i32 = arith.constant 0 : i32
    %c0_i32_0 = arith.constant 0 : i32
    %c0_i32_1 = arith.constant 0 : i32
    return %c0_i32, %c0_i32_0 : i32, i32
  }
  func.func @transform_3(%arg0: i32, %arg1: i32) -> (i32, i32) {
    %c0_i32 = arith.constant 0 : i32
    %c0_i32_0 = arith.constant 0 : i32
    return %arg0, %c0_i32 : i32, i32
  }
}

</mosaic_0001>

<llo_original>
// kernel: outspace_discriminator.5
$region0: #{outspace_discriminator.5}
  #allocation0 [shape = 'u32[]', space=smem, size = 0x4, offset = 0x4, fixed_abs, tag = 'smem constant byte address 0x4 - core index']
  #allocation1 [shape = 'u32[144,128]{1,0:T(1,128)}', space=vmem, size = 0x12000, scoped, tag = 'internal scratch']
  #allocation2 [shape = 'f32[512,8]{1,0:T(8,128)}', space=vmem, size = 0x40000, scoped, tag = 'scratch operand']
  %s0 = inlined_call_operand.vmem [shape: bf16[512,128], index: 0, kind: input, shape index: {}]
  %s1 = inlined_call_operand.vmem [shape: bf16[128,8], index: 1, kind: input, shape index: {}]
  %s2 = inlined_call_operand.vmem [shape: f32[1,8], index: 2, kind: input, shape index: {}]
  %s3 = inlined_call_operand.vmem [shape: bf16[512,8], index: 3, kind: output, shape index: {}]
  %s4 = sld [smem:[#allocation0]]
  $region30: #{outspace_discriminator.5} parent=0
    _
  %s6 = ssub.s32 1, %s4
  %s7 = scalar_select 0, %s6, %s4
  // Predicated region
  $region2: #{outspace_discriminator.5} parent=0 // pred_check
    _
  $region3: #{outspace_discriminator.5} parent=0 // pred_check_branch
    %9 = sbr.rel (0) target = $region5
  $region4: #{outspace_discriminator.5} parent=0 // pred_region
    _
  $region5: #{outspace_discriminator.5} parent=0 // pred_fallthru
    _
  // Predicated region
  $region6: #{outspace_discriminator.5} parent=0 // pred_check
    _
  $region7: #{outspace_discriminator.5} parent=0 // pred_check_branch
    %11 = sbr.rel (0) target = $region9
  $region8: #{outspace_discriminator.5} parent=0 // pred_region
    _
  $region9: #{outspace_discriminator.5} parent=0 // pred_fallthru
    _
  // Predicated region
  $region10: #{outspace_discriminator.5} parent=0 // pred_check
    _
  $region11: #{outspace_discriminator.5} parent=0 // pred_check_branch
    %13 = sbr.rel (0) target = $region13
  $region12: #{outspace_discriminator.5} parent=0 // pred_region
    _
  $region13: #{outspace_discriminator.5} parent=0 // pred_fallthru
    _
  %p15 = scmp.eq.s32.totalorder 0, 0
  // Predicated region
  $region14: #{outspace_discriminator.5} parent=0 // pred_check
    %p16 = pneg %p15
  $region15: #{outspace_discriminator.5} parent=0 // pred_check_branch
    %18 = sbr.rel (%p16) target = $region17
  $region16: #{outspace_discriminator.5} parent=0 // pred_region
    %vm19 = vcmask 64512
    %20 = vst.msk [vmem:[#allocation2] sm:$0xff] %vm19, 0.0
    %21 = vst.msk [vmem:[#allocation2 + $0x8] sm:$0xff] %vm19, 0.0
    %22 = vst.msk [vmem:[#allocation2 + $0x10] sm:$0xff] %vm19, 0.0
    %23 = vst.msk [vmem:[#allocation2 + $0x18] sm:$0xff] %vm19, 0.0
    %24 = vst.msk [vmem:[#allocation2 + $0x20] sm:$0xff] %vm19, 0.0
    %25 = vst.msk [vmem:[#allocation2 + $0x28] sm:$0xff] %vm19, 0.0
    %26 = vst.msk [vmem:[#allocation2 + $0x30] sm:$0xff] %vm19, 0.0
    %27 = vst.msk [vmem:[#allocation2 + $0x38] sm:$0xff] %vm19, 0.0
    %28 = vst.msk [vmem:[#allocation2 + $0x40] sm:$0xff] %vm19, 0.0
    %29 = vst.msk [vmem:[#allocation2 + $0x48] sm:$0xff] %vm19, 0.0
    %30 = vst.msk [vmem:[#allocation2 + $0x50] sm:$0xff] %vm19, 0.0
    %31 = vst.msk [vmem:[#allocation2 + $0x58] sm:$0xff] %vm19, 0.0
    %32 = vst.msk [vmem:[#allocation2 + $0x60] sm:$0xff] %vm19, 0.0
    %33 = vst.msk [vmem:[#allocation2 + $0x68] sm:$0xff] %vm19, 0.0
    %34 = vst.msk [vmem:[#allocation2 + $0x70] sm:$0xff] %vm19, 0.0
    %35 = vst.msk [vmem:[#allocation2 + $0x78] sm:$0xff] %vm19, 0.0
    %36 = vst.msk [vmem:[#allocation2 + $0x80] sm:$0xff] %vm19, 0.0
    %37 = vst.msk [vmem:[#allocation2 + $0x88] sm:$0xff] %vm19, 0.0
    %38 = vst.msk [vmem:[#allocation2 + $0x90] sm:$0xff] %vm19, 0.0
    %39 = vst.msk [vmem:[#allocation2 + $0x98] sm:$0xff] %vm19, 0.0
    %40 = vst.msk [vmem:[#allocation2 + $0xa0] sm:$0xff] %vm19, 0.0
    %41 = vst.msk [vmem:[#allocation2 + $0xa8] sm:$0xff] %vm19, 0.0
    %42 = vst.msk [vmem:[#allocation2 + $0xb0] sm:$0xff] %vm19, 0.0
    %43 = vst.msk [vmem:[#allocation2 + $0xb8] sm:$0xff] %vm19, 0.0
    %44 = vst.msk [vmem:[#allocation2 + $0xc0] sm:$0xff] %vm19, 0.0
    %45 = vst.msk [vmem:[#allocation2 + $0xc8] sm:$0xff] %vm19, 0.0
    %46 = vst.msk [vmem:[#allocation2 + $0xd0] sm:$0xff] %vm19, 0.0
    %47 = vst.msk [vmem:[#allocation2 + $0xd8] sm:$0xff] %vm19, 0.0
    %48 = vst.msk [vmem:[#allocation2 + $0xe0] sm:$0xff] %vm19, 0.0
    %49 = vst.msk [vmem:[#allocation2 + $0xe8] sm:$0xff] %vm19, 0.0
    %50 = vst.msk [vmem:[#allocation2 + $0xf0] sm:$0xff] %vm19, 0.0
    %51 = vst.msk [vmem:[#allocation2 + $0xf8] sm:$0xff] %vm19, 0.0
    %52 = vst.msk [vmem:[#allocation2 + $0x100] sm:$0xff] %vm19, 0.0
    %53 = vst.msk [vmem:[#allocation2 + $0x108] sm:$0xff] %vm19, 0.0
    %54 = vst.msk [vmem:[#allocation2 + $0x110] sm:$0xff] %vm19, 0.0
    %55 = vst.msk [vmem:[#allocation2 + $0x118] sm:$0xff] %vm19, 0.0
    %56 = vst.msk [vmem:[#allocation2 + $0x120] sm:$0xff] %vm19, 0.0
    %57 = vst.msk [vmem:[#allocation2 + $0x128] sm:$0xff] %vm19, 0.0
    %58 = vst.msk [vmem:[#allocation2 + $0x130] sm:$0xff] %vm19, 0.0
    %59 = vst.msk [vmem:[#allocation2 + $0x138] sm:$0xff] %vm19, 0.0
    %60 = vst.msk [vmem:[#allocation2 + $0x140] sm:$0xff] %vm19, 0.0
    %61 = vst.msk [vmem:[#allocation2 + $0x148] sm:$0xff] %vm19, 0.0
    %62 = vst.msk [vmem:[#allocation2 + $0x150] sm:$0xff] %vm19, 0.0
    %63 = vst.msk [vmem:[#allocation2 + $0x158] sm:$0xff] %vm19, 0.0
    %64 = vst.msk [vmem:[#allocation2 + $0x160] sm:$0xff] %vm19, 0.0
    %65 = vst.msk [vmem:[#allocation2 + $0x168] sm:$0xff] %vm19, 0.0
    %66 = vst.msk [vmem:[#allocation2 + $0x170] sm:$0xff] %vm19, 0.0
    %67 = vst.msk [vmem:[#allocation2 + $0x178] sm:$0xff] %vm19, 0.0
    %68 = vst.msk [vmem:[#allocation2 + $0x180] sm:$0xff] %vm19, 0.0
    %69 = vst.msk [vmem:[#allocation2 + $0x188] sm:$0xff] %vm19, 0.0
    %70 = vst.msk [vmem:[#allocation2 + $0x190] sm:$0xff] %vm19, 0.0
    %71 = vst.msk [vmem:[#allocation2 + $0x198] sm:$0xff] %vm19, 0.0
    %72 = vst.msk [vmem:[#allocation2 + $0x1a0] sm:$0xff] %vm19, 0.0
    %73 = vst.msk [vmem:[#allocation2 + $0x1a8] sm:$0xff] %vm19, 0.0
    %74 = vst.msk [vmem:[#allocation2 + $0x1b0] sm:$0xff] %vm19, 0.0
    %75 = vst.msk [vmem:[#allocation2 + $0x1b8] sm:$0xff] %vm19, 0.0
    %76 = vst.msk [vmem:[#allocation2 + $0x1c0] sm:$0xff] %vm19, 0.0
    %77 = vst.msk [vmem:[#allocation2 + $0x1c8] sm:$0xff] %vm19, 0.0
    %78 = vst.msk [vmem:[#allocation2 + $0x1d0] sm:$0xff] %vm19, 0.0
    %79 = vst.msk [vmem:[#allocation2 + $0x1d8] sm:$0xff] %vm19, 0.0
    %80 = vst.msk [vmem:[#allocation2 + $0x1e0] sm:$0xff] %vm19, 0.0
    %81 = vst.msk [vmem:[#allocation2 + $0x1e8] sm:$0xff] %vm19, 0.0
    %82 = vst.msk [vmem:[#allocation2 + $0x1f0] sm:$0xff] %vm19, 0.0
    %83 = vst.msk [vmem:[#allocation2 + $0x1f8] sm:$0xff] %vm19, 0.0
  $region17: #{outspace_discriminator.5} parent=0 // pred_fallthru
    _
  %v84 = vld [vmem:[#allocation2] sm:$0xff]
  %v85 = vld [vmem:[#allocation2 + $0x8] sm:$0xff]
  %v86 = vld [vmem:[#allocation2 + $0x10] sm:$0xff]
  %v87 = vld [vmem:[#allocation2 + $0x18] sm:$0xff]
  %v88 = vld [vmem:[#allocation2 + $0x20] sm:$0xff]
  %v89 = vld [vmem:[#allocation2 + $0x28] sm:$0xff]
  %v90 = vld [vmem:[#allocation2 + $0x30] sm:$0xff]
  %v91 = vld [vmem:[#allocation2 + $0x38] sm:$0xff]
  %v92 = vld [vmem:[#allocation2 + $0x40] sm:$0xff]
  %v93 = vld [vmem:[#allocation2 + $0x48] sm:$0xff]
  %v94 = vld [vmem:[#allocation2 + $0x50] sm:$0xff]
  %v95 = vld [vmem:[#allocation2 + $0x58] sm:$0xff]
  %v96 = vld [vmem:[#allocation2 + $0x60] sm:$0xff]
  %v97 = vld [vmem:[#allocation2 + $0x68] sm:$0xff]
  %v98 = vld [vmem:[#allocation2 + $0x70] sm:$0xff]
  %v99 = vld [vmem:[#allocation2 + $0x78] sm:$0xff]
  %v100 = vld [vmem:[#allocation2 + $0x80] sm:$0xff]
  %v101 = vld [vmem:[#allocation2 + $0x88] sm:$0xff]
  %v102 = vld [vmem:[#allocation2 + $0x90] sm:$0xff]
  %v103 = vld [vmem:[#allocation2 + $0x98] sm:$0xff]
  %v104 = vld [vmem:[#allocation2 + $0xa0] sm:$0xff]
  %v105 = vld [vmem:[#allocation2 + $0xa8] sm:$0xff]
  %v106 = vld [vmem:[#allocation2 + $0xb0] sm:$0xff]
  %v107 = vld [vmem:[#allocation2 + $0xb8] sm:$0xff]
  %v108 = vld [vmem:[#allocation2 + $0xc0] sm:$0xff]
  %v109 = vld [vmem:[#allocation2 + $0xc8] sm:$0xff]
  %v110 = vld [vmem:[#allocation2 + $0xd0] sm:$0xff]
  %v111 = vld [vmem:[#allocation2 + $0xd8] sm:$0xff]
  %v112 = vld [vmem:[#allocation2 + $0xe0] sm:$0xff]
  %v113 = vld [vmem:[#allocation2 + $0xe8] sm:$0xff]
  %v114 = vld [vmem:[#allocation2 + $0xf0] sm:$0xff]
  %v115 = vld [vmem:[#allocation2 + $0xf8] sm:$0xff]
  %v116 = vld [vmem:[#allocation2 + $0x100] sm:$0xff]
  %v117 = vld [vmem:[#allocation2 + $0x108] sm:$0xff]
  %v118 = vld [vmem:[#allocation2 + $0x110] sm:$0xff]
  %v119 = vld [vmem:[#allocation2 + $0x118] sm:$0xff]
  %v120 = vld [vmem:[#allocation2 + $0x120] sm:$0xff]
  %v121 = vld [vmem:[#allocation2 + $0x128] sm:$0xff]
  %v122 = vld [vmem:[#allocation2 + $0x130] sm:$0xff]
  %v123 = vld [vmem:[#allocation2 + $0x138] sm:$0xff]
  %v124 = vld [vmem:[#allocation2 + $0x140] sm:$0xff]
  %v125 = vld [vmem:[#allocation2 + $0x148] sm:$0xff]
  %v126 = vld [vmem:[#allocation2 + $0x150] sm:$0xff]
  %v127 = vld [vmem:[#allocation2 + $0x158] sm:$0xff]
  %v128 = vld [vmem:[#allocation2 + $0x160] sm:$0xff]
  %v129 = vld [vmem:[#allocation2 + $0x168] sm:$0xff]
  %v130 = vld [vmem:[#allocation2 + $0x170] sm:$0xff]
  %v131 = vld [vmem:[#allocation2 + $0x178] sm:$0xff]
  %v132 = vld [vmem:[#allocation2 + $0x180] sm:$0xff]
  %v133 = vld [vmem:[#allocation2 + $0x188] sm:$0xff]
  %v134 = vld [vmem:[#allocation2 + $0x190] sm:$0xff]
  %v135 = vld [vmem:[#allocation2 + $0x198] sm:$0xff]
  %v136 = vld [vmem:[#allocation2 + $0x1a0] sm:$0xff]
  %v137 = vld [vmem:[#allocation2 + $0x1a8] sm:$0xff]
  %v138 = vld [vmem:[#allocation2 + $0x1b0] sm:$0xff]
  %v139 = vld [vmem:[#allocation2 + $0x1b8] sm:$0xff]
  %v140 = vld [vmem:[#allocation2 + $0x1c0] sm:$0xff]
  %v141 = vld [vmem:[#allocation2 + $0x1c8] sm:$0xff]
  %v142 = vld [vmem:[#allocation2 + $0x1d0] sm:$0xff]
  %v143 = vld [vmem:[#allocation2 + $0x1d8] sm:$0xff]
  %v144 = vld [vmem:[#allocation2 + $0x1e0] sm:$0xff]
  %v145 = vld [vmem:[#allocation2 + $0x1e8] sm:$0xff]
  %v146 = vld [vmem:[#allocation2 + $0x1f0] sm:$0xff]
  %v147 = vld [vmem:[#allocation2 + $0x1f8] sm:$0xff]
  %v148 = vld [vmem:[%s0] sm:$0xf]
  %v149 = vld [vmem:[%s0 + $0x4] sm:$0xf]
  %v150 = vld [vmem:[%s0 + $0x8] sm:$0xf]
  %v151 = vld [vmem:[%s0 + $0xc] sm:$0xf]
  %v152 = vld [vmem:[%s0 + $0x10] sm:$0xf]
  %v153 = vld [vmem:[%s0 + $0x14] sm:$0xf]
  %v154 = vld [vmem:[%s0 + $0x18] sm:$0xf]
  %v155 = vld [vmem:[%s0 + $0x1c] sm:$0xf]
  %v156 = vld [vmem:[%s0 + $0x20] sm:$0xf]
  %v157 = vld [vmem:[%s0 + $0x24] sm:$0xf]
  %v158 = vld [vmem:[%s0 + $0x28] sm:$0xf]
  %v159 = vld [vmem:[%s0 + $0x2c] sm:$0xf]
  %v160 = vld [vmem:[%s0 + $0x30] sm:$0xf]
  %v161 = vld [vmem:[%s0 + $0x34] sm:$0xf]
  %v162 = vld [vmem:[%s0 + $0x38] sm:$0xf]
  %v163 = vld [vmem:[%s0 + $0x3c] sm:$0xf]
  %v164 = vld [vmem:[%s0 + $0x40] sm:$0xf]
  %v165 = vld [vmem:[%s0 + $0x44] sm:$0xf]
  %v166 = vld [vmem:[%s0 + $0x48] sm:$0xf]
  %v167 = vld [vmem:[%s0 + $0x4c] sm:$0xf]
  %v168 = vld [vmem:[%s0 + $0x50] sm:$0xf]
  %v169 = vld [vmem:[%s0 + $0x54] sm:$0xf]
  %v170 = vld [vmem:[%s0 + $0x58] sm:$0xf]
  %v171 = vld [vmem:[%s0 + $0x5c] sm:$0xf]
  %v172 = vld [vmem:[%s0 + $0x60] sm:$0xf]
  %v173 = vld [vmem:[%s0 + $0x64] sm:$0xf]
  %v174 = vld [vmem:[%s0 + $0x68] sm:$0xf]
  %v175 = vld [vmem:[%s0 + $0x6c] sm:$0xf]
  %v176 = vld [vmem:[%s0 + $0x70] sm:$0xf]
  %v177 = vld [vmem:[%s0 + $0x74] sm:$0xf]
  %v178 = vld [vmem:[%s0 + $0x78] sm:$0xf]
  %v179 = vld [vmem:[%s0 + $0x7c] sm:$0xf]
  %v180 = vld [vmem:[%s0 + $0x80] sm:$0xf]
  %v181 = vld [vmem:[%s0 + $0x84] sm:$0xf]
  %v182 = vld [vmem:[%s0 + $0x88] sm:$0xf]
  %v183 = vld [vmem:[%s0 + $0x8c] sm:$0xf]
  %v184 = vld [vmem:[%s0 + $0x90] sm:$0xf]
  %v185 = vld [vmem:[%s0 + $0x94] sm:$0xf]
  %v186 = vld [vmem:[%s0 + $0x98] sm:$0xf]
  %v187 = vld [vmem:[%s0 + $0x9c] sm:$0xf]
  %v188 = vld [vmem:[%s0 + $0xa0] sm:$0xf]
  %v189 = vld [vmem:[%s0 + $0xa4] sm:$0xf]
  %v190 = vld [vmem:[%s0 + $0xa8] sm:$0xf]
  %v191 = vld [vmem:[%s0 + $0xac] sm:$0xf]
  %v192 = vld [vmem:[%s0 + $0xb0] sm:$0xf]
  %v193 = vld [vmem:[%s0 + $0xb4] sm:$0xf]
  %v194 = vld [vmem:[%s0 + $0xb8] sm:$0xf]
  %v195 = vld [vmem:[%s0 + $0xbc] sm:$0xf]
  %v196 = vld [vmem:[%s0 + $0xc0] sm:$0xf]
  %v197 = vld [vmem:[%s0 + $0xc4] sm:$0xf]
  %v198 = vld [vmem:[%s0 + $0xc8] sm:$0xf]
  %v199 = vld [vmem:[%s0 + $0xcc] sm:$0xf]
  %v200 = vld [vmem:[%s0 + $0xd0] sm:$0xf]
  %v201 = vld [vmem:[%s0 + $0xd4] sm:$0xf]
  %v202 = vld [vmem:[%s0 + $0xd8] sm:$0xf]
  %v203 = vld [vmem:[%s0 + $0xdc] sm:$0xf]
  %v204 = vld [vmem:[%s0 + $0xe0] sm:$0xf]
  %v205 = vld [vmem:[%s0 + $0xe4] sm:$0xf]
  %v206 = vld [vmem:[%s0 + $0xe8] sm:$0xf]
  %v207 = vld [vmem:[%s0 + $0xec] sm:$0xf]
  %v208 = vld [vmem:[%s0 + $0xf0] sm:$0xf]
  %v209 = vld [vmem:[%s0 + $0xf4] sm:$0xf]
  %v210 = vld [vmem:[%s0 + $0xf8] sm:$0xf]
  %v211 = vld [vmem:[%s0 + $0xfc] sm:$0xf]
  %v212 = vld [vmem:[%s1] sm:$0xf]
  %v213 = vld [vmem:[%s1 + $0x4] sm:$0xf]
  %v214 = vld [vmem:[%s1 + $0x8] sm:$0xf]
  %v215 = vld [vmem:[%s1 + $0xc] sm:$0xf]
  %v216 = vld [vmem:[%s1 + $0x10] sm:$0xf]
  %v217 = vld [vmem:[%s1 + $0x14] sm:$0xf]
  %v218 = vld [vmem:[%s1 + $0x18] sm:$0xf]
  %v219 = vld [vmem:[%s1 + $0x1c] sm:$0xf]
  %v220 = vld [vmem:[%s1 + $0x20] sm:$0xf]
  %v221 = vld [vmem:[%s1 + $0x24] sm:$0xf]
  %v222 = vld [vmem:[%s1 + $0x28] sm:$0xf]
  %v223 = vld [vmem:[%s1 + $0x2c] sm:$0xf]
  %v224 = vld [vmem:[%s1 + $0x30] sm:$0xf]
  %v225 = vld [vmem:[%s1 + $0x34] sm:$0xf]
  %v226 = vld [vmem:[%s1 + $0x38] sm:$0xf]
  %v227 = vld [vmem:[%s1 + $0x3c] sm:$0xf]
  %v292 = vunpack.c.l.b16 %v148
  %v293 = vunpack.c.l.b16 %v149
  %v294 = vunpack.c.l.b16 %v150
  %v295 = vunpack.c.l.b16 %v151
  %v296 = vunpack.c.l.b16 %v152
  %v297 = vunpack.c.l.b16 %v153
  %v298 = vunpack.c.l.b16 %v154
  %v299 = vunpack.c.l.b16 %v155
  %v300 = vunpack.c.l.b16 %v156
  %v301 = vunpack.c.l.b16 %v157
  %v302 = vunpack.c.l.b16 %v158
  %v303 = vunpack.c.l.b16 %v159
  %v304 = vunpack.c.l.b16 %v160
  %v305 = vunpack.c.l.b16 %v161
  %v306 = vunpack.c.l.b16 %v162
  %v307 = vunpack.c.l.b16 %v163
  %v308 = vunpack.c.l.b16 %v164
  %v309 = vunpack.c.l.b16 %v165
  %v310 = vunpack.c.l.b16 %v166
  %v311 = vunpack.c.l.b16 %v167
  %v312 = vunpack.c.l.b16 %v168
  %v313 = vunpack.c.l.b16 %v169
  %v314 = vunpack.c.l.b16 %v170
  %v315 = vunpack.c.l.b16 %v171
  %v316 = vunpack.c.l.b16 %v172
  %v317 = vunpack.c.l.b16 %v173
  %v318 = vunpack.c.l.b16 %v174
  %v319 = vunpack.c.l.b16 %v175
  %v320 = vunpack.c.l.b16 %v176
  %v321 = vunpack.c.l.b16 %v177
  %v322 = vunpack.c.l.b16 %v178
  %v323 = vunpack.c.l.b16 %v179
  %v324 = vunpack.c.l.b16 %v180
  %v325 = vunpack.c.l.b16 %v181
  %v326 = vunpack.c.l.b16 %v182
  %v327 = vunpack.c.l.b16 %v183
  %v328 = vunpack.c.l.b16 %v184
  %v329 = vunpack.c.l.b16 %v185
  %v330 = vunpack.c.l.b16 %v186
  %v331 = vunpack.c.l.b16 %v187
  %v332 = vunpack.c.l.b16 %v188
  %v333 = vunpack.c.l.b16 %v189
  %v334 = vunpack.c.l.b16 %v190
  %v335 = vunpack.c.l.b16 %v191
  %v336 = vunpack.c.l.b16 %v192
  %v337 = vunpack.c.l.b16 %v193
  %v338 = vunpack.c.l.b16 %v194
  %v339 = vunpack.c.l.b16 %v195
  %v340 = vunpack.c.l.b16 %v196
  %v341 = vunpack.c.l.b16 %v197
  %v342 = vunpack.c.l.b16 %v198
  %v343 = vunpack.c.l.b16 %v199
  %v344 = vunpack.c.l.b16 %v200
  %v345 = vunpack.c.l.b16 %v201
  %v346 = vunpack.c.l.b16 %v202
  %v347 = vunpack.c.l.b16 %v203
  %v348 = vunpack.c.l.b16 %v204
  %v349 = vunpack.c.l.b16 %v205
  %v350 = vunpack.c.l.b16 %v206
  %v351 = vunpack.c.l.b16 %v207
  %v352 = vunpack.c.l.b16 %v208
  %v353 = vunpack.c.l.b16 %v209
  %v354 = vunpack.c.l.b16 %v210
  %v355 = vunpack.c.l.b16 %v211
  %v356 = vpack.c.b16 %v293, %v292
  %v357 = vpack.c.b16 %v295, %v294
  %v358 = vpack.c.b16 %v297, %v296
  %v359 = vpack.c.b16 %v299, %v298
  %v360 = vpack.c.b16 %v301, %v300
  %v361 = vpack.c.b16 %v303, %v302
  %v362 = vpack.c.b16 %v305, %v304
  %v363 = vpack.c.b16 %v307, %v306
  %v364 = vpack.c.b16 %v309, %v308
  %v365 = vpack.c.b16 %v311, %v310
  %v366 = vpack.c.b16 %v313, %v312
  %v367 = vpack.c.b16 %v315, %v314
  %v368 = vpack.c.b16 %v317, %v316
  %v369 = vpack.c.b16 %v319, %v318
  %v370 = vpack.c.b16 %v321, %v320
  %v371 = vpack.c.b16 %v323, %v322
  %v372 = vpack.c.b16 %v325, %v324
  %v373 = vpack.c.b16 %v327, %v326
  %v374 = vpack.c.b16 %v329, %v328
  %v375 = vpack.c.b16 %v331, %v330
  %v376 = vpack.c.b16 %v333, %v332
  %v377 = vpack.c.b16 %v335, %v334
  %v378 = vpack.c.b16 %v337, %v336
  %v379 = vpack.c.b16 %v339, %v338
  %v380 = vpack.c.b16 %v341, %v340
  %v381 = vpack.c.b16 %v343, %v342
  %v382 = vpack.c.b16 %v345, %v344
  %v383 = vpack.c.b16 %v347, %v346
  %v384 = vpack.c.b16 %v349, %v348
  %v385 = vpack.c.b16 %v351, %v350
  %v386 = vpack.c.b16 %v353, %v352
  %v387 = vpack.c.b16 %v355, %v354
  %v436 = vunpack.c.l.b16 %v212
  %v437 = vunpack.c.l.b16 %v213
  %v438 = vunpack.c.l.b16 %v214
  %v439 = vunpack.c.l.b16 %v215
  %v440 = vunpack.c.l.b16 %v216
  %v441 = vunpack.c.l.b16 %v217
  %v442 = vunpack.c.l.b16 %v218
  %v443 = vunpack.c.l.b16 %v219
  %v444 = vunpack.c.l.b16 %v220
  %v445 = vunpack.c.l.b16 %v221
  %v446 = vunpack.c.l.b16 %v222
  %v447 = vunpack.c.l.b16 %v223
  %v448 = vunpack.c.l.b16 %v224
  %v449 = vunpack.c.l.b16 %v225
  %v450 = vunpack.c.l.b16 %v226
  %v451 = vunpack.c.l.b16 %v227
  %v452 = vpack.c.b16 %v437, %v436
  %v453 = vpack.c.b16 %v439, %v438
  %v454 = vpack.c.b16 %v441, %v440
  %v455 = vpack.c.b16 %v443, %v442
  %v456 = vpack.c.b16 %v445, %v444
  %v457 = vpack.c.b16 %v447, %v446
  %v458 = vpack.c.b16 %v449, %v448
  %v459 = vpack.c.b16 %v451, %v450
  %468 = vmatprep.subr.bf16.mxu0 0
  %469 = vmatpush1.bf16.msra.mxu0 %v452
  %470 = vmatprep.subr.bf16.mxu0 0
  %471 = vmatpush1.bf16.msra.mxu0 %v453
  %472 = vmatprep.subr.bf16.mxu0 0
  %473 = vmatpush1.bf16.msra.mxu0 %v454
  %474 = vmatprep.subr.bf16.mxu0 0
  %475 = vmatpush1.bf16.msra.mxu0 %v455
  %476 = vmatprep.subr.bf16.mxu0 0
  %477 = vmatpush1.bf16.msra.mxu0 %v456
  %478 = vmatprep.subr.bf16.mxu0 0
  %479 = vmatpush1.bf16.msra.mxu0 %v457
  %480 = vmatprep.subr.bf16.mxu0 0
  %481 = vmatpush1.bf16.msra.mxu0 %v458
  %482 = vmatprep.subr.bf16.mxu0 0
  %483 = vmatpush1.bf16.msra.mxu0 %v459
  %484 = vmatprep.subr.bf16.mxu0 0
  %485 = vmatpush1.bf16.msra.mxu0 0
  %486 = vmatprep.subr.bf16.mxu0 0
  %487 = vmatpush1.bf16.msra.mxu0 0
  %488 = vmatprep.subr.bf16.mxu0 0
  %489 = vmatpush1.bf16.msra.mxu0 0
  %490 = vmatprep.subr.bf16.mxu0 0
  %491 = vmatpush1.bf16.msra.mxu0 0
  %492 = vmatprep.subr.bf16.mxu0 0
  %493 = vmatpush1.bf16.msra.mxu0 0
  %494 = vmatprep.subr.bf16.mxu0 0
  %495 = vmatpush1.bf16.msra.mxu0 0
  %496 = vmatprep.subr.bf16.mxu0 0
  %497 = vmatpush1.bf16.msra.mxu0 0
  %498 = vmatprep.subr.bf16.mxu0 0
  %499 = vmatpush1.bf16.msra.mxu0 0
  %500 = vmatprep.mubr.bf16.mxu0 0
  %501 = vmatmul.mubr.bf16.gmra.mrb[0].mxu0 %v356
  %v502 = vpop.f32.mrb[0].mxu0
  %v503 = vadd.f32 0.0, %v502
  %v504 = vpop.f32.mrb[0].mxu0
  %v505 = vpop.f32.mrb[0].mxu0
  %v506 = vadd.f32 0.0, %v505
  %v507 = vpop.f32.mrb[0].mxu0
  %508 = vmatprep.mubr.bf16.mxu0 0
  %509 = vmatmul.mubr.bf16.gmra.mrb[0].mxu0 %v357
  %v510 = vpop.f32.mrb[0].mxu0
  %v511 = vadd.f32 0.0, %v510
  %v512 = vpop.f32.mrb[0].mxu0
  %v513 = vpop.f32.mrb[0].mxu0
  %v514 = vadd.f32 0.0, %v513
  %v515 = vpop.f32.mrb[0].mxu0
  %516 = vmatprep.mubr.bf16.mxu0 0
  %517 = vmatmul.mubr.bf16.gmra.mrb[0].mxu0 %v358
  %v518 = vpop.f32.mrb[0].mxu0
  %v519 = vadd.f32 0.0, %v518
  %v520 = vpop.f32.mrb[0].mxu0
  %v521 = vpop.f32.mrb[0].mxu0
  %v522 = vadd.f32 0.0, %v521
  %v523 = vpop.f32.mrb[0].mxu0
  %524 = vmatprep.mubr.bf16.mxu0 0
  %525 = vmatmul.mubr.bf16.gmra.mrb[0].mxu0 %v359
  %v526 = vpop.f32.mrb[0].mxu0
  %v527 = vadd.f32 0.0, %v526
  %v528 = vpop.f32.mrb[0].mxu0
  %v529 = vpop.f32.mrb[0].mxu0
  %v530 = vadd.f32 0.0, %v529
  %v531 = vpop.f32.mrb[0].mxu0
  %532 = vmatprep.mubr.bf16.mxu0 0
  %533 = vmatmul.mubr.bf16.gmra.mrb[0].mxu0 %v360
  %v534 = vpop.f32.mrb[0].mxu0
  %v535 = vadd.f32 0.0, %v534
  %v536 = vpop.f32.mrb[0].mxu0
  %v537 = vpop.f32.mrb[0].mxu0
  %v538 = vadd.f32 0.0, %v537
  %v539 = vpop.f32.mrb[0].mxu0
  %540 = vmatprep.mubr.bf16.mxu0 0
  %541 = vmatmul.mubr.bf16.gmra.mrb[0].mxu0 %v361
  %v542 = vpop.f32.mrb[0].mxu0
  %v543 = vadd.f32 0.0, %v542
  %v544 = vpop.f32.mrb[0].mxu0
  %v545 = vpop.f32.mrb[0].mxu0
  %v546 = vadd.f32 0.0, %v545
  %v547 = vpop.f32.mrb[0].mxu0
  %548 = vmatprep.mubr.bf16.mxu0 0
  %549 = vmatmul.mubr.bf16.gmra.mrb[0].mxu0 %v362
  %v550 = vpop.f32.mrb[0].mxu0
  %v551 = vadd.f32 0.0, %v550
  %v552 = vpop.f32.mrb[0].mxu0
  %v553 = vpop.f32.mrb[0].mxu0
  %v554 = vadd.f32 0.0, %v553
  %v555 = vpop.f32.mrb[0].mxu0
  %556 = vmatprep.mubr.bf16.mxu0 0
  %557 = vmatmul.mubr.bf16.gmra.mrb[0].mxu0 %v363
  %v558 = vpop.f32.mrb[0].mxu0
  %v559 = vadd.f32 0.0, %v558
  %v560 = vpop.f32.mrb[0].mxu0
  %v561 = vpop.f32.mrb[0].mxu0
  %v562 = vadd.f32 0.0, %v561
  %v563 = vpop.f32.mrb[0].mxu0
  %564 = vmatprep.mubr.bf16.mxu0 0
  %565 = vmatmul.mubr.bf16.gmra.mrb[0].mxu0 %v364
  %v566 = vpop.f32.mrb[0].mxu0
  %v567 = vadd.f32 0.0, %v566
  %v568 = vpop.f32.mrb[0].mxu0
  %v569 = vpop.f32.mrb[0].mxu0
  %v570 = vadd.f32 0.0, %v569
  %v571 = vpop.f32.mrb[0].mxu0
  %572 = vmatprep.mubr.bf16.mxu0 0
  %573 = vmatmul.mubr.bf16.gmra.mrb[0].mxu0 %v365
  %v574 = vpop.f32.mrb[0].mxu0
  %v575 = vadd.f32 0.0, %v574
  %v576 = vpop.f32.mrb[0].mxu0
  %v577 = vpop.f32.mrb[0].mxu0
  %v578 = vadd.f32 0.0, %v577
  %v579 = vpop.f32.mrb[0].mxu0
  %580 = vmatprep.mubr.bf16.mxu0 0
  %581 = vmatmul.mubr.bf16.gmra.mrb[0].mxu0 %v366
  %v582 = vpop.f32.mrb[0].mxu0
  %v583 = vadd.f32 0.0, %v582
  %v584 = vpop.f32.mrb[0].mxu0
  %v585 = vpop.f32.mrb[0].mxu0
  %v586 = vadd.f32 0.0, %v585
  %v587 = vpop.f32.mrb[0].mxu0
  %588 = vmatprep.mubr.bf16.mxu0 0
  %589 = vmatmul.mubr.bf16.gmra.mrb[0].mxu0 %v367
  %v590 = vpop.f32.mrb[0].mxu0
  %v591 = vadd.f32 0.0, %v590
  %v592 = vpop.f32.mrb[0].mxu0
  %v593 = vpop.f32.mrb[0].mxu0
  %v594 = vadd.f32 0.0, %v593
  %v595 = vpop.f32.mrb[0].mxu0
  %596 = vmatprep.mubr.bf16.mxu0 0
  %597 = vmatmul.mubr.bf16.gmra.mrb[0].mxu0 %v368
  %v598 = vpop.f32.mrb[0].mxu0
  %v599 = vadd.f32 0.0, %v598
  %v600 = vpop.f32.mrb[0].mxu0
  %v601 = vpop.f32.mrb[0].mxu0
  %v602 = vadd.f32 0.0, %v601
  %v603 = vpop.f32.mrb[0].mxu0
  %604 = vmatprep.mubr.bf16.mxu0 0
  %605 = vmatmul.mubr.bf16.gmra.mrb[0].mxu0 %v369
  %v606 = vpop.f32.mrb[0].mxu0
  %v607 = vadd.f32 0.0, %v606
  %v608 = vpop.f32.mrb[0].mxu0
  %v609 = vpop.f32.mrb[0].mxu0
  %v610 = vadd.f32 0.0, %v609
  %v611 = vpop.f32.mrb[0].mxu0
  %612 = vmatprep.mubr.bf16.mxu0 0
  %613 = vmatmul.mubr.bf16.gmra.mrb[0].mxu0 %v370
  %v614 = vpop.f32.mrb[0].mxu0
  %v615 = vadd.f32 0.0, %v614
  %v616 = vpop.f32.mrb[0].mxu0
  %v617 = vpop.f32.mrb[0].mxu0
  %v618 = vadd.f32 0.0, %v617
  %v619 = vpop.f32.mrb[0].mxu0
  %620 = vmatprep.mubr.bf16.mxu0 0
  %621 = vmatmul.mubr.bf16.gmra.mrb[0].mxu0 %v371
  %v622 = vpop.f32.mrb[0].mxu0
  %v623 = vadd.f32 0.0, %v622
  %v624 = vpop.f32.mrb[0].mxu0
  %v625 = vpop.f32.mrb[0].mxu0
  %v626 = vadd.f32 0.0, %v625
  %v627 = vpop.f32.mrb[0].mxu0
  %628 = vmatprep.mubr.bf16.mxu0 0
  %629 = vmatmul.mubr.bf16.gmra.mrb[0].mxu0 %v372
  %v630 = vpop.f32.mrb[0].mxu0
  %v631 = vadd.f32 0.0, %v630
  %v632 = vpop.f32.mrb[0].mxu0
  %v633 = vpop.f32.mrb[0].mxu0
  %v634 = vadd.f32 0.0, %v633
  %v635 = vpop.f32.mrb[0].mxu0
  %636 = vmatprep.mubr.bf16.mxu0 0
  %637 = vmatmul.mubr.bf16.gmra.mrb[0].mxu0 %v373
  %v638 = vpop.f32.mrb[0].mxu0
  %v639 = vadd.f32 0.0, %v638
  %v640 = vpop.f32.mrb[0].mxu0
  %v641 = vpop.f32.mrb[0].mxu0
  %v642 = vadd.f32 0.0, %v641
  %v643 = vpop.f32.mrb[0].mxu0
  %644 = vmatprep.mubr.bf16.mxu0 0
  %645 = vmatmul.mubr.bf16.gmra.mrb[0].mxu0 %v374
  %v646 = vpop.f32.mrb[0].mxu0
  %v647 = vadd.f32 0.0, %v646
  %v648 = vpop.f32.mrb[0].mxu0
  %v649 = vpop.f32.mrb[0].mxu0
  %v650 = vadd.f32 0.0, %v649
  %v651 = vpop.f32.mrb[0].mxu0
  %652 = vmatprep.mubr.bf16.mxu0 0
  %653 = vmatmul.mubr.bf16.gmra.mrb[0].mxu0 %v375
  %v654 = vpop.f32.mrb[0].mxu0
  %v655 = vadd.f32 0.0, %v654
  %v656 = vpop.f32.mrb[0].mxu0
  %v657 = vpop.f32.mrb[0].mxu0
  %v658 = vadd.f32 0.0, %v657
  %v659 = vpop.f32.mrb[0].mxu0
  %660 = vmatprep.mubr.bf16.mxu0 0
  %661 = vmatmul.mubr.bf16.gmra.mrb[0].mxu0 %v376
  %v662 = vpop.f32.mrb[0].mxu0
  %v663 = vadd.f32 0.0, %v662
  %v664 = vpop.f32.mrb[0].mxu0
  %v665 = vpop.f32.mrb[0].mxu0
  %v666 = vadd.f32 0.0, %v665
  %v667 = vpop.f32.mrb[0].mxu0
  %668 = vmatprep.mubr.bf16.mxu0 0
  %669 = vmatmul.mubr.bf16.gmra.mrb[0].mxu0 %v377
  %v670 = vpop.f32.mrb[0].mxu0
  %v671 = vadd.f32 0.0, %v670
  %v672 = vpop.f32.mrb[0].mxu0
  %v673 = vpop.f32.mrb[0].mxu0
  %v674 = vadd.f32 0.0, %v673
  %v675 = vpop.f32.mrb[0].mxu0
  %676 = vmatprep.mubr.bf16.mxu0 0
  %677 = vmatmul.mubr.bf16.gmra.mrb[0].mxu0 %v378
  %v678 = vpop.f32.mrb[0].mxu0
  %v679 = vadd.f32 0.0, %v678
  %v680 = vpop.f32.mrb[0].mxu0
  %v681 = vpop.f32.mrb[0].mxu0
  %v682 = vadd.f32 0.0, %v681
  %v683 = vpop.f32.mrb[0].mxu0
  %684 = vmatprep.mubr.bf16.mxu0 0
  %685 = vmatmul.mubr.bf16.gmra.mrb[0].mxu0 %v379
  %v686 = vpop.f32.mrb[0].mxu0
  %v687 = vadd.f32 0.0, %v686
  %v688 = vpop.f32.mrb[0].mxu0
  %v689 = vpop.f32.mrb[0].mxu0
  %v690 = vadd.f32 0.0, %v689
  %v691 = vpop.f32.mrb[0].mxu0
  %692 = vmatprep.mubr.bf16.mxu0 0
  %693 = vmatmul.mubr.bf16.gmra.mrb[0].mxu0 %v380
  %v694 = vpop.f32.mrb[0].mxu0
  %v695 = vadd.f32 0.0, %v694
  %v696 = vpop.f32.mrb[0].mxu0
  %v697 = vpop.f32.mrb[0].mxu0
  %v698 = vadd.f32 0.0, %v697
  %v699 = vpop.f32.mrb[0].mxu0
  %700 = vmatprep.mubr.bf16.mxu0 0
  %701 = vmatmul.mubr.bf16.gmra.mrb[0].mxu0 %v381
  %v702 = vpop.f32.mrb[0].mxu0
  %v703 = vadd.f32 0.0, %v702
  %v704 = vpop.f32.mrb[0].mxu0
  %v705 = vpop.f32.mrb[0].mxu0
  %v706 = vadd.f32 0.0, %v705
  %v707 = vpop.f32.mrb[0].mxu0
  %708 = vmatprep.mubr.bf16.mxu0 0
  %709 = vmatmul.mubr.bf16.gmra.mrb[0].mxu0 %v382
  %v710 = vpop.f32.mrb[0].mxu0
  %v711 = vadd.f32 0.0, %v710
  %v712 = vpop.f32.mrb[0].mxu0
  %v713 = vpop.f32.mrb[0].mxu0
  %v714 = vadd.f32 0.0, %v713
  %v715 = vpop.f32.mrb[0].mxu0
  %716 = vmatprep.mubr.bf16.mxu0 0
  %717 = vmatmul.mubr.bf16.gmra.mrb[0].mxu0 %v383
  %v718 = vpop.f32.mrb[0].mxu0
  %v719 = vadd.f32 0.0, %v718
  %v720 = vpop.f32.mrb[0].mxu0
  %v721 = vpop.f32.mrb[0].mxu0
  %v722 = vadd.f32 0.0, %v721
  %v723 = vpop.f32.mrb[0].mxu0
  %724 = vmatprep.mubr.bf16.mxu0 0
  %725 = vmatmul.mubr.bf16.gmra.mrb[0].mxu0 %v384
  %v726 = vpop.f32.mrb[0].mxu0
  %v727 = vadd.f32 0.0, %v726
  %v728 = vpop.f32.mrb[0].mxu0
  %v729 = vpop.f32.mrb[0].mxu0
  %v730 = vadd.f32 0.0, %v729
  %v731 = vpop.f32.mrb[0].mxu0
  %732 = vmatprep.mubr.bf16.mxu0 0
  %733 = vmatmul.mubr.bf16.gmra.mrb[0].mxu0 %v385
  %v734 = vpop.f32.mrb[0].mxu0
  %v735 = vadd.f32 0.0, %v734
  %v736 = vpop.f32.mrb[0].mxu0
  %v737 = vpop.f32.mrb[0].mxu0
  %v738 = vadd.f32 0.0, %v737
  %v739 = vpop.f32.mrb[0].mxu0
  %740 = vmatprep.mubr.bf16.mxu0 0
  %741 = vmatmul.mubr.bf16.gmra.mrb[0].mxu0 %v386
  %v742 = vpop.f32.mrb[0].mxu0
  %v743 = vadd.f32 0.0, %v742
  %v744 = vpop.f32.mrb[0].mxu0
  %v745 = vpop.f32.mrb[0].mxu0
  %v746 = vadd.f32 0.0, %v745
  %v747 = vpop.f32.mrb[0].mxu0
  %748 = vmatprep.mubr.bf16.mxu0 0
  %749 = vmatmul.mubr.bf16.gmra.mrb[0].mxu0 %v387
  %v750 = vpop.f32.mrb[0].mxu0
  %v751 = vadd.f32 0.0, %v750
  %v752 = vpop.f32.mrb[0].mxu0
  %v753 = vpop.f32.mrb[0].mxu0
  %v754 = vadd.f32 0.0, %v753
  %v755 = vpop.f32.mrb[0].mxu0
  %756 = vdwg.mxu0
  %v757 = vadd.f32 %v84, %v503
  %v758 = vadd.f32 %v85, %v506
  %v759 = vadd.f32 %v86, %v511
  %v760 = vadd.f32 %v87, %v514
  %v761 = vadd.f32 %v88, %v519
  %v762 = vadd.f32 %v89, %v522
  %v763 = vadd.f32 %v90, %v527
  %v764 = vadd.f32 %v91, %v530
  %v765 = vadd.f32 %v92, %v535
  %v766 = vadd.f32 %v93, %v538
  %v767 = vadd.f32 %v94, %v543
  %v768 = vadd.f32 %v95, %v546
  %v769 = vadd.f32 %v96, %v551
  %v770 = vadd.f32 %v97, %v554
  %v771 = vadd.f32 %v98, %v559
  %v772 = vadd.f32 %v99, %v562
  %v773 = vadd.f32 %v100, %v567
  %v774 = vadd.f32 %v101, %v570
  %v775 = vadd.f32 %v102, %v575
  %v776 = vadd.f32 %v103, %v578
  %v777 = vadd.f32 %v104, %v583
  %v778 = vadd.f32 %v105, %v586
  %v779 = vadd.f32 %v106, %v591
  %v780 = vadd.f32 %v107, %v594
  %v781 = vadd.f32 %v108, %v599
  %v782 = vadd.f32 %v109, %v602
  %v783 = vadd.f32 %v110, %v607
  %v784 = vadd.f32 %v111, %v610
  %v785 = vadd.f32 %v112, %v615
  %v786 = vadd.f32 %v113, %v618
  %v787 = vadd.f32 %v114, %v623
  %v788 = vadd.f32 %v115, %v626
  %v789 = vadd.f32 %v116, %v631
  %v790 = vadd.f32 %v117, %v634
  %v791 = vadd.f32 %v118, %v639
  %v792 = vadd.f32 %v119, %v642
  %v793 = vadd.f32 %v120, %v647
  %v794 = vadd.f32 %v121, %v650
  %v795 = vadd.f32 %v122, %v655
  %v796 = vadd.f32 %v123, %v658
  %v797 = vadd.f32 %v124, %v663
  %v798 = vadd.f32 %v125, %v666
  %v799 = vadd.f32 %v126, %v671
  %v800 = vadd.f32 %v127, %v674
  %v801 = vadd.f32 %v128, %v679
  %v802 = vadd.f32 %v129, %v682
  %v803 = vadd.f32 %v130, %v687
  %v804 = vadd.f32 %v131, %v690
  %v805 = vadd.f32 %v132, %v695
  %v806 = vadd.f32 %v133, %v698
  %v807 = vadd.f32 %v134, %v703
  %v808 = vadd.f32 %v135, %v706
  %v809 = vadd.f32 %v136, %v711
  %v810 = vadd.f32 %v137, %v714
  %v811 = vadd.f32 %v138, %v719
  %v812 = vadd.f32 %v139, %v722
  %v813 = vadd.f32 %v140, %v727
  %v814 = vadd.f32 %v141, %v730
  %v815 = vadd.f32 %v142, %v735
  %v816 = vadd.f32 %v143, %v738
  %v817 = vadd.f32 %v144, %v743
  %v818 = vadd.f32 %v145, %v746
  %v819 = vadd.f32 %v146, %v751
  %v820 = vadd.f32 %v147, %v754
  %vm821 = vcmask 64512
  %822 = vst.msk [vmem:[#allocation2] sm:$0xff] %vm821, %v757
  %823 = vst.msk [vmem:[#allocation2 + $0x8] sm:$0xff] %vm821, %v758
  %824 = vst.msk [vmem:[#allocation2 + $0x10] sm:$0xff] %vm821, %v759
  %825 = vst.msk [vmem:[#allocation2 + $0x18] sm:$0xff] %vm821, %v760
  %826 = vst.msk [vmem:[#allocation2 + $0x20] sm:$0xff] %vm821, %v761
  %827 = vst.msk [vmem:[#allocation2 + $0x28] sm:$0xff] %vm821, %v762
  %828 = vst.msk [vmem:[#allocation2 + $0x30] sm:$0xff] %vm821, %v763
  %829 = vst.msk [vmem:[#allocation2 + $0x38] sm:$0xff] %vm821, %v764
  %830 = vst.msk [vmem:[#allocation2 + $0x40] sm:$0xff] %vm821, %v765
  %831 = vst.msk [vmem:[#allocation2 + $0x48] sm:$0xff] %vm821, %v766
  %832 = vst.msk [vmem:[#allocation2 + $0x50] sm:$0xff] %vm821, %v767
  %833 = vst.msk [vmem:[#allocation2 + $0x58] sm:$0xff] %vm821, %v768
  %834 = vst.msk [vmem:[#allocation2 + $0x60] sm:$0xff] %vm821, %v769
  %835 = vst.msk [vmem:[#allocation2 + $0x68] sm:$0xff] %vm821, %v770
  %836 = vst.msk [vmem:[#allocation2 + $0x70] sm:$0xff] %vm821, %v771
  %837 = vst.msk [vmem:[#allocation2 + $0x78] sm:$0xff] %vm821, %v772
  %838 = vst.msk [vmem:[#allocation2 + $0x80] sm:$0xff] %vm821, %v773
  %839 = vst.msk [vmem:[#allocation2 + $0x88] sm:$0xff] %vm821, %v774
  %840 = vst.msk [vmem:[#allocation2 + $0x90] sm:$0xff] %vm821, %v775
  %841 = vst.msk [vmem:[#allocation2 + $0x98] sm:$0xff] %vm821, %v776
  %842 = vst.msk [vmem:[#allocation2 + $0xa0] sm:$0xff] %vm821, %v777
  %843 = vst.msk [vmem:[#allocation2 + $0xa8] sm:$0xff] %vm821, %v778
  %844 = vst.msk [vmem:[#allocation2 + $0xb0] sm:$0xff] %vm821, %v779
  %845 = vst.msk [vmem:[#allocation2 + $0xb8] sm:$0xff] %vm821, %v780
  %846 = vst.msk [vmem:[#allocation2 + $0xc0] sm:$0xff] %vm821, %v781
  %847 = vst.msk [vmem:[#allocation2 + $0xc8] sm:$0xff] %vm821, %v782
  %848 = vst.msk [vmem:[#allocation2 + $0xd0] sm:$0xff] %vm821, %v783
  %849 = vst.msk [vmem:[#allocation2 + $0xd8] sm:$0xff] %vm821, %v784
  %850 = vst.msk [vmem:[#allocation2 + $0xe0] sm:$0xff] %vm821, %v785
  %851 = vst.msk [vmem:[#allocation2 + $0xe8] sm:$0xff] %vm821, %v786
  %852 = vst.msk [vmem:[#allocation2 + $0xf0] sm:$0xff] %vm821, %v787
  %853 = vst.msk [vmem:[#allocation2 + $0xf8] sm:$0xff] %vm821, %v788
  %854 = vst.msk [vmem:[#allocation2 + $0x100] sm:$0xff] %vm821, %v789
  %855 = vst.msk [vmem:[#allocation2 + $0x108] sm:$0xff] %vm821, %v790
  %856 = vst.msk [vmem:[#allocation2 + $0x110] sm:$0xff] %vm821, %v791
  %857 = vst.msk [vmem:[#allocation2 + $0x118] sm:$0xff] %vm821, %v792
  %858 = vst.msk [vmem:[#allocation2 + $0x120] sm:$0xff] %vm821, %v793
  %859 = vst.msk [vmem:[#allocation2 + $0x128] sm:$0xff] %vm821, %v794
  %860 = vst.msk [vmem:[#allocation2 + $0x130] sm:$0xff] %vm821, %v795
  %861 = vst.msk [vmem:[#allocation2 + $0x138] sm:$0xff] %vm821, %v796
  %862 = vst.msk [vmem:[#allocation2 + $0x140] sm:$0xff] %vm821, %v797
  %863 = vst.msk [vmem:[#allocation2 + $0x148] sm:$0xff] %vm821, %v798
  %864 = vst.msk [vmem:[#allocation2 + $0x150] sm:$0xff] %vm821, %v799
  %865 = vst.msk [vmem:[#allocation2 + $0x158] sm:$0xff] %vm821, %v800
  %866 = vst.msk [vmem:[#allocation2 + $0x160] sm:$0xff] %vm821, %v801
  %867 = vst.msk [vmem:[#allocation2 + $0x168] sm:$0xff] %vm821, %v802
  %868 = vst.msk [vmem:[#allocation2 + $0x170] sm:$0xff] %vm821, %v803
  %869 = vst.msk [vmem:[#allocation2 + $0x178] sm:$0xff] %vm821, %v804
  %870 = vst.msk [vmem:[#allocation2 + $0x180] sm:$0xff] %vm821, %v805
  %871 = vst.msk [vmem:[#allocation2 + $0x188] sm:$0xff] %vm821, %v806
  %872 = vst.msk [vmem:[#allocation2 + $0x190] sm:$0xff] %vm821, %v807
  %873 = vst.msk [vmem:[#allocation2 + $0x198] sm:$0xff] %vm821, %v808
  %874 = vst.msk [vmem:[#allocation2 + $0x1a0] sm:$0xff] %vm821, %v809
  %875 = vst.msk [vmem:[#allocation2 + $0x1a8] sm:$0xff] %vm821, %v810
  %876 = vst.msk [vmem:[#allocation2 + $0x1b0] sm:$0xff] %vm821, %v811
  %877 = vst.msk [vmem:[#allocation2 + $0x1b8] sm:$0xff] %vm821, %v812
  %878 = vst.msk [vmem:[#allocation2 + $0x1c0] sm:$0xff] %vm821, %v813
  %879 = vst.msk [vmem:[#allocation2 + $0x1c8] sm:$0xff] %vm821, %v814
  %880 = vst.msk [vmem:[#allocation2 + $0x1d0] sm:$0xff] %vm821, %v815
  %881 = vst.msk [vmem:[#allocation2 + $0x1d8] sm:$0xff] %vm821, %v816
  %882 = vst.msk [vmem:[#allocation2 + $0x1e0] sm:$0xff] %vm821, %v817
  %883 = vst.msk [vmem:[#allocation2 + $0x1e8] sm:$0xff] %vm821, %v818
  %884 = vst.msk [vmem:[#allocation2 + $0x1f0] sm:$0xff] %vm821, %v819
  %885 = vst.msk [vmem:[#allocation2 + $0x1f8] sm:$0xff] %vm821, %v820
  // Predicated region
  $region18: #{outspace_discriminator.5} parent=0 // pred_check
    %p886 = pneg %p15
  $region19: #{outspace_discriminator.5} parent=0 // pred_check_branch
    %888 = sbr.rel (%p886) target = $region21
  $region20: #{outspace_discriminator.5} parent=0 // pred_region
    %v889 = vld [vmem:[#allocation2] sm:$0xff]
    %v890 = vld [vmem:[#allocation2 + $0x8] sm:$0xff]
    %v891 = vld [vmem:[#allocation2 + $0x10] sm:$0xff]
    %v892 = vld [vmem:[#allocation2 + $0x18] sm:$0xff]
    %v893 = vld [vmem:[#allocation2 + $0x20] sm:$0xff]
    %v894 = vld [vmem:[#allocation2 + $0x28] sm:$0xff]
    %v895 = vld [vmem:[#allocation2 + $0x30] sm:$0xff]
    %v896 = vld [vmem:[#allocation2 + $0x38] sm:$0xff]
    %v897 = vld [vmem:[#allocation2 + $0x40] sm:$0xff]
    %v898 = vld [vmem:[#allocation2 + $0x48] sm:$0xff]
    %v899 = vld [vmem:[#allocation2 + $0x50] sm:$0xff]
    %v900 = vld [vmem:[#allocation2 + $0x58] sm:$0xff]
    %v901 = vld [vmem:[#allocation2 + $0x60] sm:$0xff]
    %v902 = vld [vmem:[#allocation2 + $0x68] sm:$0xff]
    %v903 = vld [vmem:[#allocation2 + $0x70] sm:$0xff]
    %v904 = vld [vmem:[#allocation2 + $0x78] sm:$0xff]
    %v905 = vld [vmem:[#allocation2 + $0x80] sm:$0xff]
    %v906 = vld [vmem:[#allocation2 + $0x88] sm:$0xff]
    %v907 = vld [vmem:[#allocation2 + $0x90] sm:$0xff]
    %v908 = vld [vmem:[#allocation2 + $0x98] sm:$0xff]
    %v909 = vld [vmem:[#allocation2 + $0xa0] sm:$0xff]
    %v910 = vld [vmem:[#allocation2 + $0xa8] sm:$0xff]
    %v911 = vld [vmem:[#allocation2 + $0xb0] sm:$0xff]
    %v912 = vld [vmem:[#allocation2 + $0xb8] sm:$0xff]
    %v913 = vld [vmem:[#allocation2 + $0xc0] sm:$0xff]
    %v914 = vld [vmem:[#allocation2 + $0xc8] sm:$0xff]
    %v915 = vld [vmem:[#allocation2 + $0xd0] sm:$0xff]
    %v916 = vld [vmem:[#allocation2 + $0xd8] sm:$0xff]
    %v917 = vld [vmem:[#allocation2 + $0xe0] sm:$0xff]
    %v918 = vld [vmem:[#allocation2 + $0xe8] sm:$0xff]
    %v919 = vld [vmem:[#allocation2 + $0xf0] sm:$0xff]
    %v920 = vld [vmem:[#allocation2 + $0xf8] sm:$0xff]
    %v921 = vld [vmem:[#allocation2 + $0x100] sm:$0xff]
    %v922 = vld [vmem:[#allocation2 + $0x108] sm:$0xff]
    %v923 = vld [vmem:[#allocation2 + $0x110] sm:$0xff]
    %v924 = vld [vmem:[#allocation2 + $0x118] sm:$0xff]
    %v925 = vld [vmem:[#allocation2 + $0x120] sm:$0xff]
    %v926 = vld [vmem:[#allocation2 + $0x128] sm:$0xff]
    %v927 = vld [vmem:[#allocation2 + $0x130] sm:$0xff]
    %v928 = vld [vmem:[#allocation2 + $0x138] sm:$0xff]
    %v929 = vld [vmem:[#allocation2 + $0x140] sm:$0xff]
    %v930 = vld [vmem:[#allocation2 + $0x148] sm:$0xff]
    %v931 = vld [vmem:[#allocation2 + $0x150] sm:$0xff]
    %v932 = vld [vmem:[#allocation2 + $0x158] sm:$0xff]
    %v933 = vld [vmem:[#allocation2 + $0x160] sm:$0xff]
    %v934 = vld [vmem:[#allocation2 + $0x168] sm:$0xff]
    %v935 = vld [vmem:[#allocation2 + $0x170] sm:$0xff]
    %v936 = vld [vmem:[#allocation2 + $0x178] sm:$0xff]
    %v937 = vld [vmem:[#allocation2 + $0x180] sm:$0xff]
    %v938 = vld [vmem:[#allocation2 + $0x188] sm:$0xff]
    %v939 = vld [vmem:[#allocation2 + $0x190] sm:$0xff]
    %v940 = vld [vmem:[#allocation2 + $0x198] sm:$0xff]
    %v941 = vld [vmem:[#allocation2 + $0x1a0] sm:$0xff]
    %v942 = vld [vmem:[#allocation2 + $0x1a8] sm:$0xff]
    %v943 = vld [vmem:[#allocation2 + $0x1b0] sm:$0xff]
    %v944 = vld [vmem:[#allocation2 + $0x1b8] sm:$0xff]
    %v945 = vld [vmem:[#allocation2 + $0x1c0] sm:$0xff]
    %v946 = vld [vmem:[#allocation2 + $0x1c8] sm:$0xff]
    %v947 = vld [vmem:[#allocation2 + $0x1d0] sm:$0xff]
    %v948 = vld [vmem:[#allocation2 + $0x1d8] sm:$0xff]
    %v949 = vld [vmem:[#allocation2 + $0x1e0] sm:$0xff]
    %v950 = vld [vmem:[#allocation2 + $0x1e8] sm:$0xff]
    %v951 = vld [vmem:[#allocation2 + $0x1f0] sm:$0xff]
    %v952 = vld [vmem:[#allocation2 + $0x1f8] sm:$0xff]
    %v953 = vld [vmem:[%s2] sm:$0x1]
    %v955 = vlaneseq
    %v956 = vshrl.u32 %v955, 7
    %v957 = vsub.s32 0, %v956
    %v958 = vrot.slane %v953, %v957
    %v960 = vadd.f32 %v889, %v958
    %v961 = vadd.f32 %v890, %v958
    %v962 = vadd.f32 %v891, %v958
    %v963 = vadd.f32 %v892, %v958
    %v964 = vadd.f32 %v893, %v958
    %v965 = vadd.f32 %v894, %v958
    %v966 = vadd.f32 %v895, %v958
    %v967 = vadd.f32 %v896, %v958
    %v968 = vadd.f32 %v897, %v958
    %v969 = vadd.f32 %v898, %v958
    %v970 = vadd.f32 %v899, %v958
    %v971 = vadd.f32 %v900, %v958
    %v972 = vadd.f32 %v901, %v958
    %v973 = vadd.f32 %v902, %v958
    %v974 = vadd.f32 %v903, %v958
    %v975 = vadd.f32 %v904, %v958
    %v976 = vadd.f32 %v905, %v958
    %v977 = vadd.f32 %v906, %v958
    %v978 = vadd.f32 %v907, %v958
    %v979 = vadd.f32 %v908, %v958
    %v980 = vadd.f32 %v909, %v958
    %v981 = vadd.f32 %v910, %v958
    %v982 = vadd.f32 %v911, %v958
    %v983 = vadd.f32 %v912, %v958
    %v984 = vadd.f32 %v913, %v958
    %v985 = vadd.f32 %v914, %v958
    %v986 = vadd.f32 %v915, %v958
    %v987 = vadd.f32 %v916, %v958
    %v988 = vadd.f32 %v917, %v958
    %v989 = vadd.f32 %v918, %v958
    %v990 = vadd.f32 %v919, %v958
    %v991 = vadd.f32 %v920, %v958
    %v992 = vadd.f32 %v921, %v958
    %v993 = vadd.f32 %v922, %v958
    %v994 = vadd.f32 %v923, %v958
    %v995 = vadd.f32 %v924, %v958
    %v996 = vadd.f32 %v925, %v958
    %v997 = vadd.f32 %v926, %v958
    %v998 = vadd.f32 %v927, %v958
    %v999 = vadd.f32 %v928, %v958
    %v1000 = vadd.f32 %v929, %v958
    %v1001 = vadd.f32 %v930, %v958
    %v1002 = vadd.f32 %v931, %v958
    %v1003 = vadd.f32 %v932, %v958
    %v1004 = vadd.f32 %v933, %v958
    %v1005 = vadd.f32 %v934, %v958
    %v1006 = vadd.f32 %v935, %v958
    %v1007 = vadd.f32 %v936, %v958
    %v1008 = vadd.f32 %v937, %v958
    %v1009 = vadd.f32 %v938, %v958
    %v1010 = vadd.f32 %v939, %v958
    %v1011 = vadd.f32 %v940, %v958
    %v1012 = vadd.f32 %v941, %v958
    %v1013 = vadd.f32 %v942, %v958
    %v1014 = vadd.f32 %v943, %v958
    %v1015 = vadd.f32 %v944, %v958
    %v1016 = vadd.f32 %v945, %v958
    %v1017 = vadd.f32 %v946, %v958
    %v1018 = vadd.f32 %v947, %v958
    %v1019 = vadd.f32 %v948, %v958
    %v1020 = vadd.f32 %v949, %v958
    %v1021 = vadd.f32 %v950, %v958
    %v1022 = vadd.f32 %v951, %v958
    %v1023 = vadd.f32 %v952, %v958
    %vm1024 = vcmp.gt.f32.partialorder %v960, 0.0
    %vm1025 = vcmp.gt.f32.partialorder %v961, 0.0
    %vm1026 = vcmp.gt.f32.partialorder %v962, 0.0
    %vm1027 = vcmp.gt.f32.partialorder %v963, 0.0
    %vm1028 = vcmp.gt.f32.partialorder %v964, 0.0
    %vm1029 = vcmp.gt.f32.partialorder %v965, 0.0
    %vm1030 = vcmp.gt.f32.partialorder %v966, 0.0
    %vm1031 = vcmp.gt.f32.partialorder %v967, 0.0
    %vm1032 = vcmp.gt.f32.partialorder %v968, 0.0
    %vm1033 = vcmp.gt.f32.partialorder %v969, 0.0
    %vm1034 = vcmp.gt.f32.partialorder %v970, 0.0
    %vm1035 = vcmp.gt.f32.partialorder %v971, 0.0
    %vm1036 = vcmp.gt.f32.partialorder %v972, 0.0
    %vm1037 = vcmp.gt.f32.partialorder %v973, 0.0
    %vm1038 = vcmp.gt.f32.partialorder %v974, 0.0
    %vm1039 = vcmp.gt.f32.partialorder %v975, 0.0
    %vm1040 = vcmp.gt.f32.partialorder %v976, 0.0
    %vm1041 = vcmp.gt.f32.partialorder %v977, 0.0
    %vm1042 = vcmp.gt.f32.partialorder %v978, 0.0
    %vm1043 = vcmp.gt.f32.partialorder %v979, 0.0
    %vm1044 = vcmp.gt.f32.partialorder %v980, 0.0
    %vm1045 = vcmp.gt.f32.partialorder %v981, 0.0
    %vm1046 = vcmp.gt.f32.partialorder %v982, 0.0
    %vm1047 = vcmp.gt.f32.partialorder %v983, 0.0
    %vm1048 = vcmp.gt.f32.partialorder %v984, 0.0
    %vm1049 = vcmp.gt.f32.partialorder %v985, 0.0
    %vm1050 = vcmp.gt.f32.partialorder %v986, 0.0
    %vm1051 = vcmp.gt.f32.partialorder %v987, 0.0
    %vm1052 = vcmp.gt.f32.partialorder %v988, 0.0
    %vm1053 = vcmp.gt.f32.partialorder %v989, 0.0
    %vm1054 = vcmp.gt.f32.partialorder %v990, 0.0
    %vm1055 = vcmp.gt.f32.partialorder %v991, 0.0
    %vm1056 = vcmp.gt.f32.partialorder %v992, 0.0
    %vm1057 = vcmp.gt.f32.partialorder %v993, 0.0
    %vm1058 = vcmp.gt.f32.partialorder %v994, 0.0
    %vm1059 = vcmp.gt.f32.partialorder %v995, 0.0
    %vm1060 = vcmp.gt.f32.partialorder %v996, 0.0
    %vm1061 = vcmp.gt.f32.partialorder %v997, 0.0
    %vm1062 = vcmp.gt.f32.partialorder %v998, 0.0
    %vm1063 = vcmp.gt.f32.partialorder %v999, 0.0
    %vm1064 = vcmp.gt.f32.partialorder %v1000, 0.0
    %vm1065 = vcmp.gt.f32.partialorder %v1001, 0.0
    %vm1066 = vcmp.gt.f32.partialorder %v1002, 0.0
    %vm1067 = vcmp.gt.f32.partialorder %v1003, 0.0
    %vm1068 = vcmp.gt.f32.partialorder %v1004, 0.0
    %vm1069 = vcmp.gt.f32.partialorder %v1005, 0.0
    %vm1070 = vcmp.gt.f32.partialorder %v1006, 0.0
    %vm1071 = vcmp.gt.f32.partialorder %v1007, 0.0
    %vm1072 = vcmp.gt.f32.partialorder %v1008, 0.0
    %vm1073 = vcmp.gt.f32.partialorder %v1009, 0.0
    %vm1074 = vcmp.gt.f32.partialorder %v1010, 0.0
    %vm1075 = vcmp.gt.f32.partialorder %v1011, 0.0
    %vm1076 = vcmp.gt.f32.partialorder %v1012, 0.0
    %vm1077 = vcmp.gt.f32.partialorder %v1013, 0.0
    %vm1078 = vcmp.gt.f32.partialorder %v1014, 0.0
    %vm1079 = vcmp.gt.f32.partialorder %v1015, 0.0
    %vm1080 = vcmp.gt.f32.partialorder %v1016, 0.0
    %vm1081 = vcmp.gt.f32.partialorder %v1017, 0.0
    %vm1082 = vcmp.gt.f32.partialorder %v1018, 0.0
    %vm1083 = vcmp.gt.f32.partialorder %v1019, 0.0
    %vm1084 = vcmp.gt.f32.partialorder %v1020, 0.0
    %vm1085 = vcmp.gt.f32.partialorder %v1021, 0.0
    %vm1086 = vcmp.gt.f32.partialorder %v1022, 0.0
    %vm1087 = vcmp.gt.f32.partialorder %v1023, 0.0
    %v1088 = vmul.f32 %v960, 0.2
    %v1089 = vmul.f32 %v961, 0.2
    %v1090 = vmul.f32 %v962, 0.2
    %v1091 = vmul.f32 %v963, 0.2
    %v1092 = vmul.f32 %v964, 0.2
    %v1093 = vmul.f32 %v965, 0.2
    %v1094 = vmul.f32 %v966, 0.2
    %v1095 = vmul.f32 %v967, 0.2
    %v1096 = vmul.f32 %v968, 0.2
    %v1097 = vmul.f32 %v969, 0.2
    %v1098 = vmul.f32 %v970, 0.2
    %v1099 = vmul.f32 %v971, 0.2
    %v1100 = vmul.f32 %v972, 0.2
    %v1101 = vmul.f32 %v973, 0.2
    %v1102 = vmul.f32 %v974, 0.2
    %v1103 = vmul.f32 %v975, 0.2
    %v1104 = vmul.f32 %v976, 0.2
    %v1105 = vmul.f32 %v977, 0.2
    %v1106 = vmul.f32 %v978, 0.2
    %v1107 = vmul.f32 %v979, 0.2
    %v1108 = vmul.f32 %v980, 0.2
    %v1109 = vmul.f32 %v981, 0.2
    %v1110 = vmul.f32 %v982, 0.2
    %v1111 = vmul.f32 %v983, 0.2
    %v1112 = vmul.f32 %v984, 0.2
    %v1113 = vmul.f32 %v985, 0.2
    %v1114 = vmul.f32 %v986, 0.2
    %v1115 = vmul.f32 %v987, 0.2
    %v1116 = vmul.f32 %v988, 0.2
    %v1117 = vmul.f32 %v989, 0.2
    %v1118 = vmul.f32 %v990, 0.2
    %v1119 = vmul.f32 %v991, 0.2
    %v1120 = vmul.f32 %v992, 0.2
    %v1121 = vmul.f32 %v993, 0.2
    %v1122 = vmul.f32 %v994, 0.2
    %v1123 = vmul.f32 %v995, 0.2
    %v1124 = vmul.f32 %v996, 0.2
    %v1125 = vmul.f32 %v997, 0.2
    %v1126 = vmul.f32 %v998, 0.2
    %v1127 = vmul.f32 %v999, 0.2
    %v1128 = vmul.f32 %v1000, 0.2
    %v1129 = vmul.f32 %v1001, 0.2
    %v1130 = vmul.f32 %v1002, 0.2
    %v1131 = vmul.f32 %v1003, 0.2
    %v1132 = vmul.f32 %v1004, 0.2
    %v1133 = vmul.f32 %v1005, 0.2
    %v1134 = vmul.f32 %v1006, 0.2
    %v1135 = vmul.f32 %v1007, 0.2
    %v1136 = vmul.f32 %v1008, 0.2
    %v1137 = vmul.f32 %v1009, 0.2
    %v1138 = vmul.f32 %v1010, 0.2
    %v1139 = vmul.f32 %v1011, 0.2
    %v1140 = vmul.f32 %v1012, 0.2
    %v1141 = vmul.f32 %v1013, 0.2
    %v1142 = vmul.f32 %v1014, 0.2
    %v1143 = vmul.f32 %v1015, 0.2
    %v1144 = vmul.f32 %v1016, 0.2
    %v1145 = vmul.f32 %v1017, 0.2
    %v1146 = vmul.f32 %v1018, 0.2
    %v1147 = vmul.f32 %v1019, 0.2
    %v1148 = vmul.f32 %v1020, 0.2
    %v1149 = vmul.f32 %v1021, 0.2
    %v1150 = vmul.f32 %v1022, 0.2
    %v1151 = vmul.f32 %v1023, 0.2
    %v1152 = vsel %vm1024, %v960, %v1088
    %v1153 = vsel %vm1025, %v961, %v1089
    %v1154 = vsel %vm1026, %v962, %v1090
    %v1155 = vsel %vm1027, %v963, %v1091
    %v1156 = vsel %vm1028, %v964, %v1092
    %v1157 = vsel %vm1029, %v965, %v1093
    %v1158 = vsel %vm1030, %v966, %v1094
    %v1159 = vsel %vm1031, %v967, %v1095
    %v1160 = vsel %vm1032, %v968, %v1096
    %v1161 = vsel %vm1033, %v969, %v1097
    %v1162 = vsel %vm1034, %v970, %v1098
    %v1163 = vsel %vm1035, %v971, %v1099
    %v1164 = vsel %vm1036, %v972, %v1100
    %v1165 = vsel %vm1037, %v973, %v1101
    %v1166 = vsel %vm1038, %v974, %v1102
    %v1167 = vsel %vm1039, %v975, %v1103
    %v1168 = vsel %vm1040, %v976, %v1104
    %v1169 = vsel %vm1041, %v977, %v1105
    %v1170 = vsel %vm1042, %v978, %v1106
    %v1171 = vsel %vm1043, %v979, %v1107
    %v1172 = vsel %vm1044, %v980, %v1108
    %v1173 = vsel %vm1045, %v981, %v1109
    %v1174 = vsel %vm1046, %v982, %v1110
    %v1175 = vsel %vm1047, %v983, %v1111
    %v1176 = vsel %vm1048, %v984, %v1112
    %v1177 = vsel %vm1049, %v985, %v1113
    %v1178 = vsel %vm1050, %v986, %v1114
    %v1179 = vsel %vm1051, %v987, %v1115
    %v1180 = vsel %vm1052, %v988, %v1116
    %v1181 = vsel %vm1053, %v989, %v1117
    %v1182 = vsel %vm1054, %v990, %v1118
    %v1183 = vsel %vm1055, %v991, %v1119
    %v1184 = vsel %vm1056, %v992, %v1120
    %v1185 = vsel %vm1057, %v993, %v1121
    %v1186 = vsel %vm1058, %v994, %v1122
    %v1187 = vsel %vm1059, %v995, %v1123
    %v1188 = vsel %vm1060, %v996, %v1124
    %v1189 = vsel %vm1061, %v997, %v1125
    %v1190 = vsel %vm1062, %v998, %v1126
    %v1191 = vsel %vm1063, %v999, %v1127
    %v1192 = vsel %vm1064, %v1000, %v1128
    %v1193 = vsel %vm1065, %v1001, %v1129
    %v1194 = vsel %vm1066, %v1002, %v1130
    %v1195 = vsel %vm1067, %v1003, %v1131
    %v1196 = vsel %vm1068, %v1004, %v1132
    %v1197 = vsel %vm1069, %v1005, %v1133
    %v1198 = vsel %vm1070, %v1006, %v1134
    %v1199 = vsel %vm1071, %v1007, %v1135
    %v1200 = vsel %vm1072, %v1008, %v1136
    %v1201 = vsel %vm1073, %v1009, %v1137
    %v1202 = vsel %vm1074, %v1010, %v1138
    %v1203 = vsel %vm1075, %v1011, %v1139
    %v1204 = vsel %vm1076, %v1012, %v1140
    %v1205 = vsel %vm1077, %v1013, %v1141
    %v1206 = vsel %vm1078, %v1014, %v1142
    %v1207 = vsel %vm1079, %v1015, %v1143
    %v1208 = vsel %vm1080, %v1016, %v1144
    %v1209 = vsel %vm1081, %v1017, %v1145
    %v1210 = vsel %vm1082, %v1018, %v1146
    %v1211 = vsel %vm1083, %v1019, %v1147
    %v1212 = vsel %vm1084, %v1020, %v1148
    %v1213 = vsel %vm1085, %v1021, %v1149
    %v1214 = vsel %vm1086, %v1022, %v1150
    %v1215 = vsel %vm1087, %v1023, %v1151
    %v1216 = vpack.c.bf16 %v1153, %v1152
    %v1217 = vpack.c.bf16 %v1155, %v1154
    %v1218 = vpack.c.bf16 %v1157, %v1156
    %v1219 = vpack.c.bf16 %v1159, %v1158
    %v1220 = vpack.c.bf16 %v1161, %v1160
    %v1221 = vpack.c.bf16 %v1163, %v1162
    %v1222 = vpack.c.bf16 %v1165, %v1164
    %v1223 = vpack.c.bf16 %v1167, %v1166
    %v1224 = vpack.c.bf16 %v1169, %v1168
    %v1225 = vpack.c.bf16 %v1171, %v1170
    %v1226 = vpack.c.bf16 %v1173, %v1172
    %v1227 = vpack.c.bf16 %v1175, %v1174
    %v1228 = vpack.c.bf16 %v1177, %v1176
    %v1229 = vpack.c.bf16 %v1179, %v1178
    %v1230 = vpack.c.bf16 %v1181, %v1180
    %v1231 = vpack.c.bf16 %v1183, %v1182
    %v1232 = vpack.c.bf16 %v1185, %v1184
    %v1233 = vpack.c.bf16 %v1187, %v1186
    %v1234 = vpack.c.bf16 %v1189, %v1188
    %v1235 = vpack.c.bf16 %v1191, %v1190
    %v1236 = vpack.c.bf16 %v1193, %v1192
    %v1237 = vpack.c.bf16 %v1195, %v1194
    %v1238 = vpack.c.bf16 %v1197, %v1196
    %v1239 = vpack.c.bf16 %v1199, %v1198
    %v1240 = vpack.c.bf16 %v1201, %v1200
    %v1241 = vpack.c.bf16 %v1203, %v1202
    %v1242 = vpack.c.bf16 %v1205, %v1204
    %v1243 = vpack.c.bf16 %v1207, %v1206
    %v1244 = vpack.c.bf16 %v1209, %v1208
    %v1245 = vpack.c.bf16 %v1211, %v1210
    %v1246 = vpack.c.bf16 %v1213, %v1212
    %v1247 = vpack.c.bf16 %v1215, %v1214
    %v1280 = vunpack.c.l.b16 %v1216
    %v1281 = vunpack.c.h.b16 %v1216
    %v1282 = vunpack.c.l.b16 %v1217
    %v1283 = vunpack.c.h.b16 %v1217
    %v1284 = vunpack.c.l.b16 %v1218
    %v1285 = vunpack.c.h.b16 %v1218
    %v1286 = vunpack.c.l.b16 %v1219
    %v1287 = vunpack.c.h.b16 %v1219
    %v1288 = vunpack.c.l.b16 %v1220
    %v1289 = vunpack.c.h.b16 %v1220
    %v1290 = vunpack.c.l.b16 %v1221
    %v1291 = vunpack.c.h.b16 %v1221
    %v1292 = vunpack.c.l.b16 %v1222
    %v1293 = vunpack.c.h.b16 %v1222
    %v1294 = vunpack.c.l.b16 %v1223
    %v1295 = vunpack.c.h.b16 %v1223
    %v1296 = vunpack.c.l.b16 %v1224
    %v1297 = vunpack.c.h.b16 %v1224
    %v1298 = vunpack.c.l.b16 %v1225
    %v1299 = vunpack.c.h.b16 %v1225
    %v1300 = vunpack.c.l.b16 %v1226
    %v1301 = vunpack.c.h.b16 %v1226
    %v1302 = vunpack.c.l.b16 %v1227
    %v1303 = vunpack.c.h.b16 %v1227
    %v1304 = vunpack.c.l.b16 %v1228
    %v1305 = vunpack.c.h.b16 %v1228
    %v1306 = vunpack.c.l.b16 %v1229
    %v1307 = vunpack.c.h.b16 %v1229
    %v1308 = vunpack.c.l.b16 %v1230
    %v1309 = vunpack.c.h.b16 %v1230
    %v1310 = vunpack.c.l.b16 %v1231
    %v1311 = vunpack.c.h.b16 %v1231
    %v1312 = vunpack.c.l.b16 %v1232
    %v1313 = vunpack.c.h.b16 %v1232
    %v1314 = vunpack.c.l.b16 %v1233
    %v1315 = vunpack.c.h.b16 %v1233
    %v1316 = vunpack.c.l.b16 %v1234
    %v1317 = vunpack.c.h.b16 %v1234
    %v1318 = vunpack.c.l.b16 %v1235
    %v1319 = vunpack.c.h.b16 %v1235
    %v1320 = vunpack.c.l.b16 %v1236
    %v1321 = vunpack.c.h.b16 %v1236
    %v1322 = vunpack.c.l.b16 %v1237
    %v1323 = vunpack.c.h.b16 %v1237
    %v1324 = vunpack.c.l.b16 %v1238
    %v1325 = vunpack.c.h.b16 %v1238
    %v1326 = vunpack.c.l.b16 %v1239
    %v1327 = vunpack.c.h.b16 %v1239
    %v1328 = vunpack.c.l.b16 %v1240
    %v1329 = vunpack.c.h.b16 %v1240
    %v1330 = vunpack.c.l.b16 %v1241
    %v1331 = vunpack.c.h.b16 %v1241
    %v1332 = vunpack.c.l.b16 %v1242
    %v1333 = vunpack.c.h.b16 %v1242
    %v1334 = vunpack.c.l.b16 %v1243
    %v1335 = vunpack.c.h.b16 %v1243
    %v1336 = vunpack.c.l.b16 %v1244
    %v1337 = vunpack.c.h.b16 %v1244
    %v1338 = vunpack.c.l.b16 %v1245
    %v1339 = vunpack.c.h.b16 %v1245
    %v1340 = vunpack.c.l.b16 %v1246
    %v1341 = vunpack.c.h.b16 %v1246
    %v1342 = vunpack.c.l.b16 %v1247
    %v1343 = vunpack.c.h.b16 %v1247
    %v1344 = vpack.c.b16 %v1280, %v1280
    %v1345 = vpack.c.b16 %v1281, %v1281
    %v1346 = vpack.c.b16 %v1282, %v1282
    %v1347 = vpack.c.b16 %v1283, %v1283
    %v1348 = vpack.c.b16 %v1284, %v1284
    %v1349 = vpack.c.b16 %v1285, %v1285
    %v1350 = vpack.c.b16 %v1286, %v1286
    %v1351 = vpack.c.b16 %v1287, %v1287
    %v1352 = vpack.c.b16 %v1288, %v1288
    %v1353 = vpack.c.b16 %v1289, %v1289
    %v1354 = vpack.c.b16 %v1290, %v1290
    %v1355 = vpack.c.b16 %v1291, %v1291
    %v1356 = vpack.c.b16 %v1292, %v1292
    %v1357 = vpack.c.b16 %v1293, %v1293
    %v1358 = vpack.c.b16 %v1294, %v1294
    %v1359 = vpack.c.b16 %v1295, %v1295
    %v1360 = vpack.c.b16 %v1296, %v1296
    %v1361 = vpack.c.b16 %v1297, %v1297
    %v1362 = vpack.c.b16 %v1298, %v1298
    %v1363 = vpack.c.b16 %v1299, %v1299
    %v1364 = vpack.c.b16 %v1300, %v1300
    %v1365 = vpack.c.b16 %v1301, %v1301
    %v1366 = vpack.c.b16 %v1302, %v1302
    %v1367 = vpack.c.b16 %v1303, %v1303
    %v1368 = vpack.c.b16 %v1304, %v1304
    %v1369 = vpack.c.b16 %v1305, %v1305
    %v1370 = vpack.c.b16 %v1306, %v1306
    %v1371 = vpack.c.b16 %v1307, %v1307
    %v1372 = vpack.c.b16 %v1308, %v1308
    %v1373 = vpack.c.b16 %v1309, %v1309
    %v1374 = vpack.c.b16 %v1310, %v1310
    %v1375 = vpack.c.b16 %v1311, %v1311
    %v1376 = vpack.c.b16 %v1312, %v1312
    %v1377 = vpack.c.b16 %v1313, %v1313
    %v1378 = vpack.c.b16 %v1314, %v1314
    %v1379 = vpack.c.b16 %v1315, %v1315
    %v1380 = vpack.c.b16 %v1316, %v1316
    %v1381 = vpack.c.b16 %v1317, %v1317
    %v1382 = vpack.c.b16 %v1318, %v1318
    %v1383 = vpack.c.b16 %v1319, %v1319
    %v1384 = vpack.c.b16 %v1320, %v1320
    %v1385 = vpack.c.b16 %v1321, %v1321
    %v1386 = vpack.c.b16 %v1322, %v1322
    %v1387 = vpack.c.b16 %v1323, %v1323
    %v1388 = vpack.c.b16 %v1324, %v1324
    %v1389 = vpack.c.b16 %v1325, %v1325
    %v1390 = vpack.c.b16 %v1326, %v1326
    %v1391 = vpack.c.b16 %v1327, %v1327
    %v1392 = vpack.c.b16 %v1328, %v1328
    %v1393 = vpack.c.b16 %v1329, %v1329
    %v1394 = vpack.c.b16 %v1330, %v1330
    %v1395 = vpack.c.b16 %v1331, %v1331
    %v1396 = vpack.c.b16 %v1332, %v1332
    %v1397 = vpack.c.b16 %v1333, %v1333
    %v1398 = vpack.c.b16 %v1334, %v1334
    %v1399 = vpack.c.b16 %v1335, %v1335
    %v1400 = vpack.c.b16 %v1336, %v1336
    %v1401 = vpack.c.b16 %v1337, %v1337
    %v1402 = vpack.c.b16 %v1338, %v1338
    %v1403 = vpack.c.b16 %v1339, %v1339
    %v1404 = vpack.c.b16 %v1340, %v1340
    %v1405 = vpack.c.b16 %v1341, %v1341
    %v1406 = vpack.c.b16 %v1342, %v1342
    %v1407 = vpack.c.b16 %v1343, %v1343
    %vm1472 = vcmask 60416
    %1473 = vst.msk [vmem:[%s3] sm:$0xf] %vm1472, %v1344
    %1474 = vst.msk [vmem:[%s3 + $0x4] sm:$0xf] %vm1472, %v1345
    %1475 = vst.msk [vmem:[%s3 + $0x8] sm:$0xf] %vm1472, %v1346
    %1476 = vst.msk [vmem:[%s3 + $0xc] sm:$0xf] %vm1472, %v1347
    %1477 = vst.msk [vmem:[%s3 + $0x10] sm:$0xf] %vm1472, %v1348
    %1478 = vst.msk [vmem:[%s3 + $0x14] sm:$0xf] %vm1472, %v1349
    %1479 = vst.msk [vmem:[%s3 + $0x18] sm:$0xf] %vm1472, %v1350
    %1480 = vst.msk [vmem:[%s3 + $0x1c] sm:$0xf] %vm1472, %v1351
    %1481 = vst.msk [vmem:[%s3 + $0x20] sm:$0xf] %vm1472, %v1352
    %1482 = vst.msk [vmem:[%s3 + $0x24] sm:$0xf] %vm1472, %v1353
    %1483 = vst.msk [vmem:[%s3 + $0x28] sm:$0xf] %vm1472, %v1354
    %1484 = vst.msk [vmem:[%s3 + $0x2c] sm:$0xf] %vm1472, %v1355
    %1485 = vst.msk [vmem:[%s3 + $0x30] sm:$0xf] %vm1472, %v1356
    %1486 = vst.msk [vmem:[%s3 + $0x34] sm:$0xf] %vm1472, %v1357
    %1487 = vst.msk [vmem:[%s3 + $0x38] sm:$0xf] %vm1472, %v1358
    %1488 = vst.msk [vmem:[%s3 + $0x3c] sm:$0xf] %vm1472, %v1359
    %1489 = vst.msk [vmem:[%s3 + $0x40] sm:$0xf] %vm1472, %v1360
    %1490 = vst.msk [vmem:[%s3 + $0x44] sm:$0xf] %vm1472, %v1361
    %1491 = vst.msk [vmem:[%s3 + $0x48] sm:$0xf] %vm1472, %v1362
    %1492 = vst.msk [vmem:[%s3 + $0x4c] sm:$0xf] %vm1472, %v1363
    %1493 = vst.msk [vmem:[%s3 + $0x50] sm:$0xf] %vm1472, %v1364
    %1494 = vst.msk [vmem:[%s3 + $0x54] sm:$0xf] %vm1472, %v1365
    %1495 = vst.msk [vmem:[%s3 + $0x58] sm:$0xf] %vm1472, %v1366
    %1496 = vst.msk [vmem:[%s3 + $0x5c] sm:$0xf] %vm1472, %v1367
    %1497 = vst.msk [vmem:[%s3 + $0x60] sm:$0xf] %vm1472, %v1368
    %1498 = vst.msk [vmem:[%s3 + $0x64] sm:$0xf] %vm1472, %v1369
    %1499 = vst.msk [vmem:[%s3 + $0x68] sm:$0xf] %vm1472, %v1370
    %1500 = vst.msk [vmem:[%s3 + $0x6c] sm:$0xf] %vm1472, %v1371
    %1501 = vst.msk [vmem:[%s3 + $0x70] sm:$0xf] %vm1472, %v1372
    %1502 = vst.msk [vmem:[%s3 + $0x74] sm:$0xf] %vm1472, %v1373
    %1503 = vst.msk [vmem:[%s3 + $0x78] sm:$0xf] %vm1472, %v1374
    %1504 = vst.msk [vmem:[%s3 + $0x7c] sm:$0xf] %vm1472, %v1375
    %1505 = vst.msk [vmem:[%s3 + $0x80] sm:$0xf] %vm1472, %v1376
    %1506 = vst.msk [vmem:[%s3 + $0x84] sm:$0xf] %vm1472, %v1377
    %1507 = vst.msk [vmem:[%s3 + $0x88] sm:$0xf] %vm1472, %v1378
    %1508 = vst.msk [vmem:[%s3 + $0x8c] sm:$0xf] %vm1472, %v1379
    %1509 = vst.msk [vmem:[%s3 + $0x90] sm:$0xf] %vm1472, %v1380
    %1510 = vst.msk [vmem:[%s3 + $0x94] sm:$0xf] %vm1472, %v1381
    %1511 = vst.msk [vmem:[%s3 + $0x98] sm:$0xf] %vm1472, %v1382
    %1512 = vst.msk [vmem:[%s3 + $0x9c] sm:$0xf] %vm1472, %v1383
    %1513 = vst.msk [vmem:[%s3 + $0xa0] sm:$0xf] %vm1472, %v1384
    %1514 = vst.msk [vmem:[%s3 + $0xa4] sm:$0xf] %vm1472, %v1385
    %1515 = vst.msk [vmem:[%s3 + $0xa8] sm:$0xf] %vm1472, %v1386
    %1516 = vst.msk [vmem:[%s3 + $0xac] sm:$0xf] %vm1472, %v1387
    %1517 = vst.msk [vmem:[%s3 + $0xb0] sm:$0xf] %vm1472, %v1388
    %1518 = vst.msk [vmem:[%s3 + $0xb4] sm:$0xf] %vm1472, %v1389
    %1519 = vst.msk [vmem:[%s3 + $0xb8] sm:$0xf] %vm1472, %v1390
    %1520 = vst.msk [vmem:[%s3 + $0xbc] sm:$0xf] %vm1472, %v1391
    %1521 = vst.msk [vmem:[%s3 + $0xc0] sm:$0xf] %vm1472, %v1392
    %1522 = vst.msk [vmem:[%s3 + $0xc4] sm:$0xf] %vm1472, %v1393
    %1523 = vst.msk [vmem:[%s3 + $0xc8] sm:$0xf] %vm1472, %v1394
    %1524 = vst.msk [vmem:[%s3 + $0xcc] sm:$0xf] %vm1472, %v1395
    %1525 = vst.msk [vmem:[%s3 + $0xd0] sm:$0xf] %vm1472, %v1396
    %1526 = vst.msk [vmem:[%s3 + $0xd4] sm:$0xf] %vm1472, %v1397
    %1527 = vst.msk [vmem:[%s3 + $0xd8] sm:$0xf] %vm1472, %v1398
    %1528 = vst.msk [vmem:[%s3 + $0xdc] sm:$0xf] %vm1472, %v1399
    %1529 = vst.msk [vmem:[%s3 + $0xe0] sm:$0xf] %vm1472, %v1400
    %1530 = vst.msk [vmem:[%s3 + $0xe4] sm:$0xf] %vm1472, %v1401
    %1531 = vst.msk [vmem:[%s3 + $0xe8] sm:$0xf] %vm1472, %v1402
    %1532 = vst.msk [vmem:[%s3 + $0xec] sm:$0xf] %vm1472, %v1403
    %1533 = vst.msk [vmem:[%s3 + $0xf0] sm:$0xf] %vm1472, %v1404
    %1534 = vst.msk [vmem:[%s3 + $0xf4] sm:$0xf] %vm1472, %v1405
    %1535 = vst.msk [vmem:[%s3 + $0xf8] sm:$0xf] %vm1472, %v1406
    %1536 = vst.msk [vmem:[%s3 + $0xfc] sm:$0xf] %vm1472, %v1407
  $region21: #{outspace_discriminator.5} parent=0 // pred_fallthru
    _
  // Predicated region
  $region22: #{outspace_discriminator.5} parent=0 // pred_check
    _
  $region23: #{outspace_discriminator.5} parent=0 // pred_check_branch
    %1538 = sbr.rel (0) target = $region25
  $region24: #{outspace_discriminator.5} parent=0 // pred_region
    _
  $region25: #{outspace_discriminator.5} parent=0 // pred_fallthru
    _
  // Predicated region
  $region26: #{outspace_discriminator.5} parent=0 // pred_check
    _
  $region27: #{outspace_discriminator.5} parent=0 // pred_check_branch
    %1540 = sbr.rel (0) target = $region29
  $region28: #{outspace_discriminator.5} parent=0 // pred_region
    _
  $region29: #{outspace_discriminator.5} parent=0 // pred_fallthru
    _

// kernel: outspace_discriminator.6
$region0: #{outspace_discriminator.6}
  #allocation0 [shape = 'u32[]', space=smem, size = 0x4, offset = 0x4, fixed_abs, tag = 'smem constant byte address 0x4 - core index']
  #allocation1 [shape = 'u32[144,128]{1,0:T(1,128)}', space=vmem, size = 0x12000, scoped, tag = 'internal scratch']
  #allocation2 [shape = 'f32[128,16]{1,0:T(8,128)}', space=vmem, size = 0x10000, scoped, tag = 'scratch operand']
  %s0 = inlined_call_operand.vmem [shape: bf16[128,128], index: 0, kind: input, shape index: {}]
  %s1 = inlined_call_operand.vmem [shape: bf16[128,16], index: 1, kind: input, shape index: {}]
  %s2 = inlined_call_operand.vmem [shape: f32[1,16], index: 2, kind: input, shape index: {}]
  %s3 = inlined_call_operand.vmem [shape: bf16[128,16], index: 3, kind: output, shape index: {}]
  %s4 = sld [smem:[#allocation0]]
  $region30: #{outspace_discriminator.6} parent=0
    _
  %s6 = ssub.s32 1, %s4
  %s7 = scalar_select 0, %s6, %s4
  // Predicated region
  $region2: #{outspace_discriminator.6} parent=0 // pred_check
    _
  $region3: #{outspace_discriminator.6} parent=0 // pred_check_branch
    %9 = sbr.rel (0) target = $region5
  $region4: #{outspace_discriminator.6} parent=0 // pred_region
    _
  $region5: #{outspace_discriminator.6} parent=0 // pred_fallthru
    _
  // Predicated region
  $region6: #{outspace_discriminator.6} parent=0 // pred_check
    _
  $region7: #{outspace_discriminator.6} parent=0 // pred_check_branch
    %11 = sbr.rel (0) target = $region9
  $region8: #{outspace_discriminator.6} parent=0 // pred_region
    _
  $region9: #{outspace_discriminator.6} parent=0 // pred_fallthru
    _
  // Predicated region
  $region10: #{outspace_discriminator.6} parent=0 // pred_check
    _
  $region11: #{outspace_discriminator.6} parent=0 // pred_check_branch
    %13 = sbr.rel (0) target = $region13
  $region12: #{outspace_discriminator.6} parent=0 // pred_region
    _
  $region13: #{outspace_discriminator.6} parent=0 // pred_fallthru
    _
  %p15 = scmp.eq.s32.totalorder 0, 0
  // Predicated region
  $region14: #{outspace_discriminator.6} parent=0 // pred_check
    %p16 = pneg %p15
  $region15: #{outspace_discriminator.6} parent=0 // pred_check_branch
    %18 = sbr.rel (%p16) target = $region17
  $region16: #{outspace_discriminator.6} parent=0 // pred_region
    %vm19 = vcmask 130048
    %20 = vst.msk [vmem:[#allocation2] sm:$0xff] %vm19, 0.0
    %21 = vst.msk [vmem:[#allocation2 + $0x8] sm:$0xff] %vm19, 0.0
    %22 = vst.msk [vmem:[#allocation2 + $0x10] sm:$0xff] %vm19, 0.0
    %23 = vst.msk [vmem:[#allocation2 + $0x18] sm:$0xff] %vm19, 0.0
    %24 = vst.msk [vmem:[#allocation2 + $0x20] sm:$0xff] %vm19, 0.0
    %25 = vst.msk [vmem:[#allocation2 + $0x28] sm:$0xff] %vm19, 0.0
    %26 = vst.msk [vmem:[#allocation2 + $0x30] sm:$0xff] %vm19, 0.0
    %27 = vst.msk [vmem:[#allocation2 + $0x38] sm:$0xff] %vm19, 0.0
    %28 = vst.msk [vmem:[#allocation2 + $0x40] sm:$0xff] %vm19, 0.0
    %29 = vst.msk [vmem:[#allocation2 + $0x48] sm:$0xff] %vm19, 0.0
    %30 = vst.msk [vmem:[#allocation2 + $0x50] sm:$0xff] %vm19, 0.0
    %31 = vst.msk [vmem:[#allocation2 + $0x58] sm:$0xff] %vm19, 0.0
    %32 = vst.msk [vmem:[#allocation2 + $0x60] sm:$0xff] %vm19, 0.0
    %33 = vst.msk [vmem:[#allocation2 + $0x68] sm:$0xff] %vm19, 0.0
    %34 = vst.msk [vmem:[#allocation2 + $0x70] sm:$0xff] %vm19, 0.0
    %35 = vst.msk [vmem:[#allocation2 + $0x78] sm:$0xff] %vm19, 0.0
  $region17: #{outspace_discriminator.6} parent=0 // pred_fallthru
    _
  %v36 = vld [vmem:[#allocation2] sm:$0xff]
  %v37 = vld [vmem:[#allocation2 + $0x8] sm:$0xff]
  %v38 = vld [vmem:[#allocation2 + $0x10] sm:$0xff]
  %v39 = vld [vmem:[#allocation2 + $0x18] sm:$0xff]
  %v40 = vld [vmem:[#allocation2 + $0x20] sm:$0xff]
  %v41 = vld [vmem:[#allocation2 + $0x28] sm:$0xff]
  %v42 = vld [vmem:[#allocation2 + $0x30] sm:$0xff]
  %v43 = vld [vmem:[#allocation2 + $0x38] sm:$0xff]
  %v44 = vld [vmem:[#allocation2 + $0x40] sm:$0xff]
  %v45 = vld [vmem:[#allocation2 + $0x48] sm:$0xff]
  %v46 = vld [vmem:[#allocation2 + $0x50] sm:$0xff]
  %v47 = vld [vmem:[#allocation2 + $0x58] sm:$0xff]
  %v48 = vld [vmem:[#allocation2 + $0x60] sm:$0xff]
  %v49 = vld [vmem:[#allocation2 + $0x68] sm:$0xff]
  %v50 = vld [vmem:[#allocation2 + $0x70] sm:$0xff]
  %v51 = vld [vmem:[#allocation2 + $0x78] sm:$0xff]
  %v52 = vld [vmem:[%s0] sm:$0xf]
  %v53 = vld [vmem:[%s0 + $0x4] sm:$0xf]
  %v54 = vld [vmem:[%s0 + $0x8] sm:$0xf]
  %v55 = vld [vmem:[%s0 + $0xc] sm:$0xf]
  %v56 = vld [vmem:[%s0 + $0x10] sm:$0xf]
  %v57 = vld [vmem:[%s0 + $0x14] sm:$0xf]
  %v58 = vld [vmem:[%s0 + $0x18] sm:$0xf]
  %v59 = vld [vmem:[%s0 + $0x1c] sm:$0xf]
  %v60 = vld [vmem:[%s0 + $0x20] sm:$0xf]
  %v61 = vld [vmem:[%s0 + $0x24] sm:$0xf]
  %v62 = vld [vmem:[%s0 + $0x28] sm:$0xf]
  %v63 = vld [vmem:[%s0 + $0x2c] sm:$0xf]
  %v64 = vld [vmem:[%s0 + $0x30] sm:$0xf]
  %v65 = vld [vmem:[%s0 + $0x34] sm:$0xf]
  %v66 = vld [vmem:[%s0 + $0x38] sm:$0xf]
  %v67 = vld [vmem:[%s0 + $0x3c] sm:$0xf]
  %v68 = vld [vmem:[%s1] sm:$0xf]
  %v69 = vld [vmem:[%s1 + $0x4] sm:$0xf]
  %v70 = vld [vmem:[%s1 + $0x8] sm:$0xf]
  %v71 = vld [vmem:[%s1 + $0xc] sm:$0xf]
  %v72 = vld [vmem:[%s1 + $0x10] sm:$0xf]
  %v73 = vld [vmem:[%s1 + $0x14] sm:$0xf]
  %v74 = vld [vmem:[%s1 + $0x18] sm:$0xf]
  %v75 = vld [vmem:[%s1 + $0x1c] sm:$0xf]
  %v76 = vld [vmem:[%s1 + $0x20] sm:$0xf]
  %v77 = vld [vmem:[%s1 + $0x24] sm:$0xf]
  %v78 = vld [vmem:[%s1 + $0x28] sm:$0xf]
  %v79 = vld [vmem:[%s1 + $0x2c] sm:$0xf]
  %v80 = vld [vmem:[%s1 + $0x30] sm:$0xf]
  %v81 = vld [vmem:[%s1 + $0x34] sm:$0xf]
  %v82 = vld [vmem:[%s1 + $0x38] sm:$0xf]
  %v83 = vld [vmem:[%s1 + $0x3c] sm:$0xf]
  %v100 = vunpack.c.l.b16 %v52
  %v101 = vunpack.c.l.b16 %v53
  %v102 = vunpack.c.l.b16 %v54
  %v103 = vunpack.c.l.b16 %v55
  %v104 = vunpack.c.l.b16 %v56
  %v105 = vunpack.c.l.b16 %v57
  %v106 = vunpack.c.l.b16 %v58
  %v107 = vunpack.c.l.b16 %v59
  %v108 = vunpack.c.l.b16 %v60
  %v109 = vunpack.c.l.b16 %v61
  %v110 = vunpack.c.l.b16 %v62
  %v111 = vunpack.c.l.b16 %v63
  %v112 = vunpack.c.l.b16 %v64
  %v113 = vunpack.c.l.b16 %v65
  %v114 = vunpack.c.l.b16 %v66
  %v115 = vunpack.c.l.b16 %v67
  %v116 = vpack.c.b16 %v101, %v100
  %v117 = vpack.c.b16 %v103, %v102
  %v118 = vpack.c.b16 %v105, %v104
  %v119 = vpack.c.b16 %v107, %v106
  %v120 = vpack.c.b16 %v109, %v108
  %v121 = vpack.c.b16 %v111, %v110
  %v122 = vpack.c.b16 %v113, %v112
  %v123 = vpack.c.b16 %v115, %v114
  %v148 = vunpack.c.l.b16 %v68
  %v149 = vunpack.c.l.b16 %v69
  %v150 = vunpack.c.l.b16 %v70
  %v151 = vunpack.c.l.b16 %v71
  %v152 = vunpack.c.l.b16 %v72
  %v153 = vunpack.c.l.b16 %v73
  %v154 = vunpack.c.l.b16 %v74
  %v155 = vunpack.c.l.b16 %v75
  %v156 = vunpack.c.l.b16 %v76
  %v157 = vunpack.c.l.b16 %v77
  %v158 = vunpack.c.l.b16 %v78
  %v159 = vunpack.c.l.b16 %v79
  %v160 = vunpack.c.l.b16 %v80
  %v161 = vunpack.c.l.b16 %v81
  %v162 = vunpack.c.l.b16 %v82
  %v163 = vunpack.c.l.b16 %v83
  %v164 = vpack.c.b16 %v149, %v148
  %v165 = vpack.c.b16 %v151, %v150
  %v166 = vpack.c.b16 %v153, %v152
  %v167 = vpack.c.b16 %v155, %v154
  %v168 = vpack.c.b16 %v157, %v156
  %v169 = vpack.c.b16 %v159, %v158
  %v170 = vpack.c.b16 %v161, %v160
  %v171 = vpack.c.b16 %v163, %v162
  %180 = vmatprep.subr.bf16.mxu0 0
  %181 = vmatpush1.bf16.msra.mxu0 %v164
  %182 = vmatprep.subr.bf16.mxu0 0
  %183 = vmatpush1.bf16.msra.mxu0 %v165
  %184 = vmatprep.subr.bf16.mxu0 0
  %185 = vmatpush1.bf16.msra.mxu0 %v166
  %186 = vmatprep.subr.bf16.mxu0 0
  %187 = vmatpush1.bf16.msra.mxu0 %v167
  %188 = vmatprep.subr.bf16.mxu0 0
  %189 = vmatpush1.bf16.msra.mxu0 %v168
  %190 = vmatprep.subr.bf16.mxu0 0
  %191 = vmatpush1.bf16.msra.mxu0 %v169
  %192 = vmatprep.subr.bf16.mxu0 0
  %193 = vmatpush1.bf16.msra.mxu0 %v170
  %194 = vmatprep.subr.bf16.mxu0 0
  %195 = vmatpush1.bf16.msra.mxu0 %v171
  %196 = vmatprep.subr.bf16.mxu0 0
  %197 = vmatpush1.bf16.msra.mxu0 0
  %198 = vmatprep.subr.bf16.mxu0 0
  %199 = vmatpush1.bf16.msra.mxu0 0
  %200 = vmatprep.subr.bf16.mxu0 0
  %201 = vmatpush1.bf16.msra.mxu0 0
  %202 = vmatprep.subr.bf16.mxu0 0
  %203 = vmatpush1.bf16.msra.mxu0 0
  %204 = vmatprep.subr.bf16.mxu0 0
  %205 = vmatpush1.bf16.msra.mxu0 0
  %206 = vmatprep.subr.bf16.mxu0 0
  %207 = vmatpush1.bf16.msra.mxu0 0
  %208 = vmatprep.subr.bf16.mxu0 0
  %209 = vmatpush1.bf16.msra.mxu0 0
  %210 = vmatprep.subr.bf16.mxu0 0
  %211 = vmatpush1.bf16.msra.mxu0 0
  %212 = vmatprep.mubr.bf16.mxu0 0
  %213 = vmatmul.mubr.bf16.gmra.mrb[0].mxu0 %v116
  %v214 = vpop.f32.mrb[0].mxu0
  %v215 = vadd.f32 0.0, %v214
  %v216 = vpop.f32.mrb[0].mxu0
  %v217 = vpop.f32.mrb[0].mxu0
  %v218 = vadd.f32 0.0, %v217
  %v219 = vpop.f32.mrb[0].mxu0
  %220 = vmatprep.mubr.bf16.mxu0 0
  %221 = vmatmul.mubr.bf16.gmra.mrb[0].mxu0 %v117
  %v222 = vpop.f32.mrb[0].mxu0
  %v223 = vadd.f32 0.0, %v222
  %v224 = vpop.f32.mrb[0].mxu0
  %v225 = vpop.f32.mrb[0].mxu0
  %v226 = vadd.f32 0.0, %v225
  %v227 = vpop.f32.mrb[0].mxu0
  %228 = vmatprep.mubr.bf16.mxu0 0
  %229 = vmatmul.mubr.bf16.gmra.mrb[0].mxu0 %v118
  %v230 = vpop.f32.mrb[0].mxu0
  %v231 = vadd.f32 0.0, %v230
  %v232 = vpop.f32.mrb[0].mxu0
  %v233 = vpop.f32.mrb[0].mxu0
  %v234 = vadd.f32 0.0, %v233
  %v235 = vpop.f32.mrb[0].mxu0
  %236 = vmatprep.mubr.bf16.mxu0 0
  %237 = vmatmul.mubr.bf16.gmra.mrb[0].mxu0 %v119
  %v238 = vpop.f32.mrb[0].mxu0
  %v239 = vadd.f32 0.0, %v238
  %v240 = vpop.f32.mrb[0].mxu0
  %v241 = vpop.f32.mrb[0].mxu0
  %v242 = vadd.f32 0.0, %v241
  %v243 = vpop.f32.mrb[0].mxu0
  %244 = vmatprep.mubr.bf16.mxu0 0
  %245 = vmatmul.mubr.bf16.gmra.mrb[0].mxu0 %v120
  %v246 = vpop.f32.mrb[0].mxu0
  %v247 = vadd.f32 0.0, %v246
  %v248 = vpop.f32.mrb[0].mxu0
  %v249 = vpop.f32.mrb[0].mxu0
  %v250 = vadd.f32 0.0, %v249
  %v251 = vpop.f32.mrb[0].mxu0
  %252 = vmatprep.mubr.bf16.mxu0 0
  %253 = vmatmul.mubr.bf16.gmra.mrb[0].mxu0 %v121
  %v254 = vpop.f32.mrb[0].mxu0
  %v255 = vadd.f32 0.0, %v254
  %v256 = vpop.f32.mrb[0].mxu0
  %v257 = vpop.f32.mrb[0].mxu0
  %v258 = vadd.f32 0.0, %v257
  %v259 = vpop.f32.mrb[0].mxu0
  %260 = vmatprep.mubr.bf16.mxu0 0
  %261 = vmatmul.mubr.bf16.gmra.mrb[0].mxu0 %v122
  %v262 = vpop.f32.mrb[0].mxu0
  %v263 = vadd.f32 0.0, %v262
  %v264 = vpop.f32.mrb[0].mxu0
  %v265 = vpop.f32.mrb[0].mxu0
  %v266 = vadd.f32 0.0, %v265
  %v267 = vpop.f32.mrb[0].mxu0
  %268 = vmatprep.mubr.bf16.mxu0 0
  %269 = vmatmul.mubr.bf16.gmra.mrb[0].mxu0 %v123
  %v270 = vpop.f32.mrb[0].mxu0
  %v271 = vadd.f32 0.0, %v270
  %v272 = vpop.f32.mrb[0].mxu0
  %v273 = vpop.f32.mrb[0].mxu0
  %v274 = vadd.f32 0.0, %v273
  %v275 = vpop.f32.mrb[0].mxu0
  %276 = vdwg.mxu0
  %v277 = vadd.f32 %v36, %v215
  %v278 = vadd.f32 %v37, %v218
  %v279 = vadd.f32 %v38, %v223
  %v280 = vadd.f32 %v39, %v226
  %v281 = vadd.f32 %v40, %v231
  %v282 = vadd.f32 %v41, %v234
  %v283 = vadd.f32 %v42, %v239
  %v284 = vadd.f32 %v43, %v242
  %v285 = vadd.f32 %v44, %v247
  %v286 = vadd.f32 %v45, %v250
  %v287 = vadd.f32 %v46, %v255
  %v288 = vadd.f32 %v47, %v258
  %v289 = vadd.f32 %v48, %v263
  %v290 = vadd.f32 %v49, %v266
  %v291 = vadd.f32 %v50, %v271
  %v292 = vadd.f32 %v51, %v274
  %vm293 = vcmask 130048
  %294 = vst.msk [vmem:[#allocation2] sm:$0xff] %vm293, %v277
  %295 = vst.msk [vmem:[#allocation2 + $0x8] sm:$0xff] %vm293, %v278
  %296 = vst.msk [vmem:[#allocation2 + $0x10] sm:$0xff] %vm293, %v279
  %297 = vst.msk [vmem:[#allocation2 + $0x18] sm:$0xff] %vm293, %v280
  %298 = vst.msk [vmem:[#allocation2 + $0x20] sm:$0xff] %vm293, %v281
  %299 = vst.msk [vmem:[#allocation2 + $0x28] sm:$0xff] %vm293, %v282
  %300 = vst.msk [vmem:[#allocation2 + $0x30] sm:$0xff] %vm293, %v283
  %301 = vst.msk [vmem:[#allocation2 + $0x38] sm:$0xff] %vm293, %v284
  %302 = vst.msk [vmem:[#allocation2 + $0x40] sm:$0xff] %vm293, %v285
  %303 = vst.msk [vmem:[#allocation2 + $0x48] sm:$0xff] %vm293, %v286
  %304 = vst.msk [vmem:[#allocation2 + $0x50] sm:$0xff] %vm293, %v287
  %305 = vst.msk [vmem:[#allocation2 + $0x58] sm:$0xff] %vm293, %v288
  %306 = vst.msk [vmem:[#allocation2 + $0x60] sm:$0xff] %vm293, %v289
  %307 = vst.msk [vmem:[#allocation2 + $0x68] sm:$0xff] %vm293, %v290
  %308 = vst.msk [vmem:[#allocation2 + $0x70] sm:$0xff] %vm293, %v291
  %309 = vst.msk [vmem:[#allocation2 + $0x78] sm:$0xff] %vm293, %v292
  // Predicated region
  $region18: #{outspace_discriminator.6} parent=0 // pred_check
    %p310 = pneg %p15
  $region19: #{outspace_discriminator.6} parent=0 // pred_check_branch
    %312 = sbr.rel (%p310) target = $region21
  $region20: #{outspace_discriminator.6} parent=0 // pred_region
    %v313 = vld [vmem:[#allocation2] sm:$0xff]
    %v314 = vld [vmem:[#allocation2 + $0x8] sm:$0xff]
    %v315 = vld [vmem:[#allocation2 + $0x10] sm:$0xff]
    %v316 = vld [vmem:[#allocation2 + $0x18] sm:$0xff]
    %v317 = vld [vmem:[#allocation2 + $0x20] sm:$0xff]
    %v318 = vld [vmem:[#allocation2 + $0x28] sm:$0xff]
    %v319 = vld [vmem:[#allocation2 + $0x30] sm:$0xff]
    %v320 = vld [vmem:[#allocation2 + $0x38] sm:$0xff]
    %v321 = vld [vmem:[#allocation2 + $0x40] sm:$0xff]
    %v322 = vld [vmem:[#allocation2 + $0x48] sm:$0xff]
    %v323 = vld [vmem:[#allocation2 + $0x50] sm:$0xff]
    %v324 = vld [vmem:[#allocation2 + $0x58] sm:$0xff]
    %v325 = vld [vmem:[#allocation2 + $0x60] sm:$0xff]
    %v326 = vld [vmem:[#allocation2 + $0x68] sm:$0xff]
    %v327 = vld [vmem:[#allocation2 + $0x70] sm:$0xff]
    %v328 = vld [vmem:[#allocation2 + $0x78] sm:$0xff]
    %v329 = vld [vmem:[%s2] sm:$0x1]
    %v331 = vlaneseq
    %v332 = vshrl.u32 %v331, 7
    %v333 = vsub.s32 0, %v332
    %v334 = vrot.slane %v329, %v333
    %v336 = vadd.f32 %v313, %v334
    %v337 = vadd.f32 %v314, %v334
    %v338 = vadd.f32 %v315, %v334
    %v339 = vadd.f32 %v316, %v334
    %v340 = vadd.f32 %v317, %v334
    %v341 = vadd.f32 %v318, %v334
    %v342 = vadd.f32 %v319, %v334
    %v343 = vadd.f32 %v320, %v334
    %v344 = vadd.f32 %v321, %v334
    %v345 = vadd.f32 %v322, %v334
    %v346 = vadd.f32 %v323, %v334
    %v347 = vadd.f32 %v324, %v334
    %v348 = vadd.f32 %v325, %v334
    %v349 = vadd.f32 %v326, %v334
    %v350 = vadd.f32 %v327, %v334
    %v351 = vadd.f32 %v328, %v334
    %vm352 = vcmp.gt.f32.partialorder %v336, 0.0
    %vm353 = vcmp.gt.f32.partialorder %v337, 0.0
    %vm354 = vcmp.gt.f32.partialorder %v338, 0.0
    %vm355 = vcmp.gt.f32.partialorder %v339, 0.0
    %vm356 = vcmp.gt.f32.partialorder %v340, 0.0
    %vm357 = vcmp.gt.f32.partialorder %v341, 0.0
    %vm358 = vcmp.gt.f32.partialorder %v342, 0.0
    %vm359 = vcmp.gt.f32.partialorder %v343, 0.0
    %vm360 = vcmp.gt.f32.partialorder %v344, 0.0
    %vm361 = vcmp.gt.f32.partialorder %v345, 0.0
    %vm362 = vcmp.gt.f32.partialorder %v346, 0.0
    %vm363 = vcmp.gt.f32.partialorder %v347, 0.0
    %vm364 = vcmp.gt.f32.partialorder %v348, 0.0
    %vm365 = vcmp.gt.f32.partialorder %v349, 0.0
    %vm366 = vcmp.gt.f32.partialorder %v350, 0.0
    %vm367 = vcmp.gt.f32.partialorder %v351, 0.0
    %v368 = vmul.f32 %v336, 0.2
    %v369 = vmul.f32 %v337, 0.2
    %v370 = vmul.f32 %v338, 0.2
    %v371 = vmul.f32 %v339, 0.2
    %v372 = vmul.f32 %v340, 0.2
    %v373 = vmul.f32 %v341, 0.2
    %v374 = vmul.f32 %v342, 0.2
    %v375 = vmul.f32 %v343, 0.2
    %v376 = vmul.f32 %v344, 0.2
    %v377 = vmul.f32 %v345, 0.2
    %v378 = vmul.f32 %v346, 0.2
    %v379 = vmul.f32 %v347, 0.2
    %v380 = vmul.f32 %v348, 0.2
    %v381 = vmul.f32 %v349, 0.2
    %v382 = vmul.f32 %v350, 0.2
    %v383 = vmul.f32 %v351, 0.2
    %v384 = vsel %vm352, %v336, %v368
    %v385 = vsel %vm353, %v337, %v369
    %v386 = vsel %vm354, %v338, %v370
    %v387 = vsel %vm355, %v339, %v371
    %v388 = vsel %vm356, %v340, %v372
    %v389 = vsel %vm357, %v341, %v373
    %v390 = vsel %vm358, %v342, %v374
    %v391 = vsel %vm359, %v343, %v375
    %v392 = vsel %vm360, %v344, %v376
    %v393 = vsel %vm361, %v345, %v377
    %v394 = vsel %vm362, %v346, %v378
    %v395 = vsel %vm363, %v347, %v379
    %v396 = vsel %vm364, %v348, %v380
    %v397 = vsel %vm365, %v349, %v381
    %v398 = vsel %vm366, %v350, %v382
    %v399 = vsel %vm367, %v351, %v383
    %v400 = vpack.c.bf16 %v385, %v384
    %v401 = vpack.c.bf16 %v387, %v386
    %v402 = vpack.c.bf16 %v389, %v388
    %v403 = vpack.c.bf16 %v391, %v390
    %v404 = vpack.c.bf16 %v393, %v392
    %v405 = vpack.c.bf16 %v395, %v394
    %v406 = vpack.c.bf16 %v397, %v396
    %v407 = vpack.c.bf16 %v399, %v398
    %v416 = vunpack.c.l.b16 %v400
    %v417 = vunpack.c.h.b16 %v400
    %v418 = vunpack.c.l.b16 %v401
    %v419 = vunpack.c.h.b16 %v401
    %v420 = vunpack.c.l.b16 %v402
    %v421 = vunpack.c.h.b16 %v402
    %v422 = vunpack.c.l.b16 %v403
    %v423 = vunpack.c.h.b16 %v403
    %v424 = vunpack.c.l.b16 %v404
    %v425 = vunpack.c.h.b16 %v404
    %v426 = vunpack.c.l.b16 %v405
    %v427 = vunpack.c.h.b16 %v405
    %v428 = vunpack.c.l.b16 %v406
    %v429 = vunpack.c.h.b16 %v406
    %v430 = vunpack.c.l.b16 %v407
    %v431 = vunpack.c.h.b16 %v407
    %v432 = vpack.c.b16 %v416, %v416
    %v433 = vpack.c.b16 %v417, %v417
    %v434 = vpack.c.b16 %v418, %v418
    %v435 = vpack.c.b16 %v419, %v419
    %v436 = vpack.c.b16 %v420, %v420
    %v437 = vpack.c.b16 %v421, %v421
    %v438 = vpack.c.b16 %v422, %v422
    %v439 = vpack.c.b16 %v423, %v423
    %v440 = vpack.c.b16 %v424, %v424
    %v441 = vpack.c.b16 %v425, %v425
    %v442 = vpack.c.b16 %v426, %v426
    %v443 = vpack.c.b16 %v427, %v427
    %v444 = vpack.c.b16 %v428, %v428
    %v445 = vpack.c.b16 %v429, %v429
    %v446 = vpack.c.b16 %v430, %v430
    %v447 = vpack.c.b16 %v431, %v431
    %vm464 = vcmask 125952
    %465 = vst.msk [vmem:[%s3] sm:$0xf] %vm464, %v432
    %466 = vst.msk [vmem:[%s3 + $0x4] sm:$0xf] %vm464, %v433
    %467 = vst.msk [vmem:[%s3 + $0x8] sm:$0xf] %vm464, %v434
    %468 = vst.msk [vmem:[%s3 + $0xc] sm:$0xf] %vm464, %v435
    %469 = vst.msk [vmem:[%s3 + $0x10] sm:$0xf] %vm464, %v436
    %470 = vst.msk [vmem:[%s3 + $0x14] sm:$0xf] %vm464, %v437
    %471 = vst.msk [vmem:[%s3 + $0x18] sm:$0xf] %vm464, %v438
    %472 = vst.msk [vmem:[%s3 + $0x1c] sm:$0xf] %vm464, %v439
    %473 = vst.msk [vmem:[%s3 + $0x20] sm:$0xf] %vm464, %v440
    %474 = vst.msk [vmem:[%s3 + $0x24] sm:$0xf] %vm464, %v441
    %475 = vst.msk [vmem:[%s3 + $0x28] sm:$0xf] %vm464, %v442
    %476 = vst.msk [vmem:[%s3 + $0x2c] sm:$0xf] %vm464, %v443
    %477 = vst.msk [vmem:[%s3 + $0x30] sm:$0xf] %vm464, %v444
    %478 = vst.msk [vmem:[%s3 + $0x34] sm:$0xf] %vm464, %v445
    %479 = vst.msk [vmem:[%s3 + $0x38] sm:$0xf] %vm464, %v446
    %480 = vst.msk [vmem:[%s3 + $0x3c] sm:$0xf] %vm464, %v447
  $region21: #{outspace_discriminator.6} parent=0 // pred_fallthru
    _
  // Predicated region
  $region22: #{outspace_discriminator.6} parent=0 // pred_check
    _
  $region23: #{outspace_discriminator.6} parent=0 // pred_check_branch
    %482 = sbr.rel (0) target = $region25
  $region24: #{outspace_discriminator.6} parent=0 // pred_region
    _
  $region25: #{outspace_discriminator.6} parent=0 // pred_fallthru
    _
  // Predicated region
  $region26: #{outspace_discriminator.6} parent=0 // pred_check
    _
  $region27: #{outspace_discriminator.6} parent=0 // pred_check_branch
    %484 = sbr.rel (0) target = $region29
  $region28: #{outspace_discriminator.6} parent=0 // pred_region
    _
  $region29: #{outspace_discriminator.6} parent=0 // pred_fallthru
    _

// kernel: outspace_discriminator.7
$region0: #{outspace_discriminator.7}
  #allocation0 [shape = 'u32[]', space=smem, size = 0x4, offset = 0x4, fixed_abs, tag = 'smem constant byte address 0x4 - core index']
  #allocation1 [shape = 'u32[144,128]{1,0:T(1,128)}', space=vmem, size = 0x12000, scoped, tag = 'internal scratch']
  #allocation2 [shape = 'f32[32,32]{1,0:T(8,128)}', space=vmem, size = 0x4000, scoped, tag = 'scratch operand']
  %s0 = inlined_call_operand.vmem [shape: bf16[32,256], index: 0, kind: input, shape index: {}]
  %s1 = inlined_call_operand.vmem [shape: bf16[256,32], index: 1, kind: input, shape index: {}]
  %s2 = inlined_call_operand.vmem [shape: f32[1,32], index: 2, kind: input, shape index: {}]
  %s3 = inlined_call_operand.vmem [shape: bf16[32,32], index: 3, kind: output, shape index: {}]
  %s4 = sld [smem:[#allocation0]]
  $region30: #{outspace_discriminator.7} parent=0
    _
  %s6 = ssub.s32 1, %s4
  %s7 = scalar_select 0, %s6, %s4
  // Predicated region
  $region2: #{outspace_discriminator.7} parent=0 // pred_check
    _
  $region3: #{outspace_discriminator.7} parent=0 // pred_check_branch
    %9 = sbr.rel (0) target = $region5
  $region4: #{outspace_discriminator.7} parent=0 // pred_region
    _
  $region5: #{outspace_discriminator.7} parent=0 // pred_fallthru
    _
  // Predicated region
  $region6: #{outspace_discriminator.7} parent=0 // pred_check
    _
  $region7: #{outspace_discriminator.7} parent=0 // pred_check_branch
    %11 = sbr.rel (0) target = $region9
  $region8: #{outspace_discriminator.7} parent=0 // pred_region
    _
  $region9: #{outspace_discriminator.7} parent=0 // pred_fallthru
    _
  // Predicated region
  $region10: #{outspace_discriminator.7} parent=0 // pred_check
    _
  $region11: #{outspace_discriminator.7} parent=0 // pred_check_branch
    %13 = sbr.rel (0) target = $region13
  $region12: #{outspace_discriminator.7} parent=0 // pred_region
    _
  $region13: #{outspace_discriminator.7} parent=0 // pred_fallthru
    _
  %p15 = scmp.eq.s32.totalorder 0, 0
  // Predicated region
  $region14: #{outspace_discriminator.7} parent=0 // pred_check
    %p16 = pneg %p15
  $region15: #{outspace_discriminator.7} parent=0 // pred_check_branch
    %18 = sbr.rel (%p16) target = $region17
  $region16: #{outspace_discriminator.7} parent=0 // pred_region
    %vm19 = vcmask 261120
    %20 = vst.msk [vmem:[#allocation2] sm:$0xff] %vm19, 0.0
    %21 = vst.msk [vmem:[#allocation2 + $0x8] sm:$0xff] %vm19, 0.0
    %22 = vst.msk [vmem:[#allocation2 + $0x10] sm:$0xff] %vm19, 0.0
    %23 = vst.msk [vmem:[#allocation2 + $0x18] sm:$0xff] %vm19, 0.0
  $region17: #{outspace_discriminator.7} parent=0 // pred_fallthru
    _
  %v24 = vld [vmem:[#allocation2] sm:$0xff]
  %v25 = vld [vmem:[#allocation2 + $0x8] sm:$0xff]
  %v26 = vld [vmem:[#allocation2 + $0x10] sm:$0xff]
  %v27 = vld [vmem:[#allocation2 + $0x18] sm:$0xff]
  %v28 = vld [vmem:[%s0] sm:$0xff]
  %v29 = vld [vmem:[%s0 + $0x8] sm:$0xff]
  %v30 = vld [vmem:[%s0 + $0x10] sm:$0xff]
  %v31 = vld [vmem:[%s0 + $0x18] sm:$0xff]
  %v32 = vld [vmem:[%s1] sm:$0xf]
  %v33 = vld [vmem:[%s1 + $0x4] sm:$0xf]
  %v34 = vld [vmem:[%s1 + $0x8] sm:$0xf]
  %v35 = vld [vmem:[%s1 + $0xc] sm:$0xf]
  %v36 = vld [vmem:[%s1 + $0x10] sm:$0xf]
  %v37 = vld [vmem:[%s1 + $0x14] sm:$0xf]
  %v38 = vld [vmem:[%s1 + $0x18] sm:$0xf]
  %v39 = vld [vmem:[%s1 + $0x1c] sm:$0xf]
  %v40 = vld [vmem:[%s1 + $0x20] sm:$0xf]
  %v41 = vld [vmem:[%s1 + $0x24] sm:$0xf]
  %v42 = vld [vmem:[%s1 + $0x28] sm:$0xf]
  %v43 = vld [vmem:[%s1 + $0x2c] sm:$0xf]
  %v44 = vld [vmem:[%s1 + $0x30] sm:$0xf]
  %v45 = vld [vmem:[%s1 + $0x34] sm:$0xf]
  %v46 = vld [vmem:[%s1 + $0x38] sm:$0xf]
  %v47 = vld [vmem:[%s1 + $0x3c] sm:$0xf]
  %v48 = vld [vmem:[%s1 + $0x40] sm:$0xf]
  %v49 = vld [vmem:[%s1 + $0x44] sm:$0xf]
  %v50 = vld [vmem:[%s1 + $0x48] sm:$0xf]
  %v51 = vld [vmem:[%s1 + $0x4c] sm:$0xf]
  %v52 = vld [vmem:[%s1 + $0x50] sm:$0xf]
  %v53 = vld [vmem:[%s1 + $0x54] sm:$0xf]
  %v54 = vld [vmem:[%s1 + $0x58] sm:$0xf]
  %v55 = vld [vmem:[%s1 + $0x5c] sm:$0xf]
  %v56 = vld [vmem:[%s1 + $0x60] sm:$0xf]
  %v57 = vld [vmem:[%s1 + $0x64] sm:$0xf]
  %v58 = vld [vmem:[%s1 + $0x68] sm:$0xf]
  %v59 = vld [vmem:[%s1 + $0x6c] sm:$0xf]
  %v60 = vld [vmem:[%s1 + $0x70] sm:$0xf]
  %v61 = vld [vmem:[%s1 + $0x74] sm:$0xf]
  %v62 = vld [vmem:[%s1 + $0x78] sm:$0xf]
  %v63 = vld [vmem:[%s1 + $0x7c] sm:$0xf]
  %v68 = vunpack.c.l.b16 %v28
  %v69 = vunpack.c.h.b16 %v28
  %v70 = vunpack.c.l.b16 %v29
  %v71 = vunpack.c.h.b16 %v29
  %v72 = vunpack.c.l.b16 %v30
  %v73 = vunpack.c.h.b16 %v30
  %v74 = vunpack.c.l.b16 %v31
  %v75 = vunpack.c.h.b16 %v31
  %v76 = vpack.c.b16 %v70, %v68
  %v77 = vpack.c.b16 %v71, %v69
  %v78 = vpack.c.b16 %v74, %v72
  %v79 = vpack.c.b16 %v75, %v73
  %v116 = vunpack.c.l.b16 %v32
  %v117 = vunpack.c.l.b16 %v33
  %v118 = vunpack.c.l.b16 %v34
  %v119 = vunpack.c.l.b16 %v35
  %v120 = vunpack.c.l.b16 %v36
  %v121 = vunpack.c.l.b16 %v37
  %v122 = vunpack.c.l.b16 %v38
  %v123 = vunpack.c.l.b16 %v39
  %v124 = vunpack.c.l.b16 %v40
  %v125 = vunpack.c.l.b16 %v41
  %v126 = vunpack.c.l.b16 %v42
  %v127 = vunpack.c.l.b16 %v43
  %v128 = vunpack.c.l.b16 %v44
  %v129 = vunpack.c.l.b16 %v45
  %v130 = vunpack.c.l.b16 %v46
  %v131 = vunpack.c.l.b16 %v47
  %v132 = vunpack.c.l.b16 %v48
  %v133 = vunpack.c.l.b16 %v49
  %v134 = vunpack.c.l.b16 %v50
  %v135 = vunpack.c.l.b16 %v51
  %v136 = vunpack.c.l.b16 %v52
  %v137 = vunpack.c.l.b16 %v53
  %v138 = vunpack.c.l.b16 %v54
  %v139 = vunpack.c.l.b16 %v55
  %v140 = vunpack.c.l.b16 %v56
  %v141 = vunpack.c.l.b16 %v57
  %v142 = vunpack.c.l.b16 %v58
  %v143 = vunpack.c.l.b16 %v59
  %v144 = vunpack.c.l.b16 %v60
  %v145 = vunpack.c.l.b16 %v61
  %v146 = vunpack.c.l.b16 %v62
  %v147 = vunpack.c.l.b16 %v63
  %v148 = vpack.c.b16 %v117, %v116
  %v149 = vpack.c.b16 %v119, %v118
  %v150 = vpack.c.b16 %v121, %v120
  %v151 = vpack.c.b16 %v123, %v122
  %v152 = vpack.c.b16 %v125, %v124
  %v153 = vpack.c.b16 %v127, %v126
  %v154 = vpack.c.b16 %v129, %v128
  %v155 = vpack.c.b16 %v131, %v130
  %v156 = vpack.c.b16 %v133, %v132
  %v157 = vpack.c.b16 %v135, %v134
  %v158 = vpack.c.b16 %v137, %v136
  %v159 = vpack.c.b16 %v139, %v138
  %v160 = vpack.c.b16 %v141, %v140
  %v161 = vpack.c.b16 %v143, %v142
  %v162 = vpack.c.b16 %v145, %v144
  %v163 = vpack.c.b16 %v147, %v146
  %180 = vmatprep.subr.bf16.mxu0 0
  %181 = vmatpush1.bf16.msra.mxu0 %v148
  %182 = vmatprep.subr.bf16.mxu0 0
  %183 = vmatpush1.bf16.msra.mxu0 %v149
  %184 = vmatprep.subr.bf16.mxu0 0
  %185 = vmatpush1.bf16.msra.mxu0 %v150
  %186 = vmatprep.subr.bf16.mxu0 0
  %187 = vmatpush1.bf16.msra.mxu0 %v151
  %188 = vmatprep.subr.bf16.mxu0 0
  %189 = vmatpush1.bf16.msra.mxu0 %v152
  %190 = vmatprep.subr.bf16.mxu0 0
  %191 = vmatpush1.bf16.msra.mxu0 %v153
  %192 = vmatprep.subr.bf16.mxu0 0
  %193 = vmatpush1.bf16.msra.mxu0 %v154
  %194 = vmatprep.subr.bf16.mxu0 0
  %195 = vmatpush1.bf16.msra.mxu0 %v155
  %196 = vmatprep.subr.bf16.mxu0 0
  %197 = vmatpush1.bf16.msra.mxu0 %v156
  %198 = vmatprep.subr.bf16.mxu0 0
  %199 = vmatpush1.bf16.msra.mxu0 %v157
  %200 = vmatprep.subr.bf16.mxu0 0
  %201 = vmatpush1.bf16.msra.mxu0 %v158
  %202 = vmatprep.subr.bf16.mxu0 0
  %203 = vmatpush1.bf16.msra.mxu0 %v159
  %204 = vmatprep.subr.bf16.mxu0 0
  %205 = vmatpush1.bf16.msra.mxu0 %v160
  %206 = vmatprep.subr.bf16.mxu0 0
  %207 = vmatpush1.bf16.msra.mxu0 %v161
  %208 = vmatprep.subr.bf16.mxu0 0
  %209 = vmatpush1.bf16.msra.mxu0 %v162
  %210 = vmatprep.subr.bf16.mxu0 0
  %211 = vmatpush1.bf16.msra.mxu0 %v163
  %212 = vmatprep.mubr.bf16.mxu0 %v77
  %213 = vmatmul.mubr.bf16.gmra.mrb[0].mxu0 %v76
  %v214 = vpop.f32.mrb[0].mxu0
  %v215 = vadd.f32 0.0, %v214
  %v216 = vpop.f32.mrb[0].mxu0
  %v217 = vpop.f32.mrb[0].mxu0
  %v218 = vadd.f32 0.0, %v217
  %v219 = vpop.f32.mrb[0].mxu0
  %220 = vmatprep.mubr.bf16.mxu0 %v79
  %221 = vmatmul.mubr.bf16.gmra.mrb[0].mxu0 %v78
  %v222 = vpop.f32.mrb[0].mxu0
  %v223 = vadd.f32 0.0, %v222
  %v224 = vpop.f32.mrb[0].mxu0
  %v225 = vpop.f32.mrb[0].mxu0
  %v226 = vadd.f32 0.0, %v225
  %v227 = vpop.f32.mrb[0].mxu0
  %228 = vdwg.mxu0
  %v229 = vadd.f32 %v24, %v215
  %v230 = vadd.f32 %v25, %v218
  %v231 = vadd.f32 %v26, %v223
  %v232 = vadd.f32 %v27, %v226
  %vm233 = vcmask 261120
  %234 = vst.msk [vmem:[#allocation2] sm:$0xff] %vm233, %v229
  %235 = vst.msk [vmem:[#allocation2 + $0x8] sm:$0xff] %vm233, %v230
  %236 = vst.msk [vmem:[#allocation2 + $0x10] sm:$0xff] %vm233, %v231
  %237 = vst.msk [vmem:[#allocation2 + $0x18] sm:$0xff] %vm233, %v232
  // Predicated region
  $region18: #{outspace_discriminator.7} parent=0 // pred_check
    %p238 = pneg %p15
  $region19: #{outspace_discriminator.7} parent=0 // pred_check_branch
    %240 = sbr.rel (%p238) target = $region21
  $region20: #{outspace_discriminator.7} parent=0 // pred_region
    %v241 = vld [vmem:[#allocation2] sm:$0xff]
    %v242 = vld [vmem:[#allocation2 + $0x8] sm:$0xff]
    %v243 = vld [vmem:[#allocation2 + $0x10] sm:$0xff]
    %v244 = vld [vmem:[#allocation2 + $0x18] sm:$0xff]
    %v245 = vld [vmem:[%s2] sm:$0x1]
    %v247 = vlaneseq
    %v248 = vshrl.u32 %v247, 7
    %v249 = vsub.s32 0, %v248
    %v250 = vrot.slane %v245, %v249
    %v252 = vadd.f32 %v241, %v250
    %v253 = vadd.f32 %v242, %v250
    %v254 = vadd.f32 %v243, %v250
    %v255 = vadd.f32 %v244, %v250
    %vm256 = vcmp.gt.f32.partialorder %v252, 0.0
    %vm257 = vcmp.gt.f32.partialorder %v253, 0.0
    %vm258 = vcmp.gt.f32.partialorder %v254, 0.0
    %vm259 = vcmp.gt.f32.partialorder %v255, 0.0
    %v260 = vmul.f32 %v252, 0.2
    %v261 = vmul.f32 %v253, 0.2
    %v262 = vmul.f32 %v254, 0.2
    %v263 = vmul.f32 %v255, 0.2
    %v264 = vsel %vm256, %v252, %v260
    %v265 = vsel %vm257, %v253, %v261
    %v266 = vsel %vm258, %v254, %v262
    %v267 = vsel %vm259, %v255, %v263
    %v268 = vpack.c.bf16 %v265, %v264
    %v269 = vpack.c.bf16 %v267, %v266
    %v272 = vunpack.c.l.b16 %v268
    %v273 = vunpack.c.h.b16 %v268
    %v274 = vunpack.c.l.b16 %v269
    %v275 = vunpack.c.h.b16 %v269
    %v276 = vpack.c.b16 %v272, %v272
    %v277 = vpack.c.b16 %v273, %v273
    %v278 = vpack.c.b16 %v274, %v274
    %v279 = vpack.c.b16 %v275, %v275
    %vm284 = vcmask 257024
    %285 = vst.msk [vmem:[%s3] sm:$0xf] %vm284, %v276
    %286 = vst.msk [vmem:[%s3 + $0x4] sm:$0xf] %vm284, %v277
    %287 = vst.msk [vmem:[%s3 + $0x8] sm:$0xf] %vm284, %v278
    %288 = vst.msk [vmem:[%s3 + $0xc] sm:$0xf] %vm284, %v279
  $region21: #{outspace_discriminator.7} parent=0 // pred_fallthru
    _
  // Predicated region
  $region22: #{outspace_discriminator.7} parent=0 // pred_check
    _
  $region23: #{outspace_discriminator.7} parent=0 // pred_check_branch
    %290 = sbr.rel (0) target = $region25
  $region24: #{outspace_discriminator.7} parent=0 // pred_region
    _
  $region25: #{outspace_discriminator.7} parent=0 // pred_fallthru
    _
  // Predicated region
  $region26: #{outspace_discriminator.7} parent=0 // pred_check
    _
  $region27: #{outspace_discriminator.7} parent=0 // pred_check_branch
    %292 = sbr.rel (0) target = $region29
  $region28: #{outspace_discriminator.7} parent=0 // pred_region
    _
  $region29: #{outspace_discriminator.7} parent=0 // pred_fallthru
    _

// kernel: outspace_discriminator.8
$region0: #{outspace_discriminator.8}
  #allocation0 [shape = 'u32[]', space=smem, size = 0x4, offset = 0x4, fixed_abs, tag = 'smem constant byte address 0x4 - core index']
  #allocation1 [shape = 'u32[144,128]{1,0:T(1,128)}', space=vmem, size = 0x12000, scoped, tag = 'internal scratch']
  #allocation2 [shape = 'f32[8,64]{1,0:T(8,128)}', space=vmem, size = 0x1000, scoped, tag = 'scratch operand']
  %s0 = inlined_call_operand.vmem [shape: bf16[8,512], index: 0, kind: input, shape index: {}]
  %s1 = inlined_call_operand.vmem [shape: bf16[512,64], index: 1, kind: input, shape index: {}]
  %s2 = inlined_call_operand.vmem [shape: f32[1,64], index: 2, kind: input, shape index: {}]
  %s3 = inlined_call_operand.vmem [shape: bf16[8,64], index: 3, kind: output, shape index: {}]
  %s4 = sld [smem:[#allocation0]]
  $region30: #{outspace_discriminator.8} parent=0
    _
  %s6 = ssub.s32 1, %s4
  %s7 = scalar_select 0, %s6, %s4
  // Predicated region
  $region2: #{outspace_discriminator.8} parent=0 // pred_check
    _
  $region3: #{outspace_discriminator.8} parent=0 // pred_check_branch
    %9 = sbr.rel (0) target = $region5
  $region4: #{outspace_discriminator.8} parent=0 // pred_region
    _
  $region5: #{outspace_discriminator.8} parent=0 // pred_fallthru
    _
  // Predicated region
  $region6: #{outspace_discriminator.8} parent=0 // pred_check
    _
  $region7: #{outspace_discriminator.8} parent=0 // pred_check_branch
    %11 = sbr.rel (0) target = $region9
  $region8: #{outspace_discriminator.8} parent=0 // pred_region
    _
  $region9: #{outspace_discriminator.8} parent=0 // pred_fallthru
    _
  // Predicated region
  $region10: #{outspace_discriminator.8} parent=0 // pred_check
    _
  $region11: #{outspace_discriminator.8} parent=0 // pred_check_branch
    %13 = sbr.rel (0) target = $region13
  $region12: #{outspace_discriminator.8} parent=0 // pred_region
    _
  $region13: #{outspace_discriminator.8} parent=0 // pred_fallthru
    _
  %p15 = scmp.eq.s32.totalorder 0, 0
  // Predicated region
  $region14: #{outspace_discriminator.8} parent=0 // pred_check
    %p16 = pneg %p15
  $region15: #{outspace_discriminator.8} parent=0 // pred_check_branch
    %18 = sbr.rel (%p16) target = $region17
  $region16: #{outspace_discriminator.8} parent=0 // pred_region
    %vm19 = vcmask 523264
    %20 = vst.msk [vmem:[#allocation2] sm:$0xff] %vm19, 0.0
  $region17: #{outspace_discriminator.8} parent=0 // pred_fallthru
    _
  %v21 = vld [vmem:[#allocation2] sm:$0xff]
  %v22 = vld [vmem:[%s0] sm:$0xff]
  %v23 = vld [vmem:[%s0 + $0x8] sm:$0xff]
  %v24 = vld [vmem:[%s1] sm:$0xf]
  %v25 = vld [vmem:[%s1 + $0x4] sm:$0xf]
  %v26 = vld [vmem:[%s1 + $0x8] sm:$0xf]
  %v27 = vld [vmem:[%s1 + $0xc] sm:$0xf]
  %v28 = vld [vmem:[%s1 + $0x10] sm:$0xf]
  %v29 = vld [vmem:[%s1 + $0x14] sm:$0xf]
  %v30 = vld [vmem:[%s1 + $0x18] sm:$0xf]
  %v31 = vld [vmem:[%s1 + $0x1c] sm:$0xf]
  %v32 = vld [vmem:[%s1 + $0x20] sm:$0xf]
  %v33 = vld [vmem:[%s1 + $0x24] sm:$0xf]
  %v34 = vld [vmem:[%s1 + $0x28] sm:$0xf]
  %v35 = vld [vmem:[%s1 + $0x2c] sm:$0xf]
  %v36 = vld [vmem:[%s1 + $0x30] sm:$0xf]
  %v37 = vld [vmem:[%s1 + $0x34] sm:$0xf]
  %v38 = vld [vmem:[%s1 + $0x38] sm:$0xf]
  %v39 = vld [vmem:[%s1 + $0x3c] sm:$0xf]
  %v40 = vld [vmem:[%s1 + $0x40] sm:$0xf]
  %v41 = vld [vmem:[%s1 + $0x44] sm:$0xf]
  %v42 = vld [vmem:[%s1 + $0x48] sm:$0xf]
  %v43 = vld [vmem:[%s1 + $0x4c] sm:$0xf]
  %v44 = vld [vmem:[%s1 + $0x50] sm:$0xf]
  %v45 = vld [vmem:[%s1 + $0x54] sm:$0xf]
  %v46 = vld [vmem:[%s1 + $0x58] sm:$0xf]
  %v47 = vld [vmem:[%s1 + $0x5c] sm:$0xf]
  %v48 = vld [vmem:[%s1 + $0x60] sm:$0xf]
  %v49 = vld [vmem:[%s1 + $0x64] sm:$0xf]
  %v50 = vld [vmem:[%s1 + $0x68] sm:$0xf]
  %v51 = vld [vmem:[%s1 + $0x6c] sm:$0xf]
  %v52 = vld [vmem:[%s1 + $0x70] sm:$0xf]
  %v53 = vld [vmem:[%s1 + $0x74] sm:$0xf]
  %v54 = vld [vmem:[%s1 + $0x78] sm:$0xf]
  %v55 = vld [vmem:[%s1 + $0x7c] sm:$0xf]
  %v56 = vld [vmem:[%s1 + $0x80] sm:$0xf]
  %v57 = vld [vmem:[%s1 + $0x84] sm:$0xf]
  %v58 = vld [vmem:[%s1 + $0x88] sm:$0xf]
  %v59 = vld [vmem:[%s1 + $0x8c] sm:$0xf]
  %v60 = vld [vmem:[%s1 + $0x90] sm:$0xf]
  %v61 = vld [vmem:[%s1 + $0x94] sm:$0xf]
  %v62 = vld [vmem:[%s1 + $0x98] sm:$0xf]
  %v63 = vld [vmem:[%s1 + $0x9c] sm:$0xf]
  %v64 = vld [vmem:[%s1 + $0xa0] sm:$0xf]
  %v65 = vld [vmem:[%s1 + $0xa4] sm:$0xf]
  %v66 = vld [vmem:[%s1 + $0xa8] sm:$0xf]
  %v67 = vld [vmem:[%s1 + $0xac] sm:$0xf]
  %v68 = vld [vmem:[%s1 + $0xb0] sm:$0xf]
  %v69 = vld [vmem:[%s1 + $0xb4] sm:$0xf]
  %v70 = vld [vmem:[%s1 + $0xb8] sm:$0xf]
  %v71 = vld [vmem:[%s1 + $0xbc] sm:$0xf]
  %v72 = vld [vmem:[%s1 + $0xc0] sm:$0xf]
  %v73 = vld [vmem:[%s1 + $0xc4] sm:$0xf]
  %v74 = vld [vmem:[%s1 + $0xc8] sm:$0xf]
  %v75 = vld [vmem:[%s1 + $0xcc] sm:$0xf]
  %v76 = vld [vmem:[%s1 + $0xd0] sm:$0xf]
  %v77 = vld [vmem:[%s1 + $0xd4] sm:$0xf]
  %v78 = vld [vmem:[%s1 + $0xd8] sm:$0xf]
  %v79 = vld [vmem:[%s1 + $0xdc] sm:$0xf]
  %v80 = vld [vmem:[%s1 + $0xe0] sm:$0xf]
  %v81 = vld [vmem:[%s1 + $0xe4] sm:$0xf]
  %v82 = vld [vmem:[%s1 + $0xe8] sm:$0xf]
  %v83 = vld [vmem:[%s1 + $0xec] sm:$0xf]
  %v84 = vld [vmem:[%s1 + $0xf0] sm:$0xf]
  %v85 = vld [vmem:[%s1 + $0xf4] sm:$0xf]
  %v86 = vld [vmem:[%s1 + $0xf8] sm:$0xf]
  %v87 = vld [vmem:[%s1 + $0xfc] sm:$0xf]
  %v90 = vunpack.c.l.b16 %v22
  %v91 = vunpack.c.h.b16 %v22
  %v92 = vunpack.c.l.b16 %v23
  %v93 = vunpack.c.h.b16 %v23
  %v94 = vpack.c.b16 %v90, %v90
  %v95 = vpack.c.b16 %v91, %v91
  %v96 = vpack.c.b16 %v92, %v92
  %v97 = vpack.c.b16 %v93, %v93
  %v166 = vunpack.c.l.b16 %v24
  %v167 = vunpack.c.l.b16 %v25
  %v168 = vunpack.c.l.b16 %v26
  %v169 = vunpack.c.l.b16 %v27
  %v170 = vunpack.c.l.b16 %v28
  %v171 = vunpack.c.l.b16 %v29
  %v172 = vunpack.c.l.b16 %v30
  %v173 = vunpack.c.l.b16 %v31
  %v174 = vunpack.c.l.b16 %v32
  %v175 = vunpack.c.l.b16 %v33
  %v176 = vunpack.c.l.b16 %v34
  %v177 = vunpack.c.l.b16 %v35
  %v178 = vunpack.c.l.b16 %v36
  %v179 = vunpack.c.l.b16 %v37
  %v180 = vunpack.c.l.b16 %v38
  %v181 = vunpack.c.l.b16 %v39
  %v182 = vunpack.c.l.b16 %v40
  %v183 = vunpack.c.l.b16 %v41
  %v184 = vunpack.c.l.b16 %v42
  %v185 = vunpack.c.l.b16 %v43
  %v186 = vunpack.c.l.b16 %v44
  %v187 = vunpack.c.l.b16 %v45
  %v188 = vunpack.c.l.b16 %v46
  %v189 = vunpack.c.l.b16 %v47
  %v190 = vunpack.c.l.b16 %v48
  %v191 = vunpack.c.l.b16 %v49
  %v192 = vunpack.c.l.b16 %v50
  %v193 = vunpack.c.l.b16 %v51
  %v194 = vunpack.c.l.b16 %v52
  %v195 = vunpack.c.l.b16 %v53
  %v196 = vunpack.c.l.b16 %v54
  %v197 = vunpack.c.l.b16 %v55
  %v198 = vunpack.c.l.b16 %v56
  %v199 = vunpack.c.l.b16 %v57
  %v200 = vunpack.c.l.b16 %v58
  %v201 = vunpack.c.l.b16 %v59
  %v202 = vunpack.c.l.b16 %v60
  %v203 = vunpack.c.l.b16 %v61
  %v204 = vunpack.c.l.b16 %v62
  %v205 = vunpack.c.l.b16 %v63
  %v206 = vunpack.c.l.b16 %v64
  %v207 = vunpack.c.l.b16 %v65
  %v208 = vunpack.c.l.b16 %v66
  %v209 = vunpack.c.l.b16 %v67
  %v210 = vunpack.c.l.b16 %v68
  %v211 = vunpack.c.l.b16 %v69
  %v212 = vunpack.c.l.b16 %v70
  %v213 = vunpack.c.l.b16 %v71
  %v214 = vunpack.c.l.b16 %v72
  %v215 = vunpack.c.l.b16 %v73
  %v216 = vunpack.c.l.b16 %v74
  %v217 = vunpack.c.l.b16 %v75
  %v218 = vunpack.c.l.b16 %v76
  %v219 = vunpack.c.l.b16 %v77
  %v220 = vunpack.c.l.b16 %v78
  %v221 = vunpack.c.l.b16 %v79
  %v222 = vunpack.c.l.b16 %v80
  %v223 = vunpack.c.l.b16 %v81
  %v224 = vunpack.c.l.b16 %v82
  %v225 = vunpack.c.l.b16 %v83
  %v226 = vunpack.c.l.b16 %v84
  %v227 = vunpack.c.l.b16 %v85
  %v228 = vunpack.c.l.b16 %v86
  %v229 = vunpack.c.l.b16 %v87
  %v230 = vpack.c.b16 %v167, %v166
  %v231 = vpack.c.b16 %v169, %v168
  %v232 = vpack.c.b16 %v171, %v170
  %v233 = vpack.c.b16 %v173, %v172
  %v234 = vpack.c.b16 %v175, %v174
  %v235 = vpack.c.b16 %v177, %v176
  %v236 = vpack.c.b16 %v179, %v178
  %v237 = vpack.c.b16 %v181, %v180
  %v238 = vpack.c.b16 %v183, %v182
  %v239 = vpack.c.b16 %v185, %v184
  %v240 = vpack.c.b16 %v187, %v186
  %v241 = vpack.c.b16 %v189, %v188
  %v242 = vpack.c.b16 %v191, %v190
  %v243 = vpack.c.b16 %v193, %v192
  %v244 = vpack.c.b16 %v195, %v194
  %v245 = vpack.c.b16 %v197, %v196
  %v246 = vpack.c.b16 %v199, %v198
  %v247 = vpack.c.b16 %v201, %v200
  %v248 = vpack.c.b16 %v203, %v202
  %v249 = vpack.c.b16 %v205, %v204
  %v250 = vpack.c.b16 %v207, %v206
  %v251 = vpack.c.b16 %v209, %v208
  %v252 = vpack.c.b16 %v211, %v210
  %v253 = vpack.c.b16 %v213, %v212
  %v254 = vpack.c.b16 %v215, %v214
  %v255 = vpack.c.b16 %v217, %v216
  %v256 = vpack.c.b16 %v219, %v218
  %v257 = vpack.c.b16 %v221, %v220
  %v258 = vpack.c.b16 %v223, %v222
  %v259 = vpack.c.b16 %v225, %v224
  %v260 = vpack.c.b16 %v227, %v226
  %v261 = vpack.c.b16 %v229, %v228
  %294 = vmatprep.subr.bf16.mxu0 0
  %295 = vmatpush1.bf16.msra.mxu0 %v230
  %296 = vmatprep.subr.bf16.mxu0 0
  %297 = vmatpush1.bf16.msra.mxu0 %v231
  %298 = vmatprep.subr.bf16.mxu0 0
  %299 = vmatpush1.bf16.msra.mxu0 %v232
  %300 = vmatprep.subr.bf16.mxu0 0
  %301 = vmatpush1.bf16.msra.mxu0 %v233
  %302 = vmatprep.subr.bf16.mxu0 0
  %303 = vmatpush1.bf16.msra.mxu0 %v234
  %304 = vmatprep.subr.bf16.mxu0 0
  %305 = vmatpush1.bf16.msra.mxu0 %v235
  %306 = vmatprep.subr.bf16.mxu0 0
  %307 = vmatpush1.bf16.msra.mxu0 %v236
  %308 = vmatprep.subr.bf16.mxu0 0
  %309 = vmatpush1.bf16.msra.mxu0 %v237
  %310 = vmatprep.subr.bf16.mxu0 0
  %311 = vmatpush1.bf16.msra.mxu0 %v238
  %312 = vmatprep.subr.bf16.mxu0 0
  %313 = vmatpush1.bf16.msra.mxu0 %v239
  %314 = vmatprep.subr.bf16.mxu0 0
  %315 = vmatpush1.bf16.msra.mxu0 %v240
  %316 = vmatprep.subr.bf16.mxu0 0
  %317 = vmatpush1.bf16.msra.mxu0 %v241
  %318 = vmatprep.subr.bf16.mxu0 0
  %319 = vmatpush1.bf16.msra.mxu0 %v242
  %320 = vmatprep.subr.bf16.mxu0 0
  %321 = vmatpush1.bf16.msra.mxu0 %v243
  %322 = vmatprep.subr.bf16.mxu0 0
  %323 = vmatpush1.bf16.msra.mxu0 %v244
  %324 = vmatprep.subr.bf16.mxu0 0
  %325 = vmatpush1.bf16.msra.mxu0 %v245
  %326 = vmatprep.mubr.bf16.mxu0 %v95
  %327 = vmatmul.mubr.bf16.gmra.mrb[0].mxu0 %v94
  %v328 = vpop.f32.mrb[0].mxu0
  %v329 = vadd.f32 0.0, %v328
  %v330 = vpop.f32.mrb[0].mxu0
  %v331 = vpop.f32.mrb[0].mxu0
  %v332 = vpop.f32.mrb[0].mxu0
  %333 = vdwg.mxu0
  %334 = vmatprep.subr.bf16.mxu0 0
  %335 = vmatpush1.bf16.msra.mxu0 %v246
  %336 = vmatprep.subr.bf16.mxu0 0
  %337 = vmatpush1.bf16.msra.mxu0 %v247
  %338 = vmatprep.subr.bf16.mxu0 0
  %339 = vmatpush1.bf16.msra.mxu0 %v248
  %340 = vmatprep.subr.bf16.mxu0 0
  %341 = vmatpush1.bf16.msra.mxu0 %v249
  %342 = vmatprep.subr.bf16.mxu0 0
  %343 = vmatpush1.bf16.msra.mxu0 %v250
  %344 = vmatprep.subr.bf16.mxu0 0
  %345 = vmatpush1.bf16.msra.mxu0 %v251
  %346 = vmatprep.subr.bf16.mxu0 0
  %347 = vmatpush1.bf16.msra.mxu0 %v252
  %348 = vmatprep.subr.bf16.mxu0 0
  %349 = vmatpush1.bf16.msra.mxu0 %v253
  %350 = vmatprep.subr.bf16.mxu0 0
  %351 = vmatpush1.bf16.msra.mxu0 %v254
  %352 = vmatprep.subr.bf16.mxu0 0
  %353 = vmatpush1.bf16.msra.mxu0 %v255
  %354 = vmatprep.subr.bf16.mxu0 0
  %355 = vmatpush1.bf16.msra.mxu0 %v256
  %356 = vmatprep.subr.bf16.mxu0 0
  %357 = vmatpush1.bf16.msra.mxu0 %v257
  %358 = vmatprep.subr.bf16.mxu0 0
  %359 = vmatpush1.bf16.msra.mxu0 %v258
  %360 = vmatprep.subr.bf16.mxu0 0
  %361 = vmatpush1.bf16.msra.mxu0 %v259
  %362 = vmatprep.subr.bf16.mxu0 0
  %363 = vmatpush1.bf16.msra.mxu0 %v260
  %364 = vmatprep.subr.bf16.mxu0 0
  %365 = vmatpush1.bf16.msra.mxu0 %v261
  %366 = vmatprep.mubr.bf16.mxu0 %v97
  %367 = vmatmul.mubr.bf16.gmra.mrb[0].mxu0 %v96
  %v368 = vpop.f32.mrb[0].mxu0
  %v369 = vadd.f32 %v329, %v368
  %v370 = vpop.f32.mrb[0].mxu0
  %v371 = vpop.f32.mrb[0].mxu0
  %v372 = vpop.f32.mrb[0].mxu0
  %373 = vdwg.mxu0
  %v374 = vadd.f32 %v21, %v369
  %vm375 = vcmask 523264
  %376 = vst.msk [vmem:[#allocation2] sm:$0xff] %vm375, %v374
  // Predicated region
  $region18: #{outspace_discriminator.8} parent=0 // pred_check
    %p377 = pneg %p15
  $region19: #{outspace_discriminator.8} parent=0 // pred_check_branch
    %379 = sbr.rel (%p377) target = $region21
  $region20: #{outspace_discriminator.8} parent=0 // pred_region
    %v380 = vld [vmem:[#allocation2] sm:$0xff]
    %v381 = vld [vmem:[%s2] sm:$0x1]
    %v383 = vlaneseq
    %v384 = vshrl.u32 %v383, 7
    %v385 = vsub.s32 0, %v384
    %v386 = vrot.slane %v381, %v385
    %v388 = vadd.f32 %v380, %v386
    %vm389 = vcmp.gt.f32.partialorder %v388, 0.0
    %v390 = vmul.f32 %v388, 0.2
    %v391 = vsel %vm389, %v388, %v390
    %v392 = vpack.c.bf16 %v391, %v391
    %vm393 = vcmask 519168
    %394 = vst.msk [vmem:[%s3] sm:$0xf] %vm393, %v392
  $region21: #{outspace_discriminator.8} parent=0 // pred_fallthru
    _
  // Predicated region
  $region22: #{outspace_discriminator.8} parent=0 // pred_check
    _
  $region23: #{outspace_discriminator.8} parent=0 // pred_check_branch
    %396 = sbr.rel (0) target = $region25
  $region24: #{outspace_discriminator.8} parent=0 // pred_region
    _
  $region25: #{outspace_discriminator.8} parent=0 // pred_fallthru
    _
  // Predicated region
  $region26: #{outspace_discriminator.8} parent=0 // pred_check
    _
  $region27: #{outspace_discriminator.8} parent=0 // pred_check_branch
    %398 = sbr.rel (0) target = $region29
  $region28: #{outspace_discriminator.8} parent=0 // pred_region
    _
  $region29: #{outspace_discriminator.8} parent=0 // pred_fallthru
    _

// kernel: outspace_discriminator.9
$region0: #{outspace_discriminator.9}
  #allocation0 [shape = 'u32[]', space=smem, size = 0x4, offset = 0x4, fixed_abs, tag = 'smem constant byte address 0x4 - core index']
  #allocation1 [shape = 'u32[144,128]{1,0:T(1,128)}', space=vmem, size = 0x12000, scoped, tag = 'internal scratch']
  #allocation2 [shape = 'f32[2,1]{1,0:T(2,128)}', space=vmem, size = 0x400, scoped, tag = 'scratch operand']
  #allocation3 [shape = 'f32[1,1]{1,0:T(1,128)S(1)}', space=vmem, size = 0x200, scoped, tag = 'scoped memory for outspace_discriminator.9']
  %s0 = inlined_call_operand.vmem [shape: bf16[2,1024], index: 0, kind: input, shape index: {}]
  %s1 = inlined_call_operand.vmem [shape: bf16[1,1024], index: 1, kind: input, shape index: {}]
  %s2 = inlined_call_operand.<no memory space> [shape: f32[1,1], index: 2, kind: input, shape index: {}]
  %s3 = inlined_call_operand.vmem [shape: f32[2,1], index: 3, kind: output, shape index: {}]
  %s4 = sld [smem:[#allocation0]]
  $region30: #{outspace_discriminator.9} parent=0
    _
  %s6 = ssub.s32 1, %s4
  %s7 = scalar_select 0, %s6, %s4
  %v8 = vstv %s2
  %9 = vst [vmem:[#allocation3] sm:$0x1] %v8
  // Predicated region
  $region2: #{outspace_discriminator.9} parent=0 // pred_check
    _
  $region3: #{outspace_discriminator.9} parent=0 // pred_check_branch
    %11 = sbr.rel (0) target = $region5
  $region4: #{outspace_discriminator.9} parent=0 // pred_region
    _
  $region5: #{outspace_discriminator.9} parent=0 // pred_fallthru
    _
  // Predicated region
  $region6: #{outspace_discriminator.9} parent=0 // pred_check
    _
  $region7: #{outspace_discriminator.9} parent=0 // pred_check_branch
    %13 = sbr.rel (0) target = $region9
  $region8: #{outspace_discriminator.9} parent=0 // pred_region
    _
  $region9: #{outspace_discriminator.9} parent=0 // pred_fallthru
    _
  // Predicated region
  $region10: #{outspace_discriminator.9} parent=0 // pred_check
    _
  $region11: #{outspace_discriminator.9} parent=0 // pred_check_branch
    %15 = sbr.rel (0) target = $region13
  $region12: #{outspace_discriminator.9} parent=0 // pred_region
    _
  $region13: #{outspace_discriminator.9} parent=0 // pred_fallthru
    _
  %p16 = scmp.eq.s32.totalorder 0, 0
  // Predicated region
  $region14: #{outspace_discriminator.9} parent=0 // pred_check
    %p17 = pneg %p16
  $region15: #{outspace_discriminator.9} parent=0 // pred_check_branch
    %19 = sbr.rel (%p17) target = $region17
  $region16: #{outspace_discriminator.9} parent=0 // pred_region
    %vm20 = vcmask 1024
    %21 = vst.msk [vmem:[#allocation2] sm:$0x3] %vm20, 0.0
  $region17: #{outspace_discriminator.9} parent=0 // pred_fallthru
    _
  %v22 = vld [vmem:[%s0] sm:$0xff]
  %v23 = vunpack.c.l.bf16 %v22
  %v24 = vunpack.c.h.bf16 %v22
  %v25 = vld [vmem:[%s1] sm:$0xff]
  %v26 = vunpack.c.l.bf16 %v25
  %v27 = vunpack.c.h.bf16 %v25
  %v30 = vlaneseq
  %v31 = vshrl.u32 %v30, 7
  %v32 = vsub.s32 0, %v31
  %v33 = vrot.slane %v26, %v32
  %v34 = vlaneseq
  %v35 = vshrl.u32 %v34, 7
  %v36 = vsub.s32 2, %v35
  %v37 = vrot.slane %v26, %v36
  %v38 = vlaneseq
  %v39 = vshrl.u32 %v38, 7
  %v40 = vsub.s32 4, %v39
  %v41 = vrot.slane %v26, %v40
  %v42 = vlaneseq
  %v43 = vshrl.u32 %v42, 7
  %v44 = vsub.s32 6, %v43
  %v45 = vrot.slane %v26, %v44
  %v46 = vlaneseq
  %v47 = vshrl.u32 %v46, 7
  %v48 = vsub.s32 0, %v47
  %v49 = vrot.slane %v27, %v48
  %v50 = vlaneseq
  %v51 = vshrl.u32 %v50, 7
  %v52 = vsub.s32 2, %v51
  %v53 = vrot.slane %v27, %v52
  %v54 = vlaneseq
  %v55 = vshrl.u32 %v54, 7
  %v56 = vsub.s32 4, %v55
  %v57 = vrot.slane %v27, %v56
  %v58 = vlaneseq
  %v59 = vshrl.u32 %v58, 7
  %v60 = vsub.s32 6, %v59
  %v61 = vrot.slane %v27, %v60
  %v70 = vlaneseq
  %v71 = vshrl.u32 %v70, 7
  %v72 = vsub.s32 0, %v71
  %v73 = vrot.slane %v33, %v72
  %v74 = vlaneseq
  %v75 = vshrl.u32 %v74, 7
  %v76 = vsub.s32 0, %v75
  %v77 = vrot.slane %v37, %v76
  %v78 = vlaneseq
  %v79 = vshrl.u32 %v78, 7
  %v80 = vsub.s32 0, %v79
  %v81 = vrot.slane %v41, %v80
  %v82 = vlaneseq
  %v83 = vshrl.u32 %v82, 7
  %v84 = vsub.s32 0, %v83
  %v85 = vrot.slane %v45, %v84
  %v86 = vlaneseq
  %v87 = vshrl.u32 %v86, 7
  %v88 = vsub.s32 0, %v87
  %v89 = vrot.slane %v49, %v88
  %v90 = vlaneseq
  %v91 = vshrl.u32 %v90, 7
  %v92 = vsub.s32 0, %v91
  %v93 = vrot.slane %v53, %v92
  %v94 = vlaneseq
  %v95 = vshrl.u32 %v94, 7
  %v96 = vsub.s32 0, %v95
  %v97 = vrot.slane %v57, %v96
  %v98 = vlaneseq
  %v99 = vshrl.u32 %v98, 7
  %v100 = vsub.s32 0, %v99
  %v101 = vrot.slane %v61, %v100
  %v110 = vcombine.low %v73, %v77
  %v111 = vcombine.low %v81, %v85
  %v113 = vunpack.c.l.s4 1983009808
  %v114 = vunpack.c.0.s8 %v113
  %v115 = vlaneseq
  %v116 = vshrl.u32 %v115, 7
  %v117 = vsub.s32 %v114, %v116
  %v118 = vrot.slane %v110, %v117
  %v120 = vunpack.c.l.s4 1983009808
  %v121 = vunpack.c.0.s8 %v120
  %v122 = vlaneseq
  %v123 = vshrl.u32 %v122, 7
  %v124 = vsub.s32 %v121, %v123
  %v125 = vrot.slane %v111, %v124
  %v126 = vcombine.low %v118, %v125
  %v127 = vcombine.low %v89, %v93
  %v128 = vcombine.low %v97, %v101
  %v130 = vunpack.c.l.s4 1983009808
  %v131 = vunpack.c.0.s8 %v130
  %v132 = vlaneseq
  %v133 = vshrl.u32 %v132, 7
  %v134 = vsub.s32 %v131, %v133
  %v135 = vrot.slane %v127, %v134
  %v137 = vunpack.c.l.s4 1983009808
  %v138 = vunpack.c.0.s8 %v137
  %v139 = vlaneseq
  %v140 = vshrl.u32 %v139, 7
  %v141 = vsub.s32 %v138, %v140
  %v142 = vrot.slane %v128, %v141
  %v143 = vcombine.low %v135, %v142
  %v146 = vmul.f32 %v23, %v126
  %v147 = vmul.f32 %v24, %v143
  %v148 = vld [vmem:[#allocation2] sm:$0x3]
  %v151 = vcombine.high %v146, %v146
  %v153 = vunpack.c.l.s4 1983009808
  %v154 = vunpack.c.0.s8 %v153
  %v155 = vlaneseq
  %v156 = vshrl.u32 %v155, 7
  %v157 = vsub.s32 %v154, %v156
  %v158 = vrot.slane %v146, %v157
  %v160 = vunpack.c.l.s4 1983009808
  %v161 = vunpack.c.0.s8 %v160
  %v162 = vlaneseq
  %v163 = vshrl.u32 %v162, 7
  %v164 = vsub.s32 %v161, %v163
  %v165 = vrot.slane %v151, %v164
  %v166 = vcombine.high %v158, %v158
  %v167 = vcombine.high %v165, %v165
  %v168 = vcombine.high %v147, %v147
  %v170 = vunpack.c.l.s4 1983009808
  %v171 = vunpack.c.0.s8 %v170
  %v172 = vlaneseq
  %v173 = vshrl.u32 %v172, 7
  %v174 = vsub.s32 %v171, %v173
  %v175 = vrot.slane %v147, %v174
  %v177 = vunpack.c.l.s4 1983009808
  %v178 = vunpack.c.0.s8 %v177
  %v179 = vlaneseq
  %v180 = vshrl.u32 %v179, 7
  %v181 = vsub.s32 %v178, %v180
  %v182 = vrot.slane %v168, %v181
  %v183 = vcombine.high %v175, %v175
  %v184 = vcombine.high %v182, %v182
  %vm193 = vcmask 1041408
  %v194 = vsel %vm193, %v158, 0.0
  %v195 = vsel %vm193, %v166, 0.0
  %v196 = vadd.f32 %v194, %v195
  %v197 = vsel %vm193, %v165, 0.0
  %v198 = vadd.f32 %v196, %v197
  %v199 = vsel %vm193, %v167, 0.0
  %v200 = vadd.f32 %v198, %v199
  %v201 = vsel %vm193, %v175, 0.0
  %v202 = vadd.f32 %v200, %v201
  %v203 = vsel %vm193, %v183, 0.0
  %v204 = vadd.f32 %v202, %v203
  %v205 = vsel %vm193, %v182, 0.0
  %v206 = vadd.f32 %v204, %v205
  %v207 = vsel %vm193, %v184, 0.0
  %v208 = vadd.f32 %v206, %v207
  %209 = vadd.xlane.f32.xlu0 %v208
  %v210 = vpop.xlane.xlu0 %209
  %v211 = vadd.f32 %v148, %v210
  %vm212 = vcmask 1024
  %213 = vst.msk [vmem:[#allocation2] sm:$0x3] %vm212, %v211
  // Predicated region
  $region18: #{outspace_discriminator.9} parent=0 // pred_check
    %p214 = pneg %p16
  $region19: #{outspace_discriminator.9} parent=0 // pred_check_branch
    %216 = sbr.rel (%p214) target = $region21
  $region20: #{outspace_discriminator.9} parent=0 // pred_region
    %v217 = vld [vmem:[#allocation2] sm:$0x3]
    %v218 = vld [vmem:[#allocation3] sm:$0x1]
    %v220 = vlaneseq
    %v221 = vshrl.u32 %v220, 7
    %v222 = vsub.s32 0, %v221
    %v223 = vrot.slane %v218, %v222
    %v225 = vadd.f32 %v217, %v223
    %226 = vst.msk [vmem:[%s3] sm:$0x3] %vm212, %v225
  $region21: #{outspace_discriminator.9} parent=0 // pred_fallthru
    _
  // Predicated region
  $region22: #{outspace_discriminator.9} parent=0 // pred_check
    _
  $region23: #{outspace_discriminator.9} parent=0 // pred_check_branch
    %228 = sbr.rel (0) target = $region25
  $region24: #{outspace_discriminator.9} parent=0 // pred_region
    _
  $region25: #{outspace_discriminator.9} parent=0 // pred_fallthru
    _
  // Predicated region
  $region26: #{outspace_discriminator.9} parent=0 // pred_check
    _
  $region27: #{outspace_discriminator.9} parent=0 // pred_check_branch
    %230 = sbr.rel (0) target = $region29
  $region28: #{outspace_discriminator.9} parent=0 // pred_region
    _
  $region29: #{outspace_discriminator.9} parent=0 // pred_fallthru
    _

</llo_original>
